<compile_context>
chip_gen: v5e
topology: v5e:2x2
jax: 0.10.0
libtpu: 0.0.40
codegen_flags: <defaults>
</compile_context>

<pallas_src>
import numpy as np
import jax
import jax.numpy as jnp
from jax import lax
from jax.experimental import pallas as pl
from jax.experimental.pallas import tpu as pltpu

_NEG = -3.4e38           # masked-message sentinel (stands in for -inf)
_NO_IN_EDGE = -1.0e38    # acc <= this  <=>  no edge ever contributed


# ----------------------------- Pallas kernel ------------------------------- #
def _text_gcn_kernel(eta_ref, emb_ref, adj_ref, out_ref):
    """One grid step == one block of b_blk document graphs.

    eta_ref : [1, 1]          SMEM scalar (node_eta)
    emb_ref : [b_blk, N, Hp]  node embeddings (padded node rows zeroed)
    adj_ref : [b_blk, N, N]   edge weight w[dst, src]; NaN where no edge
    out_ref : [b_blk, Hp]     per-document readout (lane-dense block)
    """
    b_blk, n_nodes, h_pad = emb_ref.shape

    # ----- loop invariants, hoisted once (JAX does not CSE broadcasts) ------
    eta = eta_ref[0, 0]
    one_minus_eta = 1.0 - eta
    neg_init = jnp.full((n_nodes, h_pad), _NEG, dtype=jnp.float32)
    row_ids = lax.broadcasted_iota(jnp.int32, (b_blk, 1), 0)

    def per_doc(b, rows):
        emb_b = emb_ref[b]                                 # [N, Hp]
        adj_b = adj_ref[b]                                 # [N, N], NaN = no edge

        # Split NaN-encoded adjacency ONCE per doc into a 0-filled weight and
        # an additive penalty (-3.4e38 where no edge, 0 on real edges); the
        # per-src loop then needs no isnan / where at all.
        is_edge = jnp.logical_not(jnp.isnan(adj_b))        # [N, N]
        w_b = jnp.where(is_edge, adj_b, 0.0)               # [N, N]
        pen_b = jnp.where(is_edge, 0.0, _NEG)              # [N, N]

        # Per-src elementwise running max: term = outer(w[:, s], h[s, :]) + pen;
        # everything stays on the VALU slots, no [N, S, Hp] intermediate and
        # no cross-sublane (XLU) max reduce.
        acc = neg_init
        for s in range(n_nodes):                           # static trip count
            w_col = w_b[:, s:s + 1]                        # [N, 1]   w[dst, s]
            p_col = pen_b[:, s:s + 1]                      # [N, 1]
            h_row = emb_b[s:s + 1, :]                      # [1, Hp]  h_before[s]
            acc = jnp.maximum(acc, w_col * h_row + p_col)  # [N, Hp]

        # DGL fills zero-in-degree nodes (incl. padded rows) with 0.  Detected
        # in-kernel: acc only stays at the sentinel when no edge contributed.
        after = jnp.where(acc > _NO_IN_EDGE, acc, 0.0)     # [N, Hp]

        # node_eta mixing (eta == 0 in the reference; keep the full expression)
        new_h = eta * emb_b + one_minus_eta * after        # [N, Hp]

        # dgl.sum_nodes readout (padded node rows are exactly 0)
        row = jnp.sum(new_h, axis=0, keepdims=True)        # [1, Hp]

        # Accumulate into the carried (b_blk, Hp) block; no per-doc masked
        # partial store into out_ref.
        return jnp.where(row_ids == b, row, rows)

    rows = lax.fori_loop(0, b_blk, per_doc,
                         jnp.zeros((b_blk, h_pad), jnp.float32), unroll=True)

    # (dropout is identity in eval), ReLU, ONE unmasked lane-dense store.
    out_ref[...] = jnp.maximum(rows, 0.0)


def text_gcn_forward(eta, emb, adj, *, b_blk):
    """emb: [B, N, H_pad] f32 (padded rows/lanes zeroed),
       adj: [B, N, N] f32 (NaN = no edge), eta: [1, 1] f32."""
    B, N, Hp = emb.shape
    assert Hp % 128 == 0, "hidden dim must be padded to the 128-lane width"
    assert B % b_blk == 0
    assert b_blk % 8 == 0 or b_blk == B       # keep the output block sublane-aligned
    # Keep B // b_blk even so ("parallel",) splits evenly over v7x's 2 TCs.

    return pl.pallas_call(
        _text_gcn_kernel,
        out_shape=jax.ShapeDtypeStruct((B, Hp), jnp.float32),
        grid_spec=pltpu.PrefetchScalarGridSpec(
            num_scalar_prefetch=0,
            grid=(B // b_blk,),
            in_specs=[
                pl.BlockSpec(memory_space=pltpu.MemorySpace.SMEM),   # eta (1,1)
                pl.BlockSpec((b_blk, N, Hp), lambda g: (g, 0, 0)),   # node embeddings
                pl.BlockSpec((b_blk, N, N), lambda g: (g, 0, 0)),    # NaN-encoded adjacency
            ],
            out_specs=pl.BlockSpec((b_blk, Hp), lambda g: (g, 0)),   # lane-dense output slab
        ),
        compiler_params=pltpu.CompilerParams(
            dimension_semantics=("parallel",),
            # blocks here are ~100 KiB; re-derive b_blk against v7x's 64 MiB
            # physical VMEM before scaling N_MAX / b_blk up (adjacency is the
            # quadratic term).
            vmem_limit_bytes=32 * 1024 * 1024,
        ),
    )(eta, emb, adj)


# ------------------------- graph construction glue ------------------------- #
def build_batch_graphs(doc_ids_batch, ngram, max_length, n_max,
                       edges_matrix, edge_weights):
    """Mirror seq_to_graph/add_seq_edges as dense padded tensors (host glue)."""
    B = len(doc_ids_batch)
    emb_idx = np.zeros((B, n_max), dtype=np.int32)
    adj_w = np.zeros((B, n_max, n_max), dtype=np.float32)
    adj_m = np.zeros((B, n_max, n_max), dtype=np.float32)
    node_mask = np.zeros((B, n_max, 1), dtype=np.float32)
    for b, doc in enumerate(doc_ids_batch):
        doc = list(doc)[:max_length]
        local_vocab = list(dict.fromkeys(doc))           # unique words (nodes)
        old_to_new = {w: i for i, w in enumerate(local_vocab)}
        n = len(local_vocab)
        assert n <= n_max
        emb_idx[b, :n] = local_vocab
        node_mask[b, :n, 0] = 1.0
        filt = [w for w in doc if w != 0]                # drop padding id 0
        for idx, src_old in enumerate(filt):
            src = old_to_new[src_old]
            lo, hi = max(0, idx - ngram), min(idx + ngram + 1, len(filt))
            for i in range(lo, hi):
                dst_old = filt[i]
                dst = old_to_new[dst_old]
                eid = edges_matrix[src_old, dst_old]
                adj_w[b, dst, src] = edge_weights[eid]   # message src -> dst
                adj_m[b, dst, src] = 1.0
            eid = edges_matrix[src_old, src_old]         # self loop
            adj_w[b, src, src] = edge_weights[eid]
            adj_m[b, src, src] = 1.0
    return emb_idx, adj_w, adj_m, node_mask


def prepare_kernel_inputs(node_hidden, emb_idx, adj_w, adj_m, node_mask, h_pad):
    """Gather embeddings, zero padded rows, pad H to the lane width, and fold
    the edge mask into the weight tensor via NaN (single adjacency stream)."""
    B, N = emb_idx.shape
    H = node_hidden.shape[1]
    emb = jnp.asarray(node_hidden)[jnp.asarray(emb_idx)] * jnp.asarray(node_mask)
    emb_p = jnp.zeros((B, N, h_pad), jnp.float32).at[:, :, :H].set(emb)
    adj = np.where(adj_m > 0.0, adj_w, np.nan).astype(np.float32)
    return emb_p, jnp.asarray(adj)


def reference_forward(emb, adj_w, adj_m, node_mask, eta):
    msg = adj_w[:, :, :, None] * emb[:, None, :, :]
    msg = np.where(adj_m[:, :, :, None] > 0, msg, -np.inf)
    after = msg.max(axis=2)
    has_in = adj_m.sum(axis=2, keepdims=True) > 0
    after = np.where(has_in, after, 0.0)
    new_h = eta * emb + (1 - eta) * after
    new_h = np.where(node_mask > 0, new_h, 0.0)
    return np.maximum(new_h.sum(axis=1), 0.0)


# ----------------------------------- main ----------------------------------- #
if __name__ == "__main__":
    # small, deterministic config
    B, L = 32, 12              # batch, sequence length
    V = 50                     # len(vocab)
    H = 128                    # hidden_size_node (production: glove-300d >= 128)
    NGRAM = 2                  # n_gram
    MAX_LENGTH = 100
    N_MAX = 16                 # padded nodes per graph (>= unique words per doc)
    B_BLK = 8                  # documents per grid step -> grid of 4 (even)
    H_PAD = ((H + 127) // 128) * 128   # lane-dense hidden width (=128 here)

    key = jax.random.PRNGKey(0)
    k_emb, k_doc = jax.random.split(key)

    # parameters (deterministic, in-script; stand-in for the glove load)
    node_hidden = jax.random.normal(k_emb, (V, H), dtype=jnp.float32)
    edges_matrix = np.arange(V * V, dtype=np.int64).reshape(V, V)
    edge_weights = np.ones((V * V,), dtype=np.float32)   # seq_edge_w init: ones
    node_eta = jnp.zeros((1, 1), dtype=jnp.float32)      # node_eta.data.fill_(0)

    # input doc ids (no padding zeros so every node has edges)
    doc_ids = np.asarray(
        jax.random.randint(k_doc, (B, L), minval=1, maxval=V, dtype=jnp.int32))

    emb_idx, adj_w, adj_m, node_mask = build_batch_graphs(
        doc_ids.tolist(), NGRAM, MAX_LENGTH, N_MAX, edges_matrix, edge_weights)

    emb_p, adj = prepare_kernel_inputs(
        node_hidden, emb_idx, adj_w, adj_m, node_mask, H_PAD)

    out_p = text_gcn_forward(node_eta, emb_p, adj, b_blk=B_BLK)
    out_p = jax.block_until_ready(out_p)
    out = np.asarray(out_p)[:, :H]                       # drop H padding lanes

    emb_raw = np.asarray(jnp.asarray(node_hidden)[jnp.asarray(emb_idx)])
    ref = reference_forward(emb_raw, adj_w, adj_m, node_mask, 0.0)
    np.testing.assert_allclose(out, ref, rtol=1e-5, atol=1e-5)

    print("KERNEL_OK")
</pallas_src>

<mosaic_0001>
module attributes {stable_mosaic.version = 11 : i64} {
  func.func @_text_gcn_kernel(%arg0: i32, %arg1: memref<1x1xf32, #tpu.memory_space<smem>>, %arg2: memref<8x16x128xf32, #tpu.memory_space<vmem>>, %arg3: memref<8x16x16xf32, #tpu.memory_space<vmem>>, %arg4: memref<8x128xf32, #tpu.memory_space<vmem>>) attributes {dimension_semantics = [#tpu.dimension_semantics<parallel>], iteration_bounds = array<i64: 4>, scalar_prefetch = 0 : i64, scratch_operands = 0 : i64, tpu.core_type = #tpu.core_type<tc>, window_params = [{transform_indices = @transform_0, window_bounds = array<i64: 1, 1>}, {transform_indices = @transform_1, window_bounds = array<i64: 8, 16, 128>}, {transform_indices = @transform_2, window_bounds = array<i64: 8, 16, 16>}, {transform_indices = @transform_3, window_bounds = array<i64: 8, 128>}]} {
    %c0 = arith.constant 0 : index
    %c0_0 = arith.constant 0 : index
    %0 = memref.load %arg1[%c0, %c0_0] : memref<1x1xf32, #tpu.memory_space<smem>>
    %cst = arith.constant 1.000000e+00 : f32
    %1 = arith.subf %cst, %0 : f32
    %cst_1 = arith.constant -3.400000e+38 : f32
    %2 = vector.broadcast %cst_1 : f32 to vector<16x128xf32>
    %3 = tpu.iota {dimensions = array<i32: 0>} : vector<8x1xi32>
    %cst_2 = arith.constant 0.000000e+00 : f32
    %4 = vector.broadcast %cst_2 : f32 to vector<8x128xf32>
    %c0_i32 = arith.constant 0 : i32
    %5 = arith.index_cast %c0_i32 : i32 to index
    %c0_3 = arith.constant 0 : index
    %c0_4 = arith.constant 0 : index
    %6 = vector.load %arg2[%5, %c0_3, %c0_4] : memref<8x16x128xf32, #tpu.memory_space<vmem>>, vector<1x16x128xf32>
    %7 = vector.shape_cast %6 : vector<1x16x128xf32> to vector<16x128xf32>
    %8 = arith.index_cast %c0_i32 : i32 to index
    %c0_5 = arith.constant 0 : index
    %c0_6 = arith.constant 0 : index
    %9 = vector.load %arg3[%8, %c0_5, %c0_6] : memref<8x16x16xf32, #tpu.memory_space<vmem>>, vector<1x16x16xf32>
    %10 = vector.shape_cast %9 : vector<1x16x16xf32> to vector<16x16xf32>
    %11 = arith.cmpf one, %10, %10 : vector<16x16xf32>
    %cst_7 = arith.constant dense<true> : vector<16x16xi1>
    %12 = arith.xori %11, %cst_7 : vector<16x16xi1>
    %cst_8 = arith.constant 0.000000e+00 : f32
    %13 = vector.broadcast %cst_8 : f32 to vector<16x16xf32>
    %14 = arith.select %12, %10, %13 : vector<16x16xi1>, vector<16x16xf32>
    %cst_9 = arith.constant 0.000000e+00 : f32
    %cst_10 = arith.constant -3.400000e+38 : f32
    %15 = vector.broadcast %cst_9 : f32 to vector<16x16xf32>
    %16 = vector.broadcast %cst_10 : f32 to vector<16x16xf32>
    %17 = arith.select %12, %15, %16 : vector<16x16xi1>, vector<16x16xf32>
    %18 = vector.extract_strided_slice %14 {offsets = [0, 0], sizes = [16, 1], strides = [1, 1]} : vector<16x16xf32> to vector<16x1xf32>
    %19 = vector.extract_strided_slice %17 {offsets = [0, 0], sizes = [16, 1], strides = [1, 1]} : vector<16x16xf32> to vector<16x1xf32>
    %20 = vector.extract_strided_slice %7 {offsets = [0, 0], sizes = [1, 128], strides = [1, 1]} : vector<16x128xf32> to vector<1x128xf32>
    %21 = vector.broadcast %18 : vector<16x1xf32> to vector<16x128xf32>
    %22 = vector.broadcast %20 : vector<1x128xf32> to vector<16x128xf32>
    %23 = arith.mulf %21, %22 : vector<16x128xf32>
    %24 = vector.broadcast %19 : vector<16x1xf32> to vector<16x128xf32>
    %25 = arith.addf %23, %24 : vector<16x128xf32>
    %26 = arith.maximumf %2, %25 : vector<16x128xf32>
    %27 = vector.extract_strided_slice %14 {offsets = [0, 1], sizes = [16, 1], strides = [1, 1]} : vector<16x16xf32> to vector<16x1xf32>
    %28 = vector.extract_strided_slice %17 {offsets = [0, 1], sizes = [16, 1], strides = [1, 1]} : vector<16x16xf32> to vector<16x1xf32>
    %29 = vector.extract_strided_slice %7 {offsets = [1, 0], sizes = [1, 128], strides = [1, 1]} : vector<16x128xf32> to vector<1x128xf32>
    %30 = vector.broadcast %27 : vector<16x1xf32> to vector<16x128xf32>
    %31 = vector.broadcast %29 : vector<1x128xf32> to vector<16x128xf32>
    %32 = arith.mulf %30, %31 : vector<16x128xf32>
    %33 = vector.broadcast %28 : vector<16x1xf32> to vector<16x128xf32>
    %34 = arith.addf %32, %33 : vector<16x128xf32>
    %35 = arith.maximumf %26, %34 : vector<16x128xf32>
    %36 = vector.extract_strided_slice %14 {offsets = [0, 2], sizes = [16, 1], strides = [1, 1]} : vector<16x16xf32> to vector<16x1xf32>
    %37 = vector.extract_strided_slice %17 {offsets = [0, 2], sizes = [16, 1], strides = [1, 1]} : vector<16x16xf32> to vector<16x1xf32>
    %38 = vector.extract_strided_slice %7 {offsets = [2, 0], sizes = [1, 128], strides = [1, 1]} : vector<16x128xf32> to vector<1x128xf32>
    %39 = vector.broadcast %36 : vector<16x1xf32> to vector<16x128xf32>
    %40 = vector.broadcast %38 : vector<1x128xf32> to vector<16x128xf32>
    %41 = arith.mulf %39, %40 : vector<16x128xf32>
    %42 = vector.broadcast %37 : vector<16x1xf32> to vector<16x128xf32>
    %43 = arith.addf %41, %42 : vector<16x128xf32>
    %44 = arith.maximumf %35, %43 : vector<16x128xf32>
    %45 = vector.extract_strided_slice %14 {offsets = [0, 3], sizes = [16, 1], strides = [1, 1]} : vector<16x16xf32> to vector<16x1xf32>
    %46 = vector.extract_strided_slice %17 {offsets = [0, 3], sizes = [16, 1], strides = [1, 1]} : vector<16x16xf32> to vector<16x1xf32>
    %47 = vector.extract_strided_slice %7 {offsets = [3, 0], sizes = [1, 128], strides = [1, 1]} : vector<16x128xf32> to vector<1x128xf32>
    %48 = vector.broadcast %45 : vector<16x1xf32> to vector<16x128xf32>
    %49 = vector.broadcast %47 : vector<1x128xf32> to vector<16x128xf32>
    %50 = arith.mulf %48, %49 : vector<16x128xf32>
    %51 = vector.broadcast %46 : vector<16x1xf32> to vector<16x128xf32>
    %52 = arith.addf %50, %51 : vector<16x128xf32>
    %53 = arith.maximumf %44, %52 : vector<16x128xf32>
    %54 = vector.extract_strided_slice %14 {offsets = [0, 4], sizes = [16, 1], strides = [1, 1]} : vector<16x16xf32> to vector<16x1xf32>
    %55 = vector.extract_strided_slice %17 {offsets = [0, 4], sizes = [16, 1], strides = [1, 1]} : vector<16x16xf32> to vector<16x1xf32>
    %56 = vector.extract_strided_slice %7 {offsets = [4, 0], sizes = [1, 128], strides = [1, 1]} : vector<16x128xf32> to vector<1x128xf32>
    %57 = vector.broadcast %54 : vector<16x1xf32> to vector<16x128xf32>
    %58 = vector.broadcast %56 : vector<1x128xf32> to vector<16x128xf32>
    %59 = arith.mulf %57, %58 : vector<16x128xf32>
    %60 = vector.broadcast %55 : vector<16x1xf32> to vector<16x128xf32>
    %61 = arith.addf %59, %60 : vector<16x128xf32>
    %62 = arith.maximumf %53, %61 : vector<16x128xf32>
    %63 = vector.extract_strided_slice %14 {offsets = [0, 5], sizes = [16, 1], strides = [1, 1]} : vector<16x16xf32> to vector<16x1xf32>
    %64 = vector.extract_strided_slice %17 {offsets = [0, 5], sizes = [16, 1], strides = [1, 1]} : vector<16x16xf32> to vector<16x1xf32>
    %65 = vector.extract_strided_slice %7 {offsets = [5, 0], sizes = [1, 128], strides = [1, 1]} : vector<16x128xf32> to vector<1x128xf32>
    %66 = vector.broadcast %63 : vector<16x1xf32> to vector<16x128xf32>
    %67 = vector.broadcast %65 : vector<1x128xf32> to vector<16x128xf32>
    %68 = arith.mulf %66, %67 : vector<16x128xf32>
    %69 = vector.broadcast %64 : vector<16x1xf32> to vector<16x128xf32>
    %70 = arith.addf %68, %69 : vector<16x128xf32>
    %71 = arith.maximumf %62, %70 : vector<16x128xf32>
    %72 = vector.extract_strided_slice %14 {offsets = [0, 6], sizes = [16, 1], strides = [1, 1]} : vector<16x16xf32> to vector<16x1xf32>
    %73 = vector.extract_strided_slice %17 {offsets = [0, 6], sizes = [16, 1], strides = [1, 1]} : vector<16x16xf32> to vector<16x1xf32>
    %74 = vector.extract_strided_slice %7 {offsets = [6, 0], sizes = [1, 128], strides = [1, 1]} : vector<16x128xf32> to vector<1x128xf32>
    %75 = vector.broadcast %72 : vector<16x1xf32> to vector<16x128xf32>
    %76 = vector.broadcast %74 : vector<1x128xf32> to vector<16x128xf32>
    %77 = arith.mulf %75, %76 : vector<16x128xf32>
    %78 = vector.broadcast %73 : vector<16x1xf32> to vector<16x128xf32>
    %79 = arith.addf %77, %78 : vector<16x128xf32>
    %80 = arith.maximumf %71, %79 : vector<16x128xf32>
    %81 = vector.extract_strided_slice %14 {offsets = [0, 7], sizes = [16, 1], strides = [1, 1]} : vector<16x16xf32> to vector<16x1xf32>
    %82 = vector.extract_strided_slice %17 {offsets = [0, 7], sizes = [16, 1], strides = [1, 1]} : vector<16x16xf32> to vector<16x1xf32>
    %83 = vector.extract_strided_slice %7 {offsets = [7, 0], sizes = [1, 128], strides = [1, 1]} : vector<16x128xf32> to vector<1x128xf32>
    %84 = vector.broadcast %81 : vector<16x1xf32> to vector<16x128xf32>
    %85 = vector.broadcast %83 : vector<1x128xf32> to vector<16x128xf32>
    %86 = arith.mulf %84, %85 : vector<16x128xf32>
    %87 = vector.broadcast %82 : vector<16x1xf32> to vector<16x128xf32>
    %88 = arith.addf %86, %87 : vector<16x128xf32>
    %89 = arith.maximumf %80, %88 : vector<16x128xf32>
    %90 = vector.extract_strided_slice %14 {offsets = [0, 8], sizes = [16, 1], strides = [1, 1]} : vector<16x16xf32> to vector<16x1xf32>
    %91 = vector.extract_strided_slice %17 {offsets = [0, 8], sizes = [16, 1], strides = [1, 1]} : vector<16x16xf32> to vector<16x1xf32>
    %92 = vector.extract_strided_slice %7 {offsets = [8, 0], sizes = [1, 128], strides = [1, 1]} : vector<16x128xf32> to vector<1x128xf32>
    %93 = vector.broadcast %90 : vector<16x1xf32> to vector<16x128xf32>
    %94 = vector.broadcast %92 : vector<1x128xf32> to vector<16x128xf32>
    %95 = arith.mulf %93, %94 : vector<16x128xf32>
    %96 = vector.broadcast %91 : vector<16x1xf32> to vector<16x128xf32>
    %97 = arith.addf %95, %96 : vector<16x128xf32>
    %98 = arith.maximumf %89, %97 : vector<16x128xf32>
    %99 = vector.extract_strided_slice %14 {offsets = [0, 9], sizes = [16, 1], strides = [1, 1]} : vector<16x16xf32> to vector<16x1xf32>
    %100 = vector.extract_strided_slice %17 {offsets = [0, 9], sizes = [16, 1], strides = [1, 1]} : vector<16x16xf32> to vector<16x1xf32>
    %101 = vector.extract_strided_slice %7 {offsets = [9, 0], sizes = [1, 128], strides = [1, 1]} : vector<16x128xf32> to vector<1x128xf32>
    %102 = vector.broadcast %99 : vector<16x1xf32> to vector<16x128xf32>
    %103 = vector.broadcast %101 : vector<1x128xf32> to vector<16x128xf32>
    %104 = arith.mulf %102, %103 : vector<16x128xf32>
    %105 = vector.broadcast %100 : vector<16x1xf32> to vector<16x128xf32>
    %106 = arith.addf %104, %105 : vector<16x128xf32>
    %107 = arith.maximumf %98, %106 : vector<16x128xf32>
    %108 = vector.extract_strided_slice %14 {offsets = [0, 10], sizes = [16, 1], strides = [1, 1]} : vector<16x16xf32> to vector<16x1xf32>
    %109 = vector.extract_strided_slice %17 {offsets = [0, 10], sizes = [16, 1], strides = [1, 1]} : vector<16x16xf32> to vector<16x1xf32>
    %110 = vector.extract_strided_slice %7 {offsets = [10, 0], sizes = [1, 128], strides = [1, 1]} : vector<16x128xf32> to vector<1x128xf32>
    %111 = vector.broadcast %108 : vector<16x1xf32> to vector<16x128xf32>
    %112 = vector.broadcast %110 : vector<1x128xf32> to vector<16x128xf32>
    %113 = arith.mulf %111, %112 : vector<16x128xf32>
    %114 = vector.broadcast %109 : vector<16x1xf32> to vector<16x128xf32>
    %115 = arith.addf %113, %114 : vector<16x128xf32>
    %116 = arith.maximumf %107, %115 : vector<16x128xf32>
    %117 = vector.extract_strided_slice %14 {offsets = [0, 11], sizes = [16, 1], strides = [1, 1]} : vector<16x16xf32> to vector<16x1xf32>
    %118 = vector.extract_strided_slice %17 {offsets = [0, 11], sizes = [16, 1], strides = [1, 1]} : vector<16x16xf32> to vector<16x1xf32>
    %119 = vector.extract_strided_slice %7 {offsets = [11, 0], sizes = [1, 128], strides = [1, 1]} : vector<16x128xf32> to vector<1x128xf32>
    %120 = vector.broadcast %117 : vector<16x1xf32> to vector<16x128xf32>
    %121 = vector.broadcast %119 : vector<1x128xf32> to vector<16x128xf32>
    %122 = arith.mulf %120, %121 : vector<16x128xf32>
    %123 = vector.broadcast %118 : vector<16x1xf32> to vector<16x128xf32>
    %124 = arith.addf %122, %123 : vector<16x128xf32>
    %125 = arith.maximumf %116, %124 : vector<16x128xf32>
    %126 = vector.extract_strided_slice %14 {offsets = [0, 12], sizes = [16, 1], strides = [1, 1]} : vector<16x16xf32> to vector<16x1xf32>
    %127 = vector.extract_strided_slice %17 {offsets = [0, 12], sizes = [16, 1], strides = [1, 1]} : vector<16x16xf32> to vector<16x1xf32>
    %128 = vector.extract_strided_slice %7 {offsets = [12, 0], sizes = [1, 128], strides = [1, 1]} : vector<16x128xf32> to vector<1x128xf32>
    %129 = vector.broadcast %126 : vector<16x1xf32> to vector<16x128xf32>
    %130 = vector.broadcast %128 : vector<1x128xf32> to vector<16x128xf32>
    %131 = arith.mulf %129, %130 : vector<16x128xf32>
    %132 = vector.broadcast %127 : vector<16x1xf32> to vector<16x128xf32>
    %133 = arith.addf %131, %132 : vector<16x128xf32>
    %134 = arith.maximumf %125, %133 : vector<16x128xf32>
    %135 = vector.extract_strided_slice %14 {offsets = [0, 13], sizes = [16, 1], strides = [1, 1]} : vector<16x16xf32> to vector<16x1xf32>
    %136 = vector.extract_strided_slice %17 {offsets = [0, 13], sizes = [16, 1], strides = [1, 1]} : vector<16x16xf32> to vector<16x1xf32>
    %137 = vector.extract_strided_slice %7 {offsets = [13, 0], sizes = [1, 128], strides = [1, 1]} : vector<16x128xf32> to vector<1x128xf32>
    %138 = vector.broadcast %135 : vector<16x1xf32> to vector<16x128xf32>
    %139 = vector.broadcast %137 : vector<1x128xf32> to vector<16x128xf32>
    %140 = arith.mulf %138, %139 : vector<16x128xf32>
    %141 = vector.broadcast %136 : vector<16x1xf32> to vector<16x128xf32>
    %142 = arith.addf %140, %141 : vector<16x128xf32>
    %143 = arith.maximumf %134, %142 : vector<16x128xf32>
    %144 = vector.extract_strided_slice %14 {offsets = [0, 14], sizes = [16, 1], strides = [1, 1]} : vector<16x16xf32> to vector<16x1xf32>
    %145 = vector.extract_strided_slice %17 {offsets = [0, 14], sizes = [16, 1], strides = [1, 1]} : vector<16x16xf32> to vector<16x1xf32>
    %146 = vector.extract_strided_slice %7 {offsets = [14, 0], sizes = [1, 128], strides = [1, 1]} : vector<16x128xf32> to vector<1x128xf32>
    %147 = vector.broadcast %144 : vector<16x1xf32> to vector<16x128xf32>
    %148 = vector.broadcast %146 : vector<1x128xf32> to vector<16x128xf32>
    %149 = arith.mulf %147, %148 : vector<16x128xf32>
    %150 = vector.broadcast %145 : vector<16x1xf32> to vector<16x128xf32>
    %151 = arith.addf %149, %150 : vector<16x128xf32>
    %152 = arith.maximumf %143, %151 : vector<16x128xf32>
    %153 = vector.extract_strided_slice %14 {offsets = [0, 15], sizes = [16, 1], strides = [1, 1]} : vector<16x16xf32> to vector<16x1xf32>
    %154 = vector.extract_strided_slice %17 {offsets = [0, 15], sizes = [16, 1], strides = [1, 1]} : vector<16x16xf32> to vector<16x1xf32>
    %155 = vector.extract_strided_slice %7 {offsets = [15, 0], sizes = [1, 128], strides = [1, 1]} : vector<16x128xf32> to vector<1x128xf32>
    %156 = vector.broadcast %153 : vector<16x1xf32> to vector<16x128xf32>
    %157 = vector.broadcast %155 : vector<1x128xf32> to vector<16x128xf32>
    %158 = arith.mulf %156, %157 : vector<16x128xf32>
    %159 = vector.broadcast %154 : vector<16x1xf32> to vector<16x128xf32>
    %160 = arith.addf %158, %159 : vector<16x128xf32>
    %161 = arith.maximumf %152, %160 : vector<16x128xf32>
    %cst_11 = arith.constant -9.99999968E+37 : f32
    %162 = vector.broadcast %cst_11 : f32 to vector<16x128xf32>
    %163 = arith.cmpf ogt, %161, %162 : vector<16x128xf32>
    %cst_12 = arith.constant 0.000000e+00 : f32
    %164 = vector.broadcast %cst_12 : f32 to vector<16x128xf32>
    %165 = arith.select %163, %161, %164 : vector<16x128xi1>, vector<16x128xf32>
    %166 = vector.broadcast %0 : f32 to vector<16x128xf32>
    %167 = arith.mulf %166, %7 : vector<16x128xf32>
    %168 = vector.broadcast %1 : f32 to vector<16x128xf32>
    %169 = arith.mulf %168, %165 : vector<16x128xf32>
    %170 = arith.addf %167, %169 : vector<16x128xf32>
    %cst_13 = arith.constant dense<0.000000e+00> : vector<128xf32>
    %171 = vector.multi_reduction <add>, %170, %cst_13 [0] : vector<16x128xf32> to vector<128xf32>
    %172 = vector.shape_cast %171 : vector<128xf32> to vector<1x128xf32>
    %173 = vector.broadcast %c0_i32 : i32 to vector<8x1xi32>
    %174 = arith.cmpi eq, %3, %173 : vector<8x1xi32>
    %175 = vector.shape_cast %174 : vector<8x1xi1> to vector<8x1xi1>
    %176 = vector.broadcast %175 : vector<8x1xi1> to vector<8x128xi1>
    %177 = vector.shape_cast %172 : vector<1x128xf32> to vector<1x128xf32>
    %178 = vector.broadcast %177 : vector<1x128xf32> to vector<8x128xf32>
    %179 = arith.select %176, %178, %4 : vector<8x128xi1>, vector<8x128xf32>
    %c1_i32 = arith.constant 1 : i32
    %180 = arith.index_cast %c1_i32 : i32 to index
    %c0_14 = arith.constant 0 : index
    %c0_15 = arith.constant 0 : index
    %181 = vector.load %arg2[%180, %c0_14, %c0_15] : memref<8x16x128xf32, #tpu.memory_space<vmem>>, vector<1x16x128xf32>
    %182 = vector.shape_cast %181 : vector<1x16x128xf32> to vector<16x128xf32>
    %183 = arith.index_cast %c1_i32 : i32 to index
    %c0_16 = arith.constant 0 : index
    %c0_17 = arith.constant 0 : index
    %184 = vector.load %arg3[%183, %c0_16, %c0_17] : memref<8x16x16xf32, #tpu.memory_space<vmem>>, vector<1x16x16xf32>
    %185 = vector.shape_cast %184 : vector<1x16x16xf32> to vector<16x16xf32>
    %186 = arith.cmpf one, %185, %185 : vector<16x16xf32>
    %cst_18 = arith.constant dense<true> : vector<16x16xi1>
    %187 = arith.xori %186, %cst_18 : vector<16x16xi1>
    %cst_19 = arith.constant 0.000000e+00 : f32
    %188 = vector.broadcast %cst_19 : f32 to vector<16x16xf32>
    %189 = arith.select %187, %185, %188 : vector<16x16xi1>, vector<16x16xf32>
    %cst_20 = arith.constant 0.000000e+00 : f32
    %cst_21 = arith.constant -3.400000e+38 : f32
    %190 = vector.broadcast %cst_20 : f32 to vector<16x16xf32>
    %191 = vector.broadcast %cst_21 : f32 to vector<16x16xf32>
    %192 = arith.select %187, %190, %191 : vector<16x16xi1>, vector<16x16xf32>
    %193 = vector.extract_strided_slice %189 {offsets = [0, 0], sizes = [16, 1], strides = [1, 1]} : vector<16x16xf32> to vector<16x1xf32>
    %194 = vector.extract_strided_slice %192 {offsets = [0, 0], sizes = [16, 1], strides = [1, 1]} : vector<16x16xf32> to vector<16x1xf32>
    %195 = vector.extract_strided_slice %182 {offsets = [0, 0], sizes = [1, 128], strides = [1, 1]} : vector<16x128xf32> to vector<1x128xf32>
    %196 = vector.broadcast %193 : vector<16x1xf32> to vector<16x128xf32>
    %197 = vector.broadcast %195 : vector<1x128xf32> to vector<16x128xf32>
    %198 = arith.mulf %196, %197 : vector<16x128xf32>
    %199 = vector.broadcast %194 : vector<16x1xf32> to vector<16x128xf32>
    %200 = arith.addf %198, %199 : vector<16x128xf32>
    %201 = arith.maximumf %2, %200 : vector<16x128xf32>
    %202 = vector.extract_strided_slice %189 {offsets = [0, 1], sizes = [16, 1], strides = [1, 1]} : vector<16x16xf32> to vector<16x1xf32>
    %203 = vector.extract_strided_slice %192 {offsets = [0, 1], sizes = [16, 1], strides = [1, 1]} : vector<16x16xf32> to vector<16x1xf32>
    %204 = vector.extract_strided_slice %182 {offsets = [1, 0], sizes = [1, 128], strides = [1, 1]} : vector<16x128xf32> to vector<1x128xf32>
    %205 = vector.broadcast %202 : vector<16x1xf32> to vector<16x128xf32>
    %206 = vector.broadcast %204 : vector<1x128xf32> to vector<16x128xf32>
    %207 = arith.mulf %205, %206 : vector<16x128xf32>
    %208 = vector.broadcast %203 : vector<16x1xf32> to vector<16x128xf32>
    %209 = arith.addf %207, %208 : vector<16x128xf32>
    %210 = arith.maximumf %201, %209 : vector<16x128xf32>
    %211 = vector.extract_strided_slice %189 {offsets = [0, 2], sizes = [16, 1], strides = [1, 1]} : vector<16x16xf32> to vector<16x1xf32>
    %212 = vector.extract_strided_slice %192 {offsets = [0, 2], sizes = [16, 1], strides = [1, 1]} : vector<16x16xf32> to vector<16x1xf32>
    %213 = vector.extract_strided_slice %182 {offsets = [2, 0], sizes = [1, 128], strides = [1, 1]} : vector<16x128xf32> to vector<1x128xf32>
    %214 = vector.broadcast %211 : vector<16x1xf32> to vector<16x128xf32>
    %215 = vector.broadcast %213 : vector<1x128xf32> to vector<16x128xf32>
    %216 = arith.mulf %214, %215 : vector<16x128xf32>
    %217 = vector.broadcast %212 : vector<16x1xf32> to vector<16x128xf32>
    %218 = arith.addf %216, %217 : vector<16x128xf32>
    %219 = arith.maximumf %210, %218 : vector<16x128xf32>
    %220 = vector.extract_strided_slice %189 {offsets = [0, 3], sizes = [16, 1], strides = [1, 1]} : vector<16x16xf32> to vector<16x1xf32>
    %221 = vector.extract_strided_slice %192 {offsets = [0, 3], sizes = [16, 1], strides = [1, 1]} : vector<16x16xf32> to vector<16x1xf32>
    %222 = vector.extract_strided_slice %182 {offsets = [3, 0], sizes = [1, 128], strides = [1, 1]} : vector<16x128xf32> to vector<1x128xf32>
    %223 = vector.broadcast %220 : vector<16x1xf32> to vector<16x128xf32>
    %224 = vector.broadcast %222 : vector<1x128xf32> to vector<16x128xf32>
    %225 = arith.mulf %223, %224 : vector<16x128xf32>
    %226 = vector.broadcast %221 : vector<16x1xf32> to vector<16x128xf32>
    %227 = arith.addf %225, %226 : vector<16x128xf32>
    %228 = arith.maximumf %219, %227 : vector<16x128xf32>
    %229 = vector.extract_strided_slice %189 {offsets = [0, 4], sizes = [16, 1], strides = [1, 1]} : vector<16x16xf32> to vector<16x1xf32>
    %230 = vector.extract_strided_slice %192 {offsets = [0, 4], sizes = [16, 1], strides = [1, 1]} : vector<16x16xf32> to vector<16x1xf32>
    %231 = vector.extract_strided_slice %182 {offsets = [4, 0], sizes = [1, 128], strides = [1, 1]} : vector<16x128xf32> to vector<1x128xf32>
    %232 = vector.broadcast %229 : vector<16x1xf32> to vector<16x128xf32>
    %233 = vector.broadcast %231 : vector<1x128xf32> to vector<16x128xf32>
    %234 = arith.mulf %232, %233 : vector<16x128xf32>
    %235 = vector.broadcast %230 : vector<16x1xf32> to vector<16x128xf32>
    %236 = arith.addf %234, %235 : vector<16x128xf32>
    %237 = arith.maximumf %228, %236 : vector<16x128xf32>
    %238 = vector.extract_strided_slice %189 {offsets = [0, 5], sizes = [16, 1], strides = [1, 1]} : vector<16x16xf32> to vector<16x1xf32>
    %239 = vector.extract_strided_slice %192 {offsets = [0, 5], sizes = [16, 1], strides = [1, 1]} : vector<16x16xf32> to vector<16x1xf32>
    %240 = vector.extract_strided_slice %182 {offsets = [5, 0], sizes = [1, 128], strides = [1, 1]} : vector<16x128xf32> to vector<1x128xf32>
    %241 = vector.broadcast %238 : vector<16x1xf32> to vector<16x128xf32>
    %242 = vector.broadcast %240 : vector<1x128xf32> to vector<16x128xf32>
    %243 = arith.mulf %241, %242 : vector<16x128xf32>
    %244 = vector.broadcast %239 : vector<16x1xf32> to vector<16x128xf32>
    %245 = arith.addf %243, %244 : vector<16x128xf32>
    %246 = arith.maximumf %237, %245 : vector<16x128xf32>
    %247 = vector.extract_strided_slice %189 {offsets = [0, 6], sizes = [16, 1], strides = [1, 1]} : vector<16x16xf32> to vector<16x1xf32>
    %248 = vector.extract_strided_slice %192 {offsets = [0, 6], sizes = [16, 1], strides = [1, 1]} : vector<16x16xf32> to vector<16x1xf32>
    %249 = vector.extract_strided_slice %182 {offsets = [6, 0], sizes = [1, 128], strides = [1, 1]} : vector<16x128xf32> to vector<1x128xf32>
    %250 = vector.broadcast %247 : vector<16x1xf32> to vector<16x128xf32>
    %251 = vector.broadcast %249 : vector<1x128xf32> to vector<16x128xf32>
    %252 = arith.mulf %250, %251 : vector<16x128xf32>
    %253 = vector.broadcast %248 : vector<16x1xf32> to vector<16x128xf32>
    %254 = arith.addf %252, %253 : vector<16x128xf32>
    %255 = arith.maximumf %246, %254 : vector<16x128xf32>
    %256 = vector.extract_strided_slice %189 {offsets = [0, 7], sizes = [16, 1], strides = [1, 1]} : vector<16x16xf32> to vector<16x1xf32>
    %257 = vector.extract_strided_slice %192 {offsets = [0, 7], sizes = [16, 1], strides = [1, 1]} : vector<16x16xf32> to vector<16x1xf32>
    %258 = vector.extract_strided_slice %182 {offsets = [7, 0], sizes = [1, 128], strides = [1, 1]} : vector<16x128xf32> to vector<1x128xf32>
    %259 = vector.broadcast %256 : vector<16x1xf32> to vector<16x128xf32>
    %260 = vector.broadcast %258 : vector<1x128xf32> to vector<16x128xf32>
    %261 = arith.mulf %259, %260 : vector<16x128xf32>
    %262 = vector.broadcast %257 : vector<16x1xf32> to vector<16x128xf32>
    %263 = arith.addf %261, %262 : vector<16x128xf32>
    %264 = arith.maximumf %255, %263 : vector<16x128xf32>
    %265 = vector.extract_strided_slice %189 {offsets = [0, 8], sizes = [16, 1], strides = [1, 1]} : vector<16x16xf32> to vector<16x1xf32>
    %266 = vector.extract_strided_slice %192 {offsets = [0, 8], sizes = [16, 1], strides = [1, 1]} : vector<16x16xf32> to vector<16x1xf32>
    %267 = vector.extract_strided_slice %182 {offsets = [8, 0], sizes = [1, 128], strides = [1, 1]} : vector<16x128xf32> to vector<1x128xf32>
    %268 = vector.broadcast %265 : vector<16x1xf32> to vector<16x128xf32>
    %269 = vector.broadcast %267 : vector<1x128xf32> to vector<16x128xf32>
    %270 = arith.mulf %268, %269 : vector<16x128xf32>
    %271 = vector.broadcast %266 : vector<16x1xf32> to vector<16x128xf32>
    %272 = arith.addf %270, %271 : vector<16x128xf32>
    %273 = arith.maximumf %264, %272 : vector<16x128xf32>
    %274 = vector.extract_strided_slice %189 {offsets = [0, 9], sizes = [16, 1], strides = [1, 1]} : vector<16x16xf32> to vector<16x1xf32>
    %275 = vector.extract_strided_slice %192 {offsets = [0, 9], sizes = [16, 1], strides = [1, 1]} : vector<16x16xf32> to vector<16x1xf32>
    %276 = vector.extract_strided_slice %182 {offsets = [9, 0], sizes = [1, 128], strides = [1, 1]} : vector<16x128xf32> to vector<1x128xf32>
    %277 = vector.broadcast %274 : vector<16x1xf32> to vector<16x128xf32>
    %278 = vector.broadcast %276 : vector<1x128xf32> to vector<16x128xf32>
    %279 = arith.mulf %277, %278 : vector<16x128xf32>
    %280 = vector.broadcast %275 : vector<16x1xf32> to vector<16x128xf32>
    %281 = arith.addf %279, %280 : vector<16x128xf32>
    %282 = arith.maximumf %273, %281 : vector<16x128xf32>
    %283 = vector.extract_strided_slice %189 {offsets = [0, 10], sizes = [16, 1], strides = [1, 1]} : vector<16x16xf32> to vector<16x1xf32>
    %284 = vector.extract_strided_slice %192 {offsets = [0, 10], sizes = [16, 1], strides = [1, 1]} : vector<16x16xf32> to vector<16x1xf32>
    %285 = vector.extract_strided_slice %182 {offsets = [10, 0], sizes = [1, 128], strides = [1, 1]} : vector<16x128xf32> to vector<1x128xf32>
    %286 = vector.broadcast %283 : vector<16x1xf32> to vector<16x128xf32>
    %287 = vector.broadcast %285 : vector<1x128xf32> to vector<16x128xf32>
    %288 = arith.mulf %286, %287 : vector<16x128xf32>
    %289 = vector.broadcast %284 : vector<16x1xf32> to vector<16x128xf32>
    %290 = arith.addf %288, %289 : vector<16x128xf32>
    %291 = arith.maximumf %282, %290 : vector<16x128xf32>
    %292 = vector.extract_strided_slice %189 {offsets = [0, 11], sizes = [16, 1], strides = [1, 1]} : vector<16x16xf32> to vector<16x1xf32>
    %293 = vector.extract_strided_slice %192 {offsets = [0, 11], sizes = [16, 1], strides = [1, 1]} : vector<16x16xf32> to vector<16x1xf32>
    %294 = vector.extract_strided_slice %182 {offsets = [11, 0], sizes = [1, 128], strides = [1, 1]} : vector<16x128xf32> to vector<1x128xf32>
    %295 = vector.broadcast %292 : vector<16x1xf32> to vector<16x128xf32>
    %296 = vector.broadcast %294 : vector<1x128xf32> to vector<16x128xf32>
    %297 = arith.mulf %295, %296 : vector<16x128xf32>
    %298 = vector.broadcast %293 : vector<16x1xf32> to vector<16x128xf32>
    %299 = arith.addf %297, %298 : vector<16x128xf32>
    %300 = arith.maximumf %291, %299 : vector<16x128xf32>
    %301 = vector.extract_strided_slice %189 {offsets = [0, 12], sizes = [16, 1], strides = [1, 1]} : vector<16x16xf32> to vector<16x1xf32>
    %302 = vector.extract_strided_slice %192 {offsets = [0, 12], sizes = [16, 1], strides = [1, 1]} : vector<16x16xf32> to vector<16x1xf32>
    %303 = vector.extract_strided_slice %182 {offsets = [12, 0], sizes = [1, 128], strides = [1, 1]} : vector<16x128xf32> to vector<1x128xf32>
    %304 = vector.broadcast %301 : vector<16x1xf32> to vector<16x128xf32>
    %305 = vector.broadcast %303 : vector<1x128xf32> to vector<16x128xf32>
    %306 = arith.mulf %304, %305 : vector<16x128xf32>
    %307 = vector.broadcast %302 : vector<16x1xf32> to vector<16x128xf32>
    %308 = arith.addf %306, %307 : vector<16x128xf32>
    %309 = arith.maximumf %300, %308 : vector<16x128xf32>
    %310 = vector.extract_strided_slice %189 {offsets = [0, 13], sizes = [16, 1], strides = [1, 1]} : vector<16x16xf32> to vector<16x1xf32>
    %311 = vector.extract_strided_slice %192 {offsets = [0, 13], sizes = [16, 1], strides = [1, 1]} : vector<16x16xf32> to vector<16x1xf32>
    %312 = vector.extract_strided_slice %182 {offsets = [13, 0], sizes = [1, 128], strides = [1, 1]} : vector<16x128xf32> to vector<1x128xf32>
    %313 = vector.broadcast %310 : vector<16x1xf32> to vector<16x128xf32>
    %314 = vector.broadcast %312 : vector<1x128xf32> to vector<16x128xf32>
    %315 = arith.mulf %313, %314 : vector<16x128xf32>
    %316 = vector.broadcast %311 : vector<16x1xf32> to vector<16x128xf32>
    %317 = arith.addf %315, %316 : vector<16x128xf32>
    %318 = arith.maximumf %309, %317 : vector<16x128xf32>
    %319 = vector.extract_strided_slice %189 {offsets = [0, 14], sizes = [16, 1], strides = [1, 1]} : vector<16x16xf32> to vector<16x1xf32>
    %320 = vector.extract_strided_slice %192 {offsets = [0, 14], sizes = [16, 1], strides = [1, 1]} : vector<16x16xf32> to vector<16x1xf32>
    %321 = vector.extract_strided_slice %182 {offsets = [14, 0], sizes = [1, 128], strides = [1, 1]} : vector<16x128xf32> to vector<1x128xf32>
    %322 = vector.broadcast %319 : vector<16x1xf32> to vector<16x128xf32>
    %323 = vector.broadcast %321 : vector<1x128xf32> to vector<16x128xf32>
    %324 = arith.mulf %322, %323 : vector<16x128xf32>
    %325 = vector.broadcast %320 : vector<16x1xf32> to vector<16x128xf32>
    %326 = arith.addf %324, %325 : vector<16x128xf32>
    %327 = arith.maximumf %318, %326 : vector<16x128xf32>
    %328 = vector.extract_strided_slice %189 {offsets = [0, 15], sizes = [16, 1], strides = [1, 1]} : vector<16x16xf32> to vector<16x1xf32>
    %329 = vector.extract_strided_slice %192 {offsets = [0, 15], sizes = [16, 1], strides = [1, 1]} : vector<16x16xf32> to vector<16x1xf32>
    %330 = vector.extract_strided_slice %182 {offsets = [15, 0], sizes = [1, 128], strides = [1, 1]} : vector<16x128xf32> to vector<1x128xf32>
    %331 = vector.broadcast %328 : vector<16x1xf32> to vector<16x128xf32>
    %332 = vector.broadcast %330 : vector<1x128xf32> to vector<16x128xf32>
    %333 = arith.mulf %331, %332 : vector<16x128xf32>
    %334 = vector.broadcast %329 : vector<16x1xf32> to vector<16x128xf32>
    %335 = arith.addf %333, %334 : vector<16x128xf32>
    %336 = arith.maximumf %327, %335 : vector<16x128xf32>
    %cst_22 = arith.constant -9.99999968E+37 : f32
    %337 = vector.broadcast %cst_22 : f32 to vector<16x128xf32>
    %338 = arith.cmpf ogt, %336, %337 : vector<16x128xf32>
    %cst_23 = arith.constant 0.000000e+00 : f32
    %339 = vector.broadcast %cst_23 : f32 to vector<16x128xf32>
    %340 = arith.select %338, %336, %339 : vector<16x128xi1>, vector<16x128xf32>
    %341 = vector.broadcast %0 : f32 to vector<16x128xf32>
    %342 = arith.mulf %341, %182 : vector<16x128xf32>
    %343 = vector.broadcast %1 : f32 to vector<16x128xf32>
    %344 = arith.mulf %343, %340 : vector<16x128xf32>
    %345 = arith.addf %342, %344 : vector<16x128xf32>
    %cst_24 = arith.constant dense<0.000000e+00> : vector<128xf32>
    %346 = vector.multi_reduction <add>, %345, %cst_24 [0] : vector<16x128xf32> to vector<128xf32>
    %347 = vector.shape_cast %346 : vector<128xf32> to vector<1x128xf32>
    %348 = vector.broadcast %c1_i32 : i32 to vector<8x1xi32>
    %349 = arith.cmpi eq, %3, %348 : vector<8x1xi32>
    %350 = vector.shape_cast %349 : vector<8x1xi1> to vector<8x1xi1>
    %351 = vector.broadcast %350 : vector<8x1xi1> to vector<8x128xi1>
    %352 = vector.shape_cast %347 : vector<1x128xf32> to vector<1x128xf32>
    %353 = vector.broadcast %352 : vector<1x128xf32> to vector<8x128xf32>
    %354 = arith.select %351, %353, %179 : vector<8x128xi1>, vector<8x128xf32>
    %c2_i32 = arith.constant 2 : i32
    %355 = arith.index_cast %c2_i32 : i32 to index
    %c0_25 = arith.constant 0 : index
    %c0_26 = arith.constant 0 : index
    %356 = vector.load %arg2[%355, %c0_25, %c0_26] : memref<8x16x128xf32, #tpu.memory_space<vmem>>, vector<1x16x128xf32>
    %357 = vector.shape_cast %356 : vector<1x16x128xf32> to vector<16x128xf32>
    %358 = arith.index_cast %c2_i32 : i32 to index
    %c0_27 = arith.constant 0 : index
    %c0_28 = arith.constant 0 : index
    %359 = vector.load %arg3[%358, %c0_27, %c0_28] : memref<8x16x16xf32, #tpu.memory_space<vmem>>, vector<1x16x16xf32>
    %360 = vector.shape_cast %359 : vector<1x16x16xf32> to vector<16x16xf32>
    %361 = arith.cmpf one, %360, %360 : vector<16x16xf32>
    %cst_29 = arith.constant dense<true> : vector<16x16xi1>
    %362 = arith.xori %361, %cst_29 : vector<16x16xi1>
    %cst_30 = arith.constant 0.000000e+00 : f32
    %363 = vector.broadcast %cst_30 : f32 to vector<16x16xf32>
    %364 = arith.select %362, %360, %363 : vector<16x16xi1>, vector<16x16xf32>
    %cst_31 = arith.constant 0.000000e+00 : f32
    %cst_32 = arith.constant -3.400000e+38 : f32
    %365 = vector.broadcast %cst_31 : f32 to vector<16x16xf32>
    %366 = vector.broadcast %cst_32 : f32 to vector<16x16xf32>
    %367 = arith.select %362, %365, %366 : vector<16x16xi1>, vector<16x16xf32>
    %368 = vector.extract_strided_slice %364 {offsets = [0, 0], sizes = [16, 1], strides = [1, 1]} : vector<16x16xf32> to vector<16x1xf32>
    %369 = vector.extract_strided_slice %367 {offsets = [0, 0], sizes = [16, 1], strides = [1, 1]} : vector<16x16xf32> to vector<16x1xf32>
    %370 = vector.extract_strided_slice %357 {offsets = [0, 0], sizes = [1, 128], strides = [1, 1]} : vector<16x128xf32> to vector<1x128xf32>
    %371 = vector.broadcast %368 : vector<16x1xf32> to vector<16x128xf32>
    %372 = vector.broadcast %370 : vector<1x128xf32> to vector<16x128xf32>
    %373 = arith.mulf %371, %372 : vector<16x128xf32>
    %374 = vector.broadcast %369 : vector<16x1xf32> to vector<16x128xf32>
    %375 = arith.addf %373, %374 : vector<16x128xf32>
    %376 = arith.maximumf %2, %375 : vector<16x128xf32>
    %377 = vector.extract_strided_slice %364 {offsets = [0, 1], sizes = [16, 1], strides = [1, 1]} : vector<16x16xf32> to vector<16x1xf32>
    %378 = vector.extract_strided_slice %367 {offsets = [0, 1], sizes = [16, 1], strides = [1, 1]} : vector<16x16xf32> to vector<16x1xf32>
    %379 = vector.extract_strided_slice %357 {offsets = [1, 0], sizes = [1, 128], strides = [1, 1]} : vector<16x128xf32> to vector<1x128xf32>
    %380 = vector.broadcast %377 : vector<16x1xf32> to vector<16x128xf32>
    %381 = vector.broadcast %379 : vector<1x128xf32> to vector<16x128xf32>
    %382 = arith.mulf %380, %381 : vector<16x128xf32>
    %383 = vector.broadcast %378 : vector<16x1xf32> to vector<16x128xf32>
    %384 = arith.addf %382, %383 : vector<16x128xf32>
    %385 = arith.maximumf %376, %384 : vector<16x128xf32>
    %386 = vector.extract_strided_slice %364 {offsets = [0, 2], sizes = [16, 1], strides = [1, 1]} : vector<16x16xf32> to vector<16x1xf32>
    %387 = vector.extract_strided_slice %367 {offsets = [0, 2], sizes = [16, 1], strides = [1, 1]} : vector<16x16xf32> to vector<16x1xf32>
    %388 = vector.extract_strided_slice %357 {offsets = [2, 0], sizes = [1, 128], strides = [1, 1]} : vector<16x128xf32> to vector<1x128xf32>
    %389 = vector.broadcast %386 : vector<16x1xf32> to vector<16x128xf32>
    %390 = vector.broadcast %388 : vector<1x128xf32> to vector<16x128xf32>
    %391 = arith.mulf %389, %390 : vector<16x128xf32>
    %392 = vector.broadcast %387 : vector<16x1xf32> to vector<16x128xf32>
    %393 = arith.addf %391, %392 : vector<16x128xf32>
    %394 = arith.maximumf %385, %393 : vector<16x128xf32>
    %395 = vector.extract_strided_slice %364 {offsets = [0, 3], sizes = [16, 1], strides = [1, 1]} : vector<16x16xf32> to vector<16x1xf32>
    %396 = vector.extract_strided_slice %367 {offsets = [0, 3], sizes = [16, 1], strides = [1, 1]} : vector<16x16xf32> to vector<16x1xf32>
    %397 = vector.extract_strided_slice %357 {offsets = [3, 0], sizes = [1, 128], strides = [1, 1]} : vector<16x128xf32> to vector<1x128xf32>
    %398 = vector.broadcast %395 : vector<16x1xf32> to vector<16x128xf32>
    %399 = vector.broadcast %397 : vector<1x128xf32> to vector<16x128xf32>
    %400 = arith.mulf %398, %399 : vector<16x128xf32>
    %401 = vector.broadcast %396 : vector<16x1xf32> to vector<16x128xf32>
    %402 = arith.addf %400, %401 : vector<16x128xf32>
    %403 = arith.maximumf %394, %402 : vector<16x128xf32>
    %404 = vector.extract_strided_slice %364 {offsets = [0, 4], sizes = [16, 1], strides = [1, 1]} : vector<16x16xf32> to vector<16x1xf32>
    %405 = vector.extract_strided_slice %367 {offsets = [0, 4], sizes = [16, 1], strides = [1, 1]} : vector<16x16xf32> to vector<16x1xf32>
    %406 = vector.extract_strided_slice %357 {offsets = [4, 0], sizes = [1, 128], strides = [1, 1]} : vector<16x128xf32> to vector<1x128xf32>
    %407 = vector.broadcast %404 : vector<16x1xf32> to vector<16x128xf32>
    %408 = vector.broadcast %406 : vector<1x128xf32> to vector<16x128xf32>
    %409 = arith.mulf %407, %408 : vector<16x128xf32>
    %410 = vector.broadcast %405 : vector<16x1xf32> to vector<16x128xf32>
    %411 = arith.addf %409, %410 : vector<16x128xf32>
    %412 = arith.maximumf %403, %411 : vector<16x128xf32>
    %413 = vector.extract_strided_slice %364 {offsets = [0, 5], sizes = [16, 1], strides = [1, 1]} : vector<16x16xf32> to vector<16x1xf32>
    %414 = vector.extract_strided_slice %367 {offsets = [0, 5], sizes = [16, 1], strides = [1, 1]} : vector<16x16xf32> to vector<16x1xf32>
    %415 = vector.extract_strided_slice %357 {offsets = [5, 0], sizes = [1, 128], strides = [1, 1]} : vector<16x128xf32> to vector<1x128xf32>
    %416 = vector.broadcast %413 : vector<16x1xf32> to vector<16x128xf32>
    %417 = vector.broadcast %415 : vector<1x128xf32> to vector<16x128xf32>
    %418 = arith.mulf %416, %417 : vector<16x128xf32>
    %419 = vector.broadcast %414 : vector<16x1xf32> to vector<16x128xf32>
    %420 = arith.addf %418, %419 : vector<16x128xf32>
    %421 = arith.maximumf %412, %420 : vector<16x128xf32>
    %422 = vector.extract_strided_slice %364 {offsets = [0, 6], sizes = [16, 1], strides = [1, 1]} : vector<16x16xf32> to vector<16x1xf32>
    %423 = vector.extract_strided_slice %367 {offsets = [0, 6], sizes = [16, 1], strides = [1, 1]} : vector<16x16xf32> to vector<16x1xf32>
    %424 = vector.extract_strided_slice %357 {offsets = [6, 0], sizes = [1, 128], strides = [1, 1]} : vector<16x128xf32> to vector<1x128xf32>
    %425 = vector.broadcast %422 : vector<16x1xf32> to vector<16x128xf32>
    %426 = vector.broadcast %424 : vector<1x128xf32> to vector<16x128xf32>
    %427 = arith.mulf %425, %426 : vector<16x128xf32>
    %428 = vector.broadcast %423 : vector<16x1xf32> to vector<16x128xf32>
    %429 = arith.addf %427, %428 : vector<16x128xf32>
    %430 = arith.maximumf %421, %429 : vector<16x128xf32>
    %431 = vector.extract_strided_slice %364 {offsets = [0, 7], sizes = [16, 1], strides = [1, 1]} : vector<16x16xf32> to vector<16x1xf32>
    %432 = vector.extract_strided_slice %367 {offsets = [0, 7], sizes = [16, 1], strides = [1, 1]} : vector<16x16xf32> to vector<16x1xf32>
    %433 = vector.extract_strided_slice %357 {offsets = [7, 0], sizes = [1, 128], strides = [1, 1]} : vector<16x128xf32> to vector<1x128xf32>
    %434 = vector.broadcast %431 : vector<16x1xf32> to vector<16x128xf32>
    %435 = vector.broadcast %433 : vector<1x128xf32> to vector<16x128xf32>
    %436 = arith.mulf %434, %435 : vector<16x128xf32>
    %437 = vector.broadcast %432 : vector<16x1xf32> to vector<16x128xf32>
    %438 = arith.addf %436, %437 : vector<16x128xf32>
    %439 = arith.maximumf %430, %438 : vector<16x128xf32>
    %440 = vector.extract_strided_slice %364 {offsets = [0, 8], sizes = [16, 1], strides = [1, 1]} : vector<16x16xf32> to vector<16x1xf32>
    %441 = vector.extract_strided_slice %367 {offsets = [0, 8], sizes = [16, 1], strides = [1, 1]} : vector<16x16xf32> to vector<16x1xf32>
    %442 = vector.extract_strided_slice %357 {offsets = [8, 0], sizes = [1, 128], strides = [1, 1]} : vector<16x128xf32> to vector<1x128xf32>
    %443 = vector.broadcast %440 : vector<16x1xf32> to vector<16x128xf32>
    %444 = vector.broadcast %442 : vector<1x128xf32> to vector<16x128xf32>
    %445 = arith.mulf %443, %444 : vector<16x128xf32>
    %446 = vector.broadcast %441 : vector<16x1xf32> to vector<16x128xf32>
    %447 = arith.addf %445, %446 : vector<16x128xf32>
    %448 = arith.maximumf %439, %447 : vector<16x128xf32>
    %449 = vector.extract_strided_slice %364 {offsets = [0, 9], sizes = [16, 1], strides = [1, 1]} : vector<16x16xf32> to vector<16x1xf32>
    %450 = vector.extract_strided_slice %367 {offsets = [0, 9], sizes = [16, 1], strides = [1, 1]} : vector<16x16xf32> to vector<16x1xf32>
    %451 = vector.extract_strided_slice %357 {offsets = [9, 0], sizes = [1, 128], strides = [1, 1]} : vector<16x128xf32> to vector<1x128xf32>
    %452 = vector.broadcast %449 : vector<16x1xf32> to vector<16x128xf32>
    %453 = vector.broadcast %451 : vector<1x128xf32> to vector<16x128xf32>
    %454 = arith.mulf %452, %453 : vector<16x128xf32>
    %455 = vector.broadcast %450 : vector<16x1xf32> to vector<16x128xf32>
    %456 = arith.addf %454, %455 : vector<16x128xf32>
    %457 = arith.maximumf %448, %456 : vector<16x128xf32>
    %458 = vector.extract_strided_slice %364 {offsets = [0, 10], sizes = [16, 1], strides = [1, 1]} : vector<16x16xf32> to vector<16x1xf32>
    %459 = vector.extract_strided_slice %367 {offsets = [0, 10], sizes = [16, 1], strides = [1, 1]} : vector<16x16xf32> to vector<16x1xf32>
    %460 = vector.extract_strided_slice %357 {offsets = [10, 0], sizes = [1, 128], strides = [1, 1]} : vector<16x128xf32> to vector<1x128xf32>
    %461 = vector.broadcast %458 : vector<16x1xf32> to vector<16x128xf32>
    %462 = vector.broadcast %460 : vector<1x128xf32> to vector<16x128xf32>
    %463 = arith.mulf %461, %462 : vector<16x128xf32>
    %464 = vector.broadcast %459 : vector<16x1xf32> to vector<16x128xf32>
    %465 = arith.addf %463, %464 : vector<16x128xf32>
    %466 = arith.maximumf %457, %465 : vector<16x128xf32>
    %467 = vector.extract_strided_slice %364 {offsets = [0, 11], sizes = [16, 1], strides = [1, 1]} : vector<16x16xf32> to vector<16x1xf32>
    %468 = vector.extract_strided_slice %367 {offsets = [0, 11], sizes = [16, 1], strides = [1, 1]} : vector<16x16xf32> to vector<16x1xf32>
    %469 = vector.extract_strided_slice %357 {offsets = [11, 0], sizes = [1, 128], strides = [1, 1]} : vector<16x128xf32> to vector<1x128xf32>
    %470 = vector.broadcast %467 : vector<16x1xf32> to vector<16x128xf32>
    %471 = vector.broadcast %469 : vector<1x128xf32> to vector<16x128xf32>
    %472 = arith.mulf %470, %471 : vector<16x128xf32>
    %473 = vector.broadcast %468 : vector<16x1xf32> to vector<16x128xf32>
    %474 = arith.addf %472, %473 : vector<16x128xf32>
    %475 = arith.maximumf %466, %474 : vector<16x128xf32>
    %476 = vector.extract_strided_slice %364 {offsets = [0, 12], sizes = [16, 1], strides = [1, 1]} : vector<16x16xf32> to vector<16x1xf32>
    %477 = vector.extract_strided_slice %367 {offsets = [0, 12], sizes = [16, 1], strides = [1, 1]} : vector<16x16xf32> to vector<16x1xf32>
    %478 = vector.extract_strided_slice %357 {offsets = [12, 0], sizes = [1, 128], strides = [1, 1]} : vector<16x128xf32> to vector<1x128xf32>
    %479 = vector.broadcast %476 : vector<16x1xf32> to vector<16x128xf32>
    %480 = vector.broadcast %478 : vector<1x128xf32> to vector<16x128xf32>
    %481 = arith.mulf %479, %480 : vector<16x128xf32>
    %482 = vector.broadcast %477 : vector<16x1xf32> to vector<16x128xf32>
    %483 = arith.addf %481, %482 : vector<16x128xf32>
    %484 = arith.maximumf %475, %483 : vector<16x128xf32>
    %485 = vector.extract_strided_slice %364 {offsets = [0, 13], sizes = [16, 1], strides = [1, 1]} : vector<16x16xf32> to vector<16x1xf32>
    %486 = vector.extract_strided_slice %367 {offsets = [0, 13], sizes = [16, 1], strides = [1, 1]} : vector<16x16xf32> to vector<16x1xf32>
    %487 = vector.extract_strided_slice %357 {offsets = [13, 0], sizes = [1, 128], strides = [1, 1]} : vector<16x128xf32> to vector<1x128xf32>
    %488 = vector.broadcast %485 : vector<16x1xf32> to vector<16x128xf32>
    %489 = vector.broadcast %487 : vector<1x128xf32> to vector<16x128xf32>
    %490 = arith.mulf %488, %489 : vector<16x128xf32>
    %491 = vector.broadcast %486 : vector<16x1xf32> to vector<16x128xf32>
    %492 = arith.addf %490, %491 : vector<16x128xf32>
    %493 = arith.maximumf %484, %492 : vector<16x128xf32>
    %494 = vector.extract_strided_slice %364 {offsets = [0, 14], sizes = [16, 1], strides = [1, 1]} : vector<16x16xf32> to vector<16x1xf32>
    %495 = vector.extract_strided_slice %367 {offsets = [0, 14], sizes = [16, 1], strides = [1, 1]} : vector<16x16xf32> to vector<16x1xf32>
    %496 = vector.extract_strided_slice %357 {offsets = [14, 0], sizes = [1, 128], strides = [1, 1]} : vector<16x128xf32> to vector<1x128xf32>
    %497 = vector.broadcast %494 : vector<16x1xf32> to vector<16x128xf32>
    %498 = vector.broadcast %496 : vector<1x128xf32> to vector<16x128xf32>
    %499 = arith.mulf %497, %498 : vector<16x128xf32>
    %500 = vector.broadcast %495 : vector<16x1xf32> to vector<16x128xf32>
    %501 = arith.addf %499, %500 : vector<16x128xf32>
    %502 = arith.maximumf %493, %501 : vector<16x128xf32>
    %503 = vector.extract_strided_slice %364 {offsets = [0, 15], sizes = [16, 1], strides = [1, 1]} : vector<16x16xf32> to vector<16x1xf32>
    %504 = vector.extract_strided_slice %367 {offsets = [0, 15], sizes = [16, 1], strides = [1, 1]} : vector<16x16xf32> to vector<16x1xf32>
    %505 = vector.extract_strided_slice %357 {offsets = [15, 0], sizes = [1, 128], strides = [1, 1]} : vector<16x128xf32> to vector<1x128xf32>
    %506 = vector.broadcast %503 : vector<16x1xf32> to vector<16x128xf32>
    %507 = vector.broadcast %505 : vector<1x128xf32> to vector<16x128xf32>
    %508 = arith.mulf %506, %507 : vector<16x128xf32>
    %509 = vector.broadcast %504 : vector<16x1xf32> to vector<16x128xf32>
    %510 = arith.addf %508, %509 : vector<16x128xf32>
    %511 = arith.maximumf %502, %510 : vector<16x128xf32>
    %cst_33 = arith.constant -9.99999968E+37 : f32
    %512 = vector.broadcast %cst_33 : f32 to vector<16x128xf32>
    %513 = arith.cmpf ogt, %511, %512 : vector<16x128xf32>
    %cst_34 = arith.constant 0.000000e+00 : f32
    %514 = vector.broadcast %cst_34 : f32 to vector<16x128xf32>
    %515 = arith.select %513, %511, %514 : vector<16x128xi1>, vector<16x128xf32>
    %516 = vector.broadcast %0 : f32 to vector<16x128xf32>
    %517 = arith.mulf %516, %357 : vector<16x128xf32>
    %518 = vector.broadcast %1 : f32 to vector<16x128xf32>
    %519 = arith.mulf %518, %515 : vector<16x128xf32>
    %520 = arith.addf %517, %519 : vector<16x128xf32>
    %cst_35 = arith.constant dense<0.000000e+00> : vector<128xf32>
    %521 = vector.multi_reduction <add>, %520, %cst_35 [0] : vector<16x128xf32> to vector<128xf32>
    %522 = vector.shape_cast %521 : vector<128xf32> to vector<1x128xf32>
    %523 = vector.broadcast %c2_i32 : i32 to vector<8x1xi32>
    %524 = arith.cmpi eq, %3, %523 : vector<8x1xi32>
    %525 = vector.shape_cast %524 : vector<8x1xi1> to vector<8x1xi1>
    %526 = vector.broadcast %525 : vector<8x1xi1> to vector<8x128xi1>
    %527 = vector.shape_cast %522 : vector<1x128xf32> to vector<1x128xf32>
    %528 = vector.broadcast %527 : vector<1x128xf32> to vector<8x128xf32>
    %529 = arith.select %526, %528, %354 : vector<8x128xi1>, vector<8x128xf32>
    %c3_i32 = arith.constant 3 : i32
    %530 = arith.index_cast %c3_i32 : i32 to index
    %c0_36 = arith.constant 0 : index
    %c0_37 = arith.constant 0 : index
    %531 = vector.load %arg2[%530, %c0_36, %c0_37] : memref<8x16x128xf32, #tpu.memory_space<vmem>>, vector<1x16x128xf32>
    %532 = vector.shape_cast %531 : vector<1x16x128xf32> to vector<16x128xf32>
    %533 = arith.index_cast %c3_i32 : i32 to index
    %c0_38 = arith.constant 0 : index
    %c0_39 = arith.constant 0 : index
    %534 = vector.load %arg3[%533, %c0_38, %c0_39] : memref<8x16x16xf32, #tpu.memory_space<vmem>>, vector<1x16x16xf32>
    %535 = vector.shape_cast %534 : vector<1x16x16xf32> to vector<16x16xf32>
    %536 = arith.cmpf one, %535, %535 : vector<16x16xf32>
    %cst_40 = arith.constant dense<true> : vector<16x16xi1>
    %537 = arith.xori %536, %cst_40 : vector<16x16xi1>
    %cst_41 = arith.constant 0.000000e+00 : f32
    %538 = vector.broadcast %cst_41 : f32 to vector<16x16xf32>
    %539 = arith.select %537, %535, %538 : vector<16x16xi1>, vector<16x16xf32>
    %cst_42 = arith.constant 0.000000e+00 : f32
    %cst_43 = arith.constant -3.400000e+38 : f32
    %540 = vector.broadcast %cst_42 : f32 to vector<16x16xf32>
    %541 = vector.broadcast %cst_43 : f32 to vector<16x16xf32>
    %542 = arith.select %537, %540, %541 : vector<16x16xi1>, vector<16x16xf32>
    %543 = vector.extract_strided_slice %539 {offsets = [0, 0], sizes = [16, 1], strides = [1, 1]} : vector<16x16xf32> to vector<16x1xf32>
    %544 = vector.extract_strided_slice %542 {offsets = [0, 0], sizes = [16, 1], strides = [1, 1]} : vector<16x16xf32> to vector<16x1xf32>
    %545 = vector.extract_strided_slice %532 {offsets = [0, 0], sizes = [1, 128], strides = [1, 1]} : vector<16x128xf32> to vector<1x128xf32>
    %546 = vector.broadcast %543 : vector<16x1xf32> to vector<16x128xf32>
    %547 = vector.broadcast %545 : vector<1x128xf32> to vector<16x128xf32>
    %548 = arith.mulf %546, %547 : vector<16x128xf32>
    %549 = vector.broadcast %544 : vector<16x1xf32> to vector<16x128xf32>
    %550 = arith.addf %548, %549 : vector<16x128xf32>
    %551 = arith.maximumf %2, %550 : vector<16x128xf32>
    %552 = vector.extract_strided_slice %539 {offsets = [0, 1], sizes = [16, 1], strides = [1, 1]} : vector<16x16xf32> to vector<16x1xf32>
    %553 = vector.extract_strided_slice %542 {offsets = [0, 1], sizes = [16, 1], strides = [1, 1]} : vector<16x16xf32> to vector<16x1xf32>
    %554 = vector.extract_strided_slice %532 {offsets = [1, 0], sizes = [1, 128], strides = [1, 1]} : vector<16x128xf32> to vector<1x128xf32>
    %555 = vector.broadcast %552 : vector<16x1xf32> to vector<16x128xf32>
    %556 = vector.broadcast %554 : vector<1x128xf32> to vector<16x128xf32>
    %557 = arith.mulf %555, %556 : vector<16x128xf32>
    %558 = vector.broadcast %553 : vector<16x1xf32> to vector<16x128xf32>
    %559 = arith.addf %557, %558 : vector<16x128xf32>
    %560 = arith.maximumf %551, %559 : vector<16x128xf32>
    %561 = vector.extract_strided_slice %539 {offsets = [0, 2], sizes = [16, 1], strides = [1, 1]} : vector<16x16xf32> to vector<16x1xf32>
    %562 = vector.extract_strided_slice %542 {offsets = [0, 2], sizes = [16, 1], strides = [1, 1]} : vector<16x16xf32> to vector<16x1xf32>
    %563 = vector.extract_strided_slice %532 {offsets = [2, 0], sizes = [1, 128], strides = [1, 1]} : vector<16x128xf32> to vector<1x128xf32>
    %564 = vector.broadcast %561 : vector<16x1xf32> to vector<16x128xf32>
    %565 = vector.broadcast %563 : vector<1x128xf32> to vector<16x128xf32>
    %566 = arith.mulf %564, %565 : vector<16x128xf32>
    %567 = vector.broadcast %562 : vector<16x1xf32> to vector<16x128xf32>
    %568 = arith.addf %566, %567 : vector<16x128xf32>
    %569 = arith.maximumf %560, %568 : vector<16x128xf32>
    %570 = vector.extract_strided_slice %539 {offsets = [0, 3], sizes = [16, 1], strides = [1, 1]} : vector<16x16xf32> to vector<16x1xf32>
    %571 = vector.extract_strided_slice %542 {offsets = [0, 3], sizes = [16, 1], strides = [1, 1]} : vector<16x16xf32> to vector<16x1xf32>
    %572 = vector.extract_strided_slice %532 {offsets = [3, 0], sizes = [1, 128], strides = [1, 1]} : vector<16x128xf32> to vector<1x128xf32>
    %573 = vector.broadcast %570 : vector<16x1xf32> to vector<16x128xf32>
    %574 = vector.broadcast %572 : vector<1x128xf32> to vector<16x128xf32>
    %575 = arith.mulf %573, %574 : vector<16x128xf32>
    %576 = vector.broadcast %571 : vector<16x1xf32> to vector<16x128xf32>
    %577 = arith.addf %575, %576 : vector<16x128xf32>
    %578 = arith.maximumf %569, %577 : vector<16x128xf32>
    %579 = vector.extract_strided_slice %539 {offsets = [0, 4], sizes = [16, 1], strides = [1, 1]} : vector<16x16xf32> to vector<16x1xf32>
    %580 = vector.extract_strided_slice %542 {offsets = [0, 4], sizes = [16, 1], strides = [1, 1]} : vector<16x16xf32> to vector<16x1xf32>
    %581 = vector.extract_strided_slice %532 {offsets = [4, 0], sizes = [1, 128], strides = [1, 1]} : vector<16x128xf32> to vector<1x128xf32>
    %582 = vector.broadcast %579 : vector<16x1xf32> to vector<16x128xf32>
    %583 = vector.broadcast %581 : vector<1x128xf32> to vector<16x128xf32>
    %584 = arith.mulf %582, %583 : vector<16x128xf32>
    %585 = vector.broadcast %580 : vector<16x1xf32> to vector<16x128xf32>
    %586 = arith.addf %584, %585 : vector<16x128xf32>
    %587 = arith.maximumf %578, %586 : vector<16x128xf32>
    %588 = vector.extract_strided_slice %539 {offsets = [0, 5], sizes = [16, 1], strides = [1, 1]} : vector<16x16xf32> to vector<16x1xf32>
    %589 = vector.extract_strided_slice %542 {offsets = [0, 5], sizes = [16, 1], strides = [1, 1]} : vector<16x16xf32> to vector<16x1xf32>
    %590 = vector.extract_strided_slice %532 {offsets = [5, 0], sizes = [1, 128], strides = [1, 1]} : vector<16x128xf32> to vector<1x128xf32>
    %591 = vector.broadcast %588 : vector<16x1xf32> to vector<16x128xf32>
    %592 = vector.broadcast %590 : vector<1x128xf32> to vector<16x128xf32>
    %593 = arith.mulf %591, %592 : vector<16x128xf32>
    %594 = vector.broadcast %589 : vector<16x1xf32> to vector<16x128xf32>
    %595 = arith.addf %593, %594 : vector<16x128xf32>
    %596 = arith.maximumf %587, %595 : vector<16x128xf32>
    %597 = vector.extract_strided_slice %539 {offsets = [0, 6], sizes = [16, 1], strides = [1, 1]} : vector<16x16xf32> to vector<16x1xf32>
    %598 = vector.extract_strided_slice %542 {offsets = [0, 6], sizes = [16, 1], strides = [1, 1]} : vector<16x16xf32> to vector<16x1xf32>
    %599 = vector.extract_strided_slice %532 {offsets = [6, 0], sizes = [1, 128], strides = [1, 1]} : vector<16x128xf32> to vector<1x128xf32>
    %600 = vector.broadcast %597 : vector<16x1xf32> to vector<16x128xf32>
    %601 = vector.broadcast %599 : vector<1x128xf32> to vector<16x128xf32>
    %602 = arith.mulf %600, %601 : vector<16x128xf32>
    %603 = vector.broadcast %598 : vector<16x1xf32> to vector<16x128xf32>
    %604 = arith.addf %602, %603 : vector<16x128xf32>
    %605 = arith.maximumf %596, %604 : vector<16x128xf32>
    %606 = vector.extract_strided_slice %539 {offsets = [0, 7], sizes = [16, 1], strides = [1, 1]} : vector<16x16xf32> to vector<16x1xf32>
    %607 = vector.extract_strided_slice %542 {offsets = [0, 7], sizes = [16, 1], strides = [1, 1]} : vector<16x16xf32> to vector<16x1xf32>
    %608 = vector.extract_strided_slice %532 {offsets = [7, 0], sizes = [1, 128], strides = [1, 1]} : vector<16x128xf32> to vector<1x128xf32>
    %609 = vector.broadcast %606 : vector<16x1xf32> to vector<16x128xf32>
    %610 = vector.broadcast %608 : vector<1x128xf32> to vector<16x128xf32>
    %611 = arith.mulf %609, %610 : vector<16x128xf32>
    %612 = vector.broadcast %607 : vector<16x1xf32> to vector<16x128xf32>
    %613 = arith.addf %611, %612 : vector<16x128xf32>
    %614 = arith.maximumf %605, %613 : vector<16x128xf32>
    %615 = vector.extract_strided_slice %539 {offsets = [0, 8], sizes = [16, 1], strides = [1, 1]} : vector<16x16xf32> to vector<16x1xf32>
    %616 = vector.extract_strided_slice %542 {offsets = [0, 8], sizes = [16, 1], strides = [1, 1]} : vector<16x16xf32> to vector<16x1xf32>
    %617 = vector.extract_strided_slice %532 {offsets = [8, 0], sizes = [1, 128], strides = [1, 1]} : vector<16x128xf32> to vector<1x128xf32>
    %618 = vector.broadcast %615 : vector<16x1xf32> to vector<16x128xf32>
    %619 = vector.broadcast %617 : vector<1x128xf32> to vector<16x128xf32>
    %620 = arith.mulf %618, %619 : vector<16x128xf32>
    %621 = vector.broadcast %616 : vector<16x1xf32> to vector<16x128xf32>
    %622 = arith.addf %620, %621 : vector<16x128xf32>
    %623 = arith.maximumf %614, %622 : vector<16x128xf32>
    %624 = vector.extract_strided_slice %539 {offsets = [0, 9], sizes = [16, 1], strides = [1, 1]} : vector<16x16xf32> to vector<16x1xf32>
    %625 = vector.extract_strided_slice %542 {offsets = [0, 9], sizes = [16, 1], strides = [1, 1]} : vector<16x16xf32> to vector<16x1xf32>
    %626 = vector.extract_strided_slice %532 {offsets = [9, 0], sizes = [1, 128], strides = [1, 1]} : vector<16x128xf32> to vector<1x128xf32>
    %627 = vector.broadcast %624 : vector<16x1xf32> to vector<16x128xf32>
    %628 = vector.broadcast %626 : vector<1x128xf32> to vector<16x128xf32>
    %629 = arith.mulf %627, %628 : vector<16x128xf32>
    %630 = vector.broadcast %625 : vector<16x1xf32> to vector<16x128xf32>
    %631 = arith.addf %629, %630 : vector<16x128xf32>
    %632 = arith.maximumf %623, %631 : vector<16x128xf32>
    %633 = vector.extract_strided_slice %539 {offsets = [0, 10], sizes = [16, 1], strides = [1, 1]} : vector<16x16xf32> to vector<16x1xf32>
    %634 = vector.extract_strided_slice %542 {offsets = [0, 10], sizes = [16, 1], strides = [1, 1]} : vector<16x16xf32> to vector<16x1xf32>
    %635 = vector.extract_strided_slice %532 {offsets = [10, 0], sizes = [1, 128], strides = [1, 1]} : vector<16x128xf32> to vector<1x128xf32>
    %636 = vector.broadcast %633 : vector<16x1xf32> to vector<16x128xf32>
    %637 = vector.broadcast %635 : vector<1x128xf32> to vector<16x128xf32>
    %638 = arith.mulf %636, %637 : vector<16x128xf32>
    %639 = vector.broadcast %634 : vector<16x1xf32> to vector<16x128xf32>
    %640 = arith.addf %638, %639 : vector<16x128xf32>
    %641 = arith.maximumf %632, %640 : vector<16x128xf32>
    %642 = vector.extract_strided_slice %539 {offsets = [0, 11], sizes = [16, 1], strides = [1, 1]} : vector<16x16xf32> to vector<16x1xf32>
    %643 = vector.extract_strided_slice %542 {offsets = [0, 11], sizes = [16, 1], strides = [1, 1]} : vector<16x16xf32> to vector<16x1xf32>
    %644 = vector.extract_strided_slice %532 {offsets = [11, 0], sizes = [1, 128], strides = [1, 1]} : vector<16x128xf32> to vector<1x128xf32>
    %645 = vector.broadcast %642 : vector<16x1xf32> to vector<16x128xf32>
    %646 = vector.broadcast %644 : vector<1x128xf32> to vector<16x128xf32>
    %647 = arith.mulf %645, %646 : vector<16x128xf32>
    %648 = vector.broadcast %643 : vector<16x1xf32> to vector<16x128xf32>
    %649 = arith.addf %647, %648 : vector<16x128xf32>
    %650 = arith.maximumf %641, %649 : vector<16x128xf32>
    %651 = vector.extract_strided_slice %539 {offsets = [0, 12], sizes = [16, 1], strides = [1, 1]} : vector<16x16xf32> to vector<16x1xf32>
    %652 = vector.extract_strided_slice %542 {offsets = [0, 12], sizes = [16, 1], strides = [1, 1]} : vector<16x16xf32> to vector<16x1xf32>
    %653 = vector.extract_strided_slice %532 {offsets = [12, 0], sizes = [1, 128], strides = [1, 1]} : vector<16x128xf32> to vector<1x128xf32>
    %654 = vector.broadcast %651 : vector<16x1xf32> to vector<16x128xf32>
    %655 = vector.broadcast %653 : vector<1x128xf32> to vector<16x128xf32>
    %656 = arith.mulf %654, %655 : vector<16x128xf32>
    %657 = vector.broadcast %652 : vector<16x1xf32> to vector<16x128xf32>
    %658 = arith.addf %656, %657 : vector<16x128xf32>
    %659 = arith.maximumf %650, %658 : vector<16x128xf32>
    %660 = vector.extract_strided_slice %539 {offsets = [0, 13], sizes = [16, 1], strides = [1, 1]} : vector<16x16xf32> to vector<16x1xf32>
    %661 = vector.extract_strided_slice %542 {offsets = [0, 13], sizes = [16, 1], strides = [1, 1]} : vector<16x16xf32> to vector<16x1xf32>
    %662 = vector.extract_strided_slice %532 {offsets = [13, 0], sizes = [1, 128], strides = [1, 1]} : vector<16x128xf32> to vector<1x128xf32>
    %663 = vector.broadcast %660 : vector<16x1xf32> to vector<16x128xf32>
    %664 = vector.broadcast %662 : vector<1x128xf32> to vector<16x128xf32>
    %665 = arith.mulf %663, %664 : vector<16x128xf32>
    %666 = vector.broadcast %661 : vector<16x1xf32> to vector<16x128xf32>
    %667 = arith.addf %665, %666 : vector<16x128xf32>
    %668 = arith.maximumf %659, %667 : vector<16x128xf32>
    %669 = vector.extract_strided_slice %539 {offsets = [0, 14], sizes = [16, 1], strides = [1, 1]} : vector<16x16xf32> to vector<16x1xf32>
    %670 = vector.extract_strided_slice %542 {offsets = [0, 14], sizes = [16, 1], strides = [1, 1]} : vector<16x16xf32> to vector<16x1xf32>
    %671 = vector.extract_strided_slice %532 {offsets = [14, 0], sizes = [1, 128], strides = [1, 1]} : vector<16x128xf32> to vector<1x128xf32>
    %672 = vector.broadcast %669 : vector<16x1xf32> to vector<16x128xf32>
    %673 = vector.broadcast %671 : vector<1x128xf32> to vector<16x128xf32>
    %674 = arith.mulf %672, %673 : vector<16x128xf32>
    %675 = vector.broadcast %670 : vector<16x1xf32> to vector<16x128xf32>
    %676 = arith.addf %674, %675 : vector<16x128xf32>
    %677 = arith.maximumf %668, %676 : vector<16x128xf32>
    %678 = vector.extract_strided_slice %539 {offsets = [0, 15], sizes = [16, 1], strides = [1, 1]} : vector<16x16xf32> to vector<16x1xf32>
    %679 = vector.extract_strided_slice %542 {offsets = [0, 15], sizes = [16, 1], strides = [1, 1]} : vector<16x16xf32> to vector<16x1xf32>
    %680 = vector.extract_strided_slice %532 {offsets = [15, 0], sizes = [1, 128], strides = [1, 1]} : vector<16x128xf32> to vector<1x128xf32>
    %681 = vector.broadcast %678 : vector<16x1xf32> to vector<16x128xf32>
    %682 = vector.broadcast %680 : vector<1x128xf32> to vector<16x128xf32>
    %683 = arith.mulf %681, %682 : vector<16x128xf32>
    %684 = vector.broadcast %679 : vector<16x1xf32> to vector<16x128xf32>
    %685 = arith.addf %683, %684 : vector<16x128xf32>
    %686 = arith.maximumf %677, %685 : vector<16x128xf32>
    %cst_44 = arith.constant -9.99999968E+37 : f32
    %687 = vector.broadcast %cst_44 : f32 to vector<16x128xf32>
    %688 = arith.cmpf ogt, %686, %687 : vector<16x128xf32>
    %cst_45 = arith.constant 0.000000e+00 : f32
    %689 = vector.broadcast %cst_45 : f32 to vector<16x128xf32>
    %690 = arith.select %688, %686, %689 : vector<16x128xi1>, vector<16x128xf32>
    %691 = vector.broadcast %0 : f32 to vector<16x128xf32>
    %692 = arith.mulf %691, %532 : vector<16x128xf32>
    %693 = vector.broadcast %1 : f32 to vector<16x128xf32>
    %694 = arith.mulf %693, %690 : vector<16x128xf32>
    %695 = arith.addf %692, %694 : vector<16x128xf32>
    %cst_46 = arith.constant dense<0.000000e+00> : vector<128xf32>
    %696 = vector.multi_reduction <add>, %695, %cst_46 [0] : vector<16x128xf32> to vector<128xf32>
    %697 = vector.shape_cast %696 : vector<128xf32> to vector<1x128xf32>
    %698 = vector.broadcast %c3_i32 : i32 to vector<8x1xi32>
    %699 = arith.cmpi eq, %3, %698 : vector<8x1xi32>
    %700 = vector.shape_cast %699 : vector<8x1xi1> to vector<8x1xi1>
    %701 = vector.broadcast %700 : vector<8x1xi1> to vector<8x128xi1>
    %702 = vector.shape_cast %697 : vector<1x128xf32> to vector<1x128xf32>
    %703 = vector.broadcast %702 : vector<1x128xf32> to vector<8x128xf32>
    %704 = arith.select %701, %703, %529 : vector<8x128xi1>, vector<8x128xf32>
    %c4_i32 = arith.constant 4 : i32
    %705 = arith.index_cast %c4_i32 : i32 to index
    %c0_47 = arith.constant 0 : index
    %c0_48 = arith.constant 0 : index
    %706 = vector.load %arg2[%705, %c0_47, %c0_48] : memref<8x16x128xf32, #tpu.memory_space<vmem>>, vector<1x16x128xf32>
    %707 = vector.shape_cast %706 : vector<1x16x128xf32> to vector<16x128xf32>
    %708 = arith.index_cast %c4_i32 : i32 to index
    %c0_49 = arith.constant 0 : index
    %c0_50 = arith.constant 0 : index
    %709 = vector.load %arg3[%708, %c0_49, %c0_50] : memref<8x16x16xf32, #tpu.memory_space<vmem>>, vector<1x16x16xf32>
    %710 = vector.shape_cast %709 : vector<1x16x16xf32> to vector<16x16xf32>
    %711 = arith.cmpf one, %710, %710 : vector<16x16xf32>
    %cst_51 = arith.constant dense<true> : vector<16x16xi1>
    %712 = arith.xori %711, %cst_51 : vector<16x16xi1>
    %cst_52 = arith.constant 0.000000e+00 : f32
    %713 = vector.broadcast %cst_52 : f32 to vector<16x16xf32>
    %714 = arith.select %712, %710, %713 : vector<16x16xi1>, vector<16x16xf32>
    %cst_53 = arith.constant 0.000000e+00 : f32
    %cst_54 = arith.constant -3.400000e+38 : f32
    %715 = vector.broadcast %cst_53 : f32 to vector<16x16xf32>
    %716 = vector.broadcast %cst_54 : f32 to vector<16x16xf32>
    %717 = arith.select %712, %715, %716 : vector<16x16xi1>, vector<16x16xf32>
    %718 = vector.extract_strided_slice %714 {offsets = [0, 0], sizes = [16, 1], strides = [1, 1]} : vector<16x16xf32> to vector<16x1xf32>
    %719 = vector.extract_strided_slice %717 {offsets = [0, 0], sizes = [16, 1], strides = [1, 1]} : vector<16x16xf32> to vector<16x1xf32>
    %720 = vector.extract_strided_slice %707 {offsets = [0, 0], sizes = [1, 128], strides = [1, 1]} : vector<16x128xf32> to vector<1x128xf32>
    %721 = vector.broadcast %718 : vector<16x1xf32> to vector<16x128xf32>
    %722 = vector.broadcast %720 : vector<1x128xf32> to vector<16x128xf32>
    %723 = arith.mulf %721, %722 : vector<16x128xf32>
    %724 = vector.broadcast %719 : vector<16x1xf32> to vector<16x128xf32>
    %725 = arith.addf %723, %724 : vector<16x128xf32>
    %726 = arith.maximumf %2, %725 : vector<16x128xf32>
    %727 = vector.extract_strided_slice %714 {offsets = [0, 1], sizes = [16, 1], strides = [1, 1]} : vector<16x16xf32> to vector<16x1xf32>
    %728 = vector.extract_strided_slice %717 {offsets = [0, 1], sizes = [16, 1], strides = [1, 1]} : vector<16x16xf32> to vector<16x1xf32>
    %729 = vector.extract_strided_slice %707 {offsets = [1, 0], sizes = [1, 128], strides = [1, 1]} : vector<16x128xf32> to vector<1x128xf32>
    %730 = vector.broadcast %727 : vector<16x1xf32> to vector<16x128xf32>
    %731 = vector.broadcast %729 : vector<1x128xf32> to vector<16x128xf32>
    %732 = arith.mulf %730, %731 : vector<16x128xf32>
    %733 = vector.broadcast %728 : vector<16x1xf32> to vector<16x128xf32>
    %734 = arith.addf %732, %733 : vector<16x128xf32>
    %735 = arith.maximumf %726, %734 : vector<16x128xf32>
    %736 = vector.extract_strided_slice %714 {offsets = [0, 2], sizes = [16, 1], strides = [1, 1]} : vector<16x16xf32> to vector<16x1xf32>
    %737 = vector.extract_strided_slice %717 {offsets = [0, 2], sizes = [16, 1], strides = [1, 1]} : vector<16x16xf32> to vector<16x1xf32>
    %738 = vector.extract_strided_slice %707 {offsets = [2, 0], sizes = [1, 128], strides = [1, 1]} : vector<16x128xf32> to vector<1x128xf32>
    %739 = vector.broadcast %736 : vector<16x1xf32> to vector<16x128xf32>
    %740 = vector.broadcast %738 : vector<1x128xf32> to vector<16x128xf32>
    %741 = arith.mulf %739, %740 : vector<16x128xf32>
    %742 = vector.broadcast %737 : vector<16x1xf32> to vector<16x128xf32>
    %743 = arith.addf %741, %742 : vector<16x128xf32>
    %744 = arith.maximumf %735, %743 : vector<16x128xf32>
    %745 = vector.extract_strided_slice %714 {offsets = [0, 3], sizes = [16, 1], strides = [1, 1]} : vector<16x16xf32> to vector<16x1xf32>
    %746 = vector.extract_strided_slice %717 {offsets = [0, 3], sizes = [16, 1], strides = [1, 1]} : vector<16x16xf32> to vector<16x1xf32>
    %747 = vector.extract_strided_slice %707 {offsets = [3, 0], sizes = [1, 128], strides = [1, 1]} : vector<16x128xf32> to vector<1x128xf32>
    %748 = vector.broadcast %745 : vector<16x1xf32> to vector<16x128xf32>
    %749 = vector.broadcast %747 : vector<1x128xf32> to vector<16x128xf32>
    %750 = arith.mulf %748, %749 : vector<16x128xf32>
    %751 = vector.broadcast %746 : vector<16x1xf32> to vector<16x128xf32>
    %752 = arith.addf %750, %751 : vector<16x128xf32>
    %753 = arith.maximumf %744, %752 : vector<16x128xf32>
    %754 = vector.extract_strided_slice %714 {offsets = [0, 4], sizes = [16, 1], strides = [1, 1]} : vector<16x16xf32> to vector<16x1xf32>
    %755 = vector.extract_strided_slice %717 {offsets = [0, 4], sizes = [16, 1], strides = [1, 1]} : vector<16x16xf32> to vector<16x1xf32>
    %756 = vector.extract_strided_slice %707 {offsets = [4, 0], sizes = [1, 128], strides = [1, 1]} : vector<16x128xf32> to vector<1x128xf32>
    %757 = vector.broadcast %754 : vector<16x1xf32> to vector<16x128xf32>
    %758 = vector.broadcast %756 : vector<1x128xf32> to vector<16x128xf32>
    %759 = arith.mulf %757, %758 : vector<16x128xf32>
    %760 = vector.broadcast %755 : vector<16x1xf32> to vector<16x128xf32>
    %761 = arith.addf %759, %760 : vector<16x128xf32>
    %762 = arith.maximumf %753, %761 : vector<16x128xf32>
    %763 = vector.extract_strided_slice %714 {offsets = [0, 5], sizes = [16, 1], strides = [1, 1]} : vector<16x16xf32> to vector<16x1xf32>
    %764 = vector.extract_strided_slice %717 {offsets = [0, 5], sizes = [16, 1], strides = [1, 1]} : vector<16x16xf32> to vector<16x1xf32>
    %765 = vector.extract_strided_slice %707 {offsets = [5, 0], sizes = [1, 128], strides = [1, 1]} : vector<16x128xf32> to vector<1x128xf32>
    %766 = vector.broadcast %763 : vector<16x1xf32> to vector<16x128xf32>
    %767 = vector.broadcast %765 : vector<1x128xf32> to vector<16x128xf32>
    %768 = arith.mulf %766, %767 : vector<16x128xf32>
    %769 = vector.broadcast %764 : vector<16x1xf32> to vector<16x128xf32>
    %770 = arith.addf %768, %769 : vector<16x128xf32>
    %771 = arith.maximumf %762, %770 : vector<16x128xf32>
    %772 = vector.extract_strided_slice %714 {offsets = [0, 6], sizes = [16, 1], strides = [1, 1]} : vector<16x16xf32> to vector<16x1xf32>
    %773 = vector.extract_strided_slice %717 {offsets = [0, 6], sizes = [16, 1], strides = [1, 1]} : vector<16x16xf32> to vector<16x1xf32>
    %774 = vector.extract_strided_slice %707 {offsets = [6, 0], sizes = [1, 128], strides = [1, 1]} : vector<16x128xf32> to vector<1x128xf32>
    %775 = vector.broadcast %772 : vector<16x1xf32> to vector<16x128xf32>
    %776 = vector.broadcast %774 : vector<1x128xf32> to vector<16x128xf32>
    %777 = arith.mulf %775, %776 : vector<16x128xf32>
    %778 = vector.broadcast %773 : vector<16x1xf32> to vector<16x128xf32>
    %779 = arith.addf %777, %778 : vector<16x128xf32>
    %780 = arith.maximumf %771, %779 : vector<16x128xf32>
    %781 = vector.extract_strided_slice %714 {offsets = [0, 7], sizes = [16, 1], strides = [1, 1]} : vector<16x16xf32> to vector<16x1xf32>
    %782 = vector.extract_strided_slice %717 {offsets = [0, 7], sizes = [16, 1], strides = [1, 1]} : vector<16x16xf32> to vector<16x1xf32>
    %783 = vector.extract_strided_slice %707 {offsets = [7, 0], sizes = [1, 128], strides = [1, 1]} : vector<16x128xf32> to vector<1x128xf32>
    %784 = vector.broadcast %781 : vector<16x1xf32> to vector<16x128xf32>
    %785 = vector.broadcast %783 : vector<1x128xf32> to vector<16x128xf32>
    %786 = arith.mulf %784, %785 : vector<16x128xf32>
    %787 = vector.broadcast %782 : vector<16x1xf32> to vector<16x128xf32>
    %788 = arith.addf %786, %787 : vector<16x128xf32>
    %789 = arith.maximumf %780, %788 : vector<16x128xf32>
    %790 = vector.extract_strided_slice %714 {offsets = [0, 8], sizes = [16, 1], strides = [1, 1]} : vector<16x16xf32> to vector<16x1xf32>
    %791 = vector.extract_strided_slice %717 {offsets = [0, 8], sizes = [16, 1], strides = [1, 1]} : vector<16x16xf32> to vector<16x1xf32>
    %792 = vector.extract_strided_slice %707 {offsets = [8, 0], sizes = [1, 128], strides = [1, 1]} : vector<16x128xf32> to vector<1x128xf32>
    %793 = vector.broadcast %790 : vector<16x1xf32> to vector<16x128xf32>
    %794 = vector.broadcast %792 : vector<1x128xf32> to vector<16x128xf32>
    %795 = arith.mulf %793, %794 : vector<16x128xf32>
    %796 = vector.broadcast %791 : vector<16x1xf32> to vector<16x128xf32>
    %797 = arith.addf %795, %796 : vector<16x128xf32>
    %798 = arith.maximumf %789, %797 : vector<16x128xf32>
    %799 = vector.extract_strided_slice %714 {offsets = [0, 9], sizes = [16, 1], strides = [1, 1]} : vector<16x16xf32> to vector<16x1xf32>
    %800 = vector.extract_strided_slice %717 {offsets = [0, 9], sizes = [16, 1], strides = [1, 1]} : vector<16x16xf32> to vector<16x1xf32>
    %801 = vector.extract_strided_slice %707 {offsets = [9, 0], sizes = [1, 128], strides = [1, 1]} : vector<16x128xf32> to vector<1x128xf32>
    %802 = vector.broadcast %799 : vector<16x1xf32> to vector<16x128xf32>
    %803 = vector.broadcast %801 : vector<1x128xf32> to vector<16x128xf32>
    %804 = arith.mulf %802, %803 : vector<16x128xf32>
    %805 = vector.broadcast %800 : vector<16x1xf32> to vector<16x128xf32>
    %806 = arith.addf %804, %805 : vector<16x128xf32>
    %807 = arith.maximumf %798, %806 : vector<16x128xf32>
    %808 = vector.extract_strided_slice %714 {offsets = [0, 10], sizes = [16, 1], strides = [1, 1]} : vector<16x16xf32> to vector<16x1xf32>
    %809 = vector.extract_strided_slice %717 {offsets = [0, 10], sizes = [16, 1], strides = [1, 1]} : vector<16x16xf32> to vector<16x1xf32>
    %810 = vector.extract_strided_slice %707 {offsets = [10, 0], sizes = [1, 128], strides = [1, 1]} : vector<16x128xf32> to vector<1x128xf32>
    %811 = vector.broadcast %808 : vector<16x1xf32> to vector<16x128xf32>
    %812 = vector.broadcast %810 : vector<1x128xf32> to vector<16x128xf32>
    %813 = arith.mulf %811, %812 : vector<16x128xf32>
    %814 = vector.broadcast %809 : vector<16x1xf32> to vector<16x128xf32>
    %815 = arith.addf %813, %814 : vector<16x128xf32>
    %816 = arith.maximumf %807, %815 : vector<16x128xf32>
    %817 = vector.extract_strided_slice %714 {offsets = [0, 11], sizes = [16, 1], strides = [1, 1]} : vector<16x16xf32> to vector<16x1xf32>
    %818 = vector.extract_strided_slice %717 {offsets = [0, 11], sizes = [16, 1], strides = [1, 1]} : vector<16x16xf32> to vector<16x1xf32>
    %819 = vector.extract_strided_slice %707 {offsets = [11, 0], sizes = [1, 128], strides = [1, 1]} : vector<16x128xf32> to vector<1x128xf32>
    %820 = vector.broadcast %817 : vector<16x1xf32> to vector<16x128xf32>
    %821 = vector.broadcast %819 : vector<1x128xf32> to vector<16x128xf32>
    %822 = arith.mulf %820, %821 : vector<16x128xf32>
    %823 = vector.broadcast %818 : vector<16x1xf32> to vector<16x128xf32>
    %824 = arith.addf %822, %823 : vector<16x128xf32>
    %825 = arith.maximumf %816, %824 : vector<16x128xf32>
    %826 = vector.extract_strided_slice %714 {offsets = [0, 12], sizes = [16, 1], strides = [1, 1]} : vector<16x16xf32> to vector<16x1xf32>
    %827 = vector.extract_strided_slice %717 {offsets = [0, 12], sizes = [16, 1], strides = [1, 1]} : vector<16x16xf32> to vector<16x1xf32>
    %828 = vector.extract_strided_slice %707 {offsets = [12, 0], sizes = [1, 128], strides = [1, 1]} : vector<16x128xf32> to vector<1x128xf32>
    %829 = vector.broadcast %826 : vector<16x1xf32> to vector<16x128xf32>
    %830 = vector.broadcast %828 : vector<1x128xf32> to vector<16x128xf32>
    %831 = arith.mulf %829, %830 : vector<16x128xf32>
    %832 = vector.broadcast %827 : vector<16x1xf32> to vector<16x128xf32>
    %833 = arith.addf %831, %832 : vector<16x128xf32>
    %834 = arith.maximumf %825, %833 : vector<16x128xf32>
    %835 = vector.extract_strided_slice %714 {offsets = [0, 13], sizes = [16, 1], strides = [1, 1]} : vector<16x16xf32> to vector<16x1xf32>
    %836 = vector.extract_strided_slice %717 {offsets = [0, 13], sizes = [16, 1], strides = [1, 1]} : vector<16x16xf32> to vector<16x1xf32>
    %837 = vector.extract_strided_slice %707 {offsets = [13, 0], sizes = [1, 128], strides = [1, 1]} : vector<16x128xf32> to vector<1x128xf32>
    %838 = vector.broadcast %835 : vector<16x1xf32> to vector<16x128xf32>
    %839 = vector.broadcast %837 : vector<1x128xf32> to vector<16x128xf32>
    %840 = arith.mulf %838, %839 : vector<16x128xf32>
    %841 = vector.broadcast %836 : vector<16x1xf32> to vector<16x128xf32>
    %842 = arith.addf %840, %841 : vector<16x128xf32>
    %843 = arith.maximumf %834, %842 : vector<16x128xf32>
    %844 = vector.extract_strided_slice %714 {offsets = [0, 14], sizes = [16, 1], strides = [1, 1]} : vector<16x16xf32> to vector<16x1xf32>
    %845 = vector.extract_strided_slice %717 {offsets = [0, 14], sizes = [16, 1], strides = [1, 1]} : vector<16x16xf32> to vector<16x1xf32>
    %846 = vector.extract_strided_slice %707 {offsets = [14, 0], sizes = [1, 128], strides = [1, 1]} : vector<16x128xf32> to vector<1x128xf32>
    %847 = vector.broadcast %844 : vector<16x1xf32> to vector<16x128xf32>
    %848 = vector.broadcast %846 : vector<1x128xf32> to vector<16x128xf32>
    %849 = arith.mulf %847, %848 : vector<16x128xf32>
    %850 = vector.broadcast %845 : vector<16x1xf32> to vector<16x128xf32>
    %851 = arith.addf %849, %850 : vector<16x128xf32>
    %852 = arith.maximumf %843, %851 : vector<16x128xf32>
    %853 = vector.extract_strided_slice %714 {offsets = [0, 15], sizes = [16, 1], strides = [1, 1]} : vector<16x16xf32> to vector<16x1xf32>
    %854 = vector.extract_strided_slice %717 {offsets = [0, 15], sizes = [16, 1], strides = [1, 1]} : vector<16x16xf32> to vector<16x1xf32>
    %855 = vector.extract_strided_slice %707 {offsets = [15, 0], sizes = [1, 128], strides = [1, 1]} : vector<16x128xf32> to vector<1x128xf32>
    %856 = vector.broadcast %853 : vector<16x1xf32> to vector<16x128xf32>
    %857 = vector.broadcast %855 : vector<1x128xf32> to vector<16x128xf32>
    %858 = arith.mulf %856, %857 : vector<16x128xf32>
    %859 = vector.broadcast %854 : vector<16x1xf32> to vector<16x128xf32>
    %860 = arith.addf %858, %859 : vector<16x128xf32>
    %861 = arith.maximumf %852, %860 : vector<16x128xf32>
    %cst_55 = arith.constant -9.99999968E+37 : f32
    %862 = vector.broadcast %cst_55 : f32 to vector<16x128xf32>
    %863 = arith.cmpf ogt, %861, %862 : vector<16x128xf32>
    %cst_56 = arith.constant 0.000000e+00 : f32
    %864 = vector.broadcast %cst_56 : f32 to vector<16x128xf32>
    %865 = arith.select %863, %861, %864 : vector<16x128xi1>, vector<16x128xf32>
    %866 = vector.broadcast %0 : f32 to vector<16x128xf32>
    %867 = arith.mulf %866, %707 : vector<16x128xf32>
    %868 = vector.broadcast %1 : f32 to vector<16x128xf32>
    %869 = arith.mulf %868, %865 : vector<16x128xf32>
    %870 = arith.addf %867, %869 : vector<16x128xf32>
    %cst_57 = arith.constant dense<0.000000e+00> : vector<128xf32>
    %871 = vector.multi_reduction <add>, %870, %cst_57 [0] : vector<16x128xf32> to vector<128xf32>
    %872 = vector.shape_cast %871 : vector<128xf32> to vector<1x128xf32>
    %873 = vector.broadcast %c4_i32 : i32 to vector<8x1xi32>
    %874 = arith.cmpi eq, %3, %873 : vector<8x1xi32>
    %875 = vector.shape_cast %874 : vector<8x1xi1> to vector<8x1xi1>
    %876 = vector.broadcast %875 : vector<8x1xi1> to vector<8x128xi1>
    %877 = vector.shape_cast %872 : vector<1x128xf32> to vector<1x128xf32>
    %878 = vector.broadcast %877 : vector<1x128xf32> to vector<8x128xf32>
    %879 = arith.select %876, %878, %704 : vector<8x128xi1>, vector<8x128xf32>
    %c5_i32 = arith.constant 5 : i32
    %880 = arith.index_cast %c5_i32 : i32 to index
    %c0_58 = arith.constant 0 : index
    %c0_59 = arith.constant 0 : index
    %881 = vector.load %arg2[%880, %c0_58, %c0_59] : memref<8x16x128xf32, #tpu.memory_space<vmem>>, vector<1x16x128xf32>
    %882 = vector.shape_cast %881 : vector<1x16x128xf32> to vector<16x128xf32>
    %883 = arith.index_cast %c5_i32 : i32 to index
    %c0_60 = arith.constant 0 : index
    %c0_61 = arith.constant 0 : index
    %884 = vector.load %arg3[%883, %c0_60, %c0_61] : memref<8x16x16xf32, #tpu.memory_space<vmem>>, vector<1x16x16xf32>
    %885 = vector.shape_cast %884 : vector<1x16x16xf32> to vector<16x16xf32>
    %886 = arith.cmpf one, %885, %885 : vector<16x16xf32>
    %cst_62 = arith.constant dense<true> : vector<16x16xi1>
    %887 = arith.xori %886, %cst_62 : vector<16x16xi1>
    %cst_63 = arith.constant 0.000000e+00 : f32
    %888 = vector.broadcast %cst_63 : f32 to vector<16x16xf32>
    %889 = arith.select %887, %885, %888 : vector<16x16xi1>, vector<16x16xf32>
    %cst_64 = arith.constant 0.000000e+00 : f32
    %cst_65 = arith.constant -3.400000e+38 : f32
    %890 = vector.broadcast %cst_64 : f32 to vector<16x16xf32>
    %891 = vector.broadcast %cst_65 : f32 to vector<16x16xf32>
    %892 = arith.select %887, %890, %891 : vector<16x16xi1>, vector<16x16xf32>
    %893 = vector.extract_strided_slice %889 {offsets = [0, 0], sizes = [16, 1], strides = [1, 1]} : vector<16x16xf32> to vector<16x1xf32>
    %894 = vector.extract_strided_slice %892 {offsets = [0, 0], sizes = [16, 1], strides = [1, 1]} : vector<16x16xf32> to vector<16x1xf32>
    %895 = vector.extract_strided_slice %882 {offsets = [0, 0], sizes = [1, 128], strides = [1, 1]} : vector<16x128xf32> to vector<1x128xf32>
    %896 = vector.broadcast %893 : vector<16x1xf32> to vector<16x128xf32>
    %897 = vector.broadcast %895 : vector<1x128xf32> to vector<16x128xf32>
    %898 = arith.mulf %896, %897 : vector<16x128xf32>
    %899 = vector.broadcast %894 : vector<16x1xf32> to vector<16x128xf32>
    %900 = arith.addf %898, %899 : vector<16x128xf32>
    %901 = arith.maximumf %2, %900 : vector<16x128xf32>
    %902 = vector.extract_strided_slice %889 {offsets = [0, 1], sizes = [16, 1], strides = [1, 1]} : vector<16x16xf32> to vector<16x1xf32>
    %903 = vector.extract_strided_slice %892 {offsets = [0, 1], sizes = [16, 1], strides = [1, 1]} : vector<16x16xf32> to vector<16x1xf32>
    %904 = vector.extract_strided_slice %882 {offsets = [1, 0], sizes = [1, 128], strides = [1, 1]} : vector<16x128xf32> to vector<1x128xf32>
    %905 = vector.broadcast %902 : vector<16x1xf32> to vector<16x128xf32>
    %906 = vector.broadcast %904 : vector<1x128xf32> to vector<16x128xf32>
    %907 = arith.mulf %905, %906 : vector<16x128xf32>
    %908 = vector.broadcast %903 : vector<16x1xf32> to vector<16x128xf32>
    %909 = arith.addf %907, %908 : vector<16x128xf32>
    %910 = arith.maximumf %901, %909 : vector<16x128xf32>
    %911 = vector.extract_strided_slice %889 {offsets = [0, 2], sizes = [16, 1], strides = [1, 1]} : vector<16x16xf32> to vector<16x1xf32>
    %912 = vector.extract_strided_slice %892 {offsets = [0, 2], sizes = [16, 1], strides = [1, 1]} : vector<16x16xf32> to vector<16x1xf32>
    %913 = vector.extract_strided_slice %882 {offsets = [2, 0], sizes = [1, 128], strides = [1, 1]} : vector<16x128xf32> to vector<1x128xf32>
    %914 = vector.broadcast %911 : vector<16x1xf32> to vector<16x128xf32>
    %915 = vector.broadcast %913 : vector<1x128xf32> to vector<16x128xf32>
    %916 = arith.mulf %914, %915 : vector<16x128xf32>
    %917 = vector.broadcast %912 : vector<16x1xf32> to vector<16x128xf32>
    %918 = arith.addf %916, %917 : vector<16x128xf32>
    %919 = arith.maximumf %910, %918 : vector<16x128xf32>
    %920 = vector.extract_strided_slice %889 {offsets = [0, 3], sizes = [16, 1], strides = [1, 1]} : vector<16x16xf32> to vector<16x1xf32>
    %921 = vector.extract_strided_slice %892 {offsets = [0, 3], sizes = [16, 1], strides = [1, 1]} : vector<16x16xf32> to vector<16x1xf32>
    %922 = vector.extract_strided_slice %882 {offsets = [3, 0], sizes = [1, 128], strides = [1, 1]} : vector<16x128xf32> to vector<1x128xf32>
    %923 = vector.broadcast %920 : vector<16x1xf32> to vector<16x128xf32>
    %924 = vector.broadcast %922 : vector<1x128xf32> to vector<16x128xf32>
    %925 = arith.mulf %923, %924 : vector<16x128xf32>
    %926 = vector.broadcast %921 : vector<16x1xf32> to vector<16x128xf32>
    %927 = arith.addf %925, %926 : vector<16x128xf32>
    %928 = arith.maximumf %919, %927 : vector<16x128xf32>
    %929 = vector.extract_strided_slice %889 {offsets = [0, 4], sizes = [16, 1], strides = [1, 1]} : vector<16x16xf32> to vector<16x1xf32>
    %930 = vector.extract_strided_slice %892 {offsets = [0, 4], sizes = [16, 1], strides = [1, 1]} : vector<16x16xf32> to vector<16x1xf32>
    %931 = vector.extract_strided_slice %882 {offsets = [4, 0], sizes = [1, 128], strides = [1, 1]} : vector<16x128xf32> to vector<1x128xf32>
    %932 = vector.broadcast %929 : vector<16x1xf32> to vector<16x128xf32>
    %933 = vector.broadcast %931 : vector<1x128xf32> to vector<16x128xf32>
    %934 = arith.mulf %932, %933 : vector<16x128xf32>
    %935 = vector.broadcast %930 : vector<16x1xf32> to vector<16x128xf32>
    %936 = arith.addf %934, %935 : vector<16x128xf32>
    %937 = arith.maximumf %928, %936 : vector<16x128xf32>
    %938 = vector.extract_strided_slice %889 {offsets = [0, 5], sizes = [16, 1], strides = [1, 1]} : vector<16x16xf32> to vector<16x1xf32>
    %939 = vector.extract_strided_slice %892 {offsets = [0, 5], sizes = [16, 1], strides = [1, 1]} : vector<16x16xf32> to vector<16x1xf32>
    %940 = vector.extract_strided_slice %882 {offsets = [5, 0], sizes = [1, 128], strides = [1, 1]} : vector<16x128xf32> to vector<1x128xf32>
    %941 = vector.broadcast %938 : vector<16x1xf32> to vector<16x128xf32>
    %942 = vector.broadcast %940 : vector<1x128xf32> to vector<16x128xf32>
    %943 = arith.mulf %941, %942 : vector<16x128xf32>
    %944 = vector.broadcast %939 : vector<16x1xf32> to vector<16x128xf32>
    %945 = arith.addf %943, %944 : vector<16x128xf32>
    %946 = arith.maximumf %937, %945 : vector<16x128xf32>
    %947 = vector.extract_strided_slice %889 {offsets = [0, 6], sizes = [16, 1], strides = [1, 1]} : vector<16x16xf32> to vector<16x1xf32>
    %948 = vector.extract_strided_slice %892 {offsets = [0, 6], sizes = [16, 1], strides = [1, 1]} : vector<16x16xf32> to vector<16x1xf32>
    %949 = vector.extract_strided_slice %882 {offsets = [6, 0], sizes = [1, 128], strides = [1, 1]} : vector<16x128xf32> to vector<1x128xf32>
    %950 = vector.broadcast %947 : vector<16x1xf32> to vector<16x128xf32>
    %951 = vector.broadcast %949 : vector<1x128xf32> to vector<16x128xf32>
    %952 = arith.mulf %950, %951 : vector<16x128xf32>
    %953 = vector.broadcast %948 : vector<16x1xf32> to vector<16x128xf32>
    %954 = arith.addf %952, %953 : vector<16x128xf32>
    %955 = arith.maximumf %946, %954 : vector<16x128xf32>
    %956 = vector.extract_strided_slice %889 {offsets = [0, 7], sizes = [16, 1], strides = [1, 1]} : vector<16x16xf32> to vector<16x1xf32>
    %957 = vector.extract_strided_slice %892 {offsets = [0, 7], sizes = [16, 1], strides = [1, 1]} : vector<16x16xf32> to vector<16x1xf32>
    %958 = vector.extract_strided_slice %882 {offsets = [7, 0], sizes = [1, 128], strides = [1, 1]} : vector<16x128xf32> to vector<1x128xf32>
    %959 = vector.broadcast %956 : vector<16x1xf32> to vector<16x128xf32>
    %960 = vector.broadcast %958 : vector<1x128xf32> to vector<16x128xf32>
    %961 = arith.mulf %959, %960 : vector<16x128xf32>
    %962 = vector.broadcast %957 : vector<16x1xf32> to vector<16x128xf32>
    %963 = arith.addf %961, %962 : vector<16x128xf32>
    %964 = arith.maximumf %955, %963 : vector<16x128xf32>
    %965 = vector.extract_strided_slice %889 {offsets = [0, 8], sizes = [16, 1], strides = [1, 1]} : vector<16x16xf32> to vector<16x1xf32>
    %966 = vector.extract_strided_slice %892 {offsets = [0, 8], sizes = [16, 1], strides = [1, 1]} : vector<16x16xf32> to vector<16x1xf32>
    %967 = vector.extract_strided_slice %882 {offsets = [8, 0], sizes = [1, 128], strides = [1, 1]} : vector<16x128xf32> to vector<1x128xf32>
    %968 = vector.broadcast %965 : vector<16x1xf32> to vector<16x128xf32>
    %969 = vector.broadcast %967 : vector<1x128xf32> to vector<16x128xf32>
    %970 = arith.mulf %968, %969 : vector<16x128xf32>
    %971 = vector.broadcast %966 : vector<16x1xf32> to vector<16x128xf32>
    %972 = arith.addf %970, %971 : vector<16x128xf32>
    %973 = arith.maximumf %964, %972 : vector<16x128xf32>
    %974 = vector.extract_strided_slice %889 {offsets = [0, 9], sizes = [16, 1], strides = [1, 1]} : vector<16x16xf32> to vector<16x1xf32>
    %975 = vector.extract_strided_slice %892 {offsets = [0, 9], sizes = [16, 1], strides = [1, 1]} : vector<16x16xf32> to vector<16x1xf32>
    %976 = vector.extract_strided_slice %882 {offsets = [9, 0], sizes = [1, 128], strides = [1, 1]} : vector<16x128xf32> to vector<1x128xf32>
    %977 = vector.broadcast %974 : vector<16x1xf32> to vector<16x128xf32>
    %978 = vector.broadcast %976 : vector<1x128xf32> to vector<16x128xf32>
    %979 = arith.mulf %977, %978 : vector<16x128xf32>
    %980 = vector.broadcast %975 : vector<16x1xf32> to vector<16x128xf32>
    %981 = arith.addf %979, %980 : vector<16x128xf32>
    %982 = arith.maximumf %973, %981 : vector<16x128xf32>
    %983 = vector.extract_strided_slice %889 {offsets = [0, 10], sizes = [16, 1], strides = [1, 1]} : vector<16x16xf32> to vector<16x1xf32>
    %984 = vector.extract_strided_slice %892 {offsets = [0, 10], sizes = [16, 1], strides = [1, 1]} : vector<16x16xf32> to vector<16x1xf32>
    %985 = vector.extract_strided_slice %882 {offsets = [10, 0], sizes = [1, 128], strides = [1, 1]} : vector<16x128xf32> to vector<1x128xf32>
    %986 = vector.broadcast %983 : vector<16x1xf32> to vector<16x128xf32>
    %987 = vector.broadcast %985 : vector<1x128xf32> to vector<16x128xf32>
    %988 = arith.mulf %986, %987 : vector<16x128xf32>
    %989 = vector.broadcast %984 : vector<16x1xf32> to vector<16x128xf32>
    %990 = arith.addf %988, %989 : vector<16x128xf32>
    %991 = arith.maximumf %982, %990 : vector<16x128xf32>
    %992 = vector.extract_strided_slice %889 {offsets = [0, 11], sizes = [16, 1], strides = [1, 1]} : vector<16x16xf32> to vector<16x1xf32>
    %993 = vector.extract_strided_slice %892 {offsets = [0, 11], sizes = [16, 1], strides = [1, 1]} : vector<16x16xf32> to vector<16x1xf32>
    %994 = vector.extract_strided_slice %882 {offsets = [11, 0], sizes = [1, 128], strides = [1, 1]} : vector<16x128xf32> to vector<1x128xf32>
    %995 = vector.broadcast %992 : vector<16x1xf32> to vector<16x128xf32>
    %996 = vector.broadcast %994 : vector<1x128xf32> to vector<16x128xf32>
    %997 = arith.mulf %995, %996 : vector<16x128xf32>
    %998 = vector.broadcast %993 : vector<16x1xf32> to vector<16x128xf32>
    %999 = arith.addf %997, %998 : vector<16x128xf32>
    %1000 = arith.maximumf %991, %999 : vector<16x128xf32>
    %1001 = vector.extract_strided_slice %889 {offsets = [0, 12], sizes = [16, 1], strides = [1, 1]} : vector<16x16xf32> to vector<16x1xf32>
    %1002 = vector.extract_strided_slice %892 {offsets = [0, 12], sizes = [16, 1], strides = [1, 1]} : vector<16x16xf32> to vector<16x1xf32>
    %1003 = vector.extract_strided_slice %882 {offsets = [12, 0], sizes = [1, 128], strides = [1, 1]} : vector<16x128xf32> to vector<1x128xf32>
    %1004 = vector.broadcast %1001 : vector<16x1xf32> to vector<16x128xf32>
    %1005 = vector.broadcast %1003 : vector<1x128xf32> to vector<16x128xf32>
    %1006 = arith.mulf %1004, %1005 : vector<16x128xf32>
    %1007 = vector.broadcast %1002 : vector<16x1xf32> to vector<16x128xf32>
    %1008 = arith.addf %1006, %1007 : vector<16x128xf32>
    %1009 = arith.maximumf %1000, %1008 : vector<16x128xf32>
    %1010 = vector.extract_strided_slice %889 {offsets = [0, 13], sizes = [16, 1], strides = [1, 1]} : vector<16x16xf32> to vector<16x1xf32>
    %1011 = vector.extract_strided_slice %892 {offsets = [0, 13], sizes = [16, 1], strides = [1, 1]} : vector<16x16xf32> to vector<16x1xf32>
    %1012 = vector.extract_strided_slice %882 {offsets = [13, 0], sizes = [1, 128], strides = [1, 1]} : vector<16x128xf32> to vector<1x128xf32>
    %1013 = vector.broadcast %1010 : vector<16x1xf32> to vector<16x128xf32>
    %1014 = vector.broadcast %1012 : vector<1x128xf32> to vector<16x128xf32>
    %1015 = arith.mulf %1013, %1014 : vector<16x128xf32>
    %1016 = vector.broadcast %1011 : vector<16x1xf32> to vector<16x128xf32>
    %1017 = arith.addf %1015, %1016 : vector<16x128xf32>
    %1018 = arith.maximumf %1009, %1017 : vector<16x128xf32>
    %1019 = vector.extract_strided_slice %889 {offsets = [0, 14], sizes = [16, 1], strides = [1, 1]} : vector<16x16xf32> to vector<16x1xf32>
    %1020 = vector.extract_strided_slice %892 {offsets = [0, 14], sizes = [16, 1], strides = [1, 1]} : vector<16x16xf32> to vector<16x1xf32>
    %1021 = vector.extract_strided_slice %882 {offsets = [14, 0], sizes = [1, 128], strides = [1, 1]} : vector<16x128xf32> to vector<1x128xf32>
    %1022 = vector.broadcast %1019 : vector<16x1xf32> to vector<16x128xf32>
    %1023 = vector.broadcast %1021 : vector<1x128xf32> to vector<16x128xf32>
    %1024 = arith.mulf %1022, %1023 : vector<16x128xf32>
    %1025 = vector.broadcast %1020 : vector<16x1xf32> to vector<16x128xf32>
    %1026 = arith.addf %1024, %1025 : vector<16x128xf32>
    %1027 = arith.maximumf %1018, %1026 : vector<16x128xf32>
    %1028 = vector.extract_strided_slice %889 {offsets = [0, 15], sizes = [16, 1], strides = [1, 1]} : vector<16x16xf32> to vector<16x1xf32>
    %1029 = vector.extract_strided_slice %892 {offsets = [0, 15], sizes = [16, 1], strides = [1, 1]} : vector<16x16xf32> to vector<16x1xf32>
    %1030 = vector.extract_strided_slice %882 {offsets = [15, 0], sizes = [1, 128], strides = [1, 1]} : vector<16x128xf32> to vector<1x128xf32>
    %1031 = vector.broadcast %1028 : vector<16x1xf32> to vector<16x128xf32>
    %1032 = vector.broadcast %1030 : vector<1x128xf32> to vector<16x128xf32>
    %1033 = arith.mulf %1031, %1032 : vector<16x128xf32>
    %1034 = vector.broadcast %1029 : vector<16x1xf32> to vector<16x128xf32>
    %1035 = arith.addf %1033, %1034 : vector<16x128xf32>
    %1036 = arith.maximumf %1027, %1035 : vector<16x128xf32>
    %cst_66 = arith.constant -9.99999968E+37 : f32
    %1037 = vector.broadcast %cst_66 : f32 to vector<16x128xf32>
    %1038 = arith.cmpf ogt, %1036, %1037 : vector<16x128xf32>
    %cst_67 = arith.constant 0.000000e+00 : f32
    %1039 = vector.broadcast %cst_67 : f32 to vector<16x128xf32>
    %1040 = arith.select %1038, %1036, %1039 : vector<16x128xi1>, vector<16x128xf32>
    %1041 = vector.broadcast %0 : f32 to vector<16x128xf32>
    %1042 = arith.mulf %1041, %882 : vector<16x128xf32>
    %1043 = vector.broadcast %1 : f32 to vector<16x128xf32>
    %1044 = arith.mulf %1043, %1040 : vector<16x128xf32>
    %1045 = arith.addf %1042, %1044 : vector<16x128xf32>
    %cst_68 = arith.constant dense<0.000000e+00> : vector<128xf32>
    %1046 = vector.multi_reduction <add>, %1045, %cst_68 [0] : vector<16x128xf32> to vector<128xf32>
    %1047 = vector.shape_cast %1046 : vector<128xf32> to vector<1x128xf32>
    %1048 = vector.broadcast %c5_i32 : i32 to vector<8x1xi32>
    %1049 = arith.cmpi eq, %3, %1048 : vector<8x1xi32>
    %1050 = vector.shape_cast %1049 : vector<8x1xi1> to vector<8x1xi1>
    %1051 = vector.broadcast %1050 : vector<8x1xi1> to vector<8x128xi1>
    %1052 = vector.shape_cast %1047 : vector<1x128xf32> to vector<1x128xf32>
    %1053 = vector.broadcast %1052 : vector<1x128xf32> to vector<8x128xf32>
    %1054 = arith.select %1051, %1053, %879 : vector<8x128xi1>, vector<8x128xf32>
    %c6_i32 = arith.constant 6 : i32
    %1055 = arith.index_cast %c6_i32 : i32 to index
    %c0_69 = arith.constant 0 : index
    %c0_70 = arith.constant 0 : index
    %1056 = vector.load %arg2[%1055, %c0_69, %c0_70] : memref<8x16x128xf32, #tpu.memory_space<vmem>>, vector<1x16x128xf32>
    %1057 = vector.shape_cast %1056 : vector<1x16x128xf32> to vector<16x128xf32>
    %1058 = arith.index_cast %c6_i32 : i32 to index
    %c0_71 = arith.constant 0 : index
    %c0_72 = arith.constant 0 : index
    %1059 = vector.load %arg3[%1058, %c0_71, %c0_72] : memref<8x16x16xf32, #tpu.memory_space<vmem>>, vector<1x16x16xf32>
    %1060 = vector.shape_cast %1059 : vector<1x16x16xf32> to vector<16x16xf32>
    %1061 = arith.cmpf one, %1060, %1060 : vector<16x16xf32>
    %cst_73 = arith.constant dense<true> : vector<16x16xi1>
    %1062 = arith.xori %1061, %cst_73 : vector<16x16xi1>
    %cst_74 = arith.constant 0.000000e+00 : f32
    %1063 = vector.broadcast %cst_74 : f32 to vector<16x16xf32>
    %1064 = arith.select %1062, %1060, %1063 : vector<16x16xi1>, vector<16x16xf32>
    %cst_75 = arith.constant 0.000000e+00 : f32
    %cst_76 = arith.constant -3.400000e+38 : f32
    %1065 = vector.broadcast %cst_75 : f32 to vector<16x16xf32>
    %1066 = vector.broadcast %cst_76 : f32 to vector<16x16xf32>
    %1067 = arith.select %1062, %1065, %1066 : vector<16x16xi1>, vector<16x16xf32>
    %1068 = vector.extract_strided_slice %1064 {offsets = [0, 0], sizes = [16, 1], strides = [1, 1]} : vector<16x16xf32> to vector<16x1xf32>
    %1069 = vector.extract_strided_slice %1067 {offsets = [0, 0], sizes = [16, 1], strides = [1, 1]} : vector<16x16xf32> to vector<16x1xf32>
    %1070 = vector.extract_strided_slice %1057 {offsets = [0, 0], sizes = [1, 128], strides = [1, 1]} : vector<16x128xf32> to vector<1x128xf32>
    %1071 = vector.broadcast %1068 : vector<16x1xf32> to vector<16x128xf32>
    %1072 = vector.broadcast %1070 : vector<1x128xf32> to vector<16x128xf32>
    %1073 = arith.mulf %1071, %1072 : vector<16x128xf32>
    %1074 = vector.broadcast %1069 : vector<16x1xf32> to vector<16x128xf32>
    %1075 = arith.addf %1073, %1074 : vector<16x128xf32>
    %1076 = arith.maximumf %2, %1075 : vector<16x128xf32>
    %1077 = vector.extract_strided_slice %1064 {offsets = [0, 1], sizes = [16, 1], strides = [1, 1]} : vector<16x16xf32> to vector<16x1xf32>
    %1078 = vector.extract_strided_slice %1067 {offsets = [0, 1], sizes = [16, 1], strides = [1, 1]} : vector<16x16xf32> to vector<16x1xf32>
    %1079 = vector.extract_strided_slice %1057 {offsets = [1, 0], sizes = [1, 128], strides = [1, 1]} : vector<16x128xf32> to vector<1x128xf32>
    %1080 = vector.broadcast %1077 : vector<16x1xf32> to vector<16x128xf32>
    %1081 = vector.broadcast %1079 : vector<1x128xf32> to vector<16x128xf32>
    %1082 = arith.mulf %1080, %1081 : vector<16x128xf32>
    %1083 = vector.broadcast %1078 : vector<16x1xf32> to vector<16x128xf32>
    %1084 = arith.addf %1082, %1083 : vector<16x128xf32>
    %1085 = arith.maximumf %1076, %1084 : vector<16x128xf32>
    %1086 = vector.extract_strided_slice %1064 {offsets = [0, 2], sizes = [16, 1], strides = [1, 1]} : vector<16x16xf32> to vector<16x1xf32>
    %1087 = vector.extract_strided_slice %1067 {offsets = [0, 2], sizes = [16, 1], strides = [1, 1]} : vector<16x16xf32> to vector<16x1xf32>
    %1088 = vector.extract_strided_slice %1057 {offsets = [2, 0], sizes = [1, 128], strides = [1, 1]} : vector<16x128xf32> to vector<1x128xf32>
    %1089 = vector.broadcast %1086 : vector<16x1xf32> to vector<16x128xf32>
    %1090 = vector.broadcast %1088 : vector<1x128xf32> to vector<16x128xf32>
    %1091 = arith.mulf %1089, %1090 : vector<16x128xf32>
    %1092 = vector.broadcast %1087 : vector<16x1xf32> to vector<16x128xf32>
    %1093 = arith.addf %1091, %1092 : vector<16x128xf32>
    %1094 = arith.maximumf %1085, %1093 : vector<16x128xf32>
    %1095 = vector.extract_strided_slice %1064 {offsets = [0, 3], sizes = [16, 1], strides = [1, 1]} : vector<16x16xf32> to vector<16x1xf32>
    %1096 = vector.extract_strided_slice %1067 {offsets = [0, 3], sizes = [16, 1], strides = [1, 1]} : vector<16x16xf32> to vector<16x1xf32>
    %1097 = vector.extract_strided_slice %1057 {offsets = [3, 0], sizes = [1, 128], strides = [1, 1]} : vector<16x128xf32> to vector<1x128xf32>
    %1098 = vector.broadcast %1095 : vector<16x1xf32> to vector<16x128xf32>
    %1099 = vector.broadcast %1097 : vector<1x128xf32> to vector<16x128xf32>
    %1100 = arith.mulf %1098, %1099 : vector<16x128xf32>
    %1101 = vector.broadcast %1096 : vector<16x1xf32> to vector<16x128xf32>
    %1102 = arith.addf %1100, %1101 : vector<16x128xf32>
    %1103 = arith.maximumf %1094, %1102 : vector<16x128xf32>
    %1104 = vector.extract_strided_slice %1064 {offsets = [0, 4], sizes = [16, 1], strides = [1, 1]} : vector<16x16xf32> to vector<16x1xf32>
    %1105 = vector.extract_strided_slice %1067 {offsets = [0, 4], sizes = [16, 1], strides = [1, 1]} : vector<16x16xf32> to vector<16x1xf32>
    %1106 = vector.extract_strided_slice %1057 {offsets = [4, 0], sizes = [1, 128], strides = [1, 1]} : vector<16x128xf32> to vector<1x128xf32>
    %1107 = vector.broadcast %1104 : vector<16x1xf32> to vector<16x128xf32>
    %1108 = vector.broadcast %1106 : vector<1x128xf32> to vector<16x128xf32>
    %1109 = arith.mulf %1107, %1108 : vector<16x128xf32>
    %1110 = vector.broadcast %1105 : vector<16x1xf32> to vector<16x128xf32>
    %1111 = arith.addf %1109, %1110 : vector<16x128xf32>
    %1112 = arith.maximumf %1103, %1111 : vector<16x128xf32>
    %1113 = vector.extract_strided_slice %1064 {offsets = [0, 5], sizes = [16, 1], strides = [1, 1]} : vector<16x16xf32> to vector<16x1xf32>
    %1114 = vector.extract_strided_slice %1067 {offsets = [0, 5], sizes = [16, 1], strides = [1, 1]} : vector<16x16xf32> to vector<16x1xf32>
    %1115 = vector.extract_strided_slice %1057 {offsets = [5, 0], sizes = [1, 128], strides = [1, 1]} : vector<16x128xf32> to vector<1x128xf32>
    %1116 = vector.broadcast %1113 : vector<16x1xf32> to vector<16x128xf32>
    %1117 = vector.broadcast %1115 : vector<1x128xf32> to vector<16x128xf32>
    %1118 = arith.mulf %1116, %1117 : vector<16x128xf32>
    %1119 = vector.broadcast %1114 : vector<16x1xf32> to vector<16x128xf32>
    %1120 = arith.addf %1118, %1119 : vector<16x128xf32>
    %1121 = arith.maximumf %1112, %1120 : vector<16x128xf32>
    %1122 = vector.extract_strided_slice %1064 {offsets = [0, 6], sizes = [16, 1], strides = [1, 1]} : vector<16x16xf32> to vector<16x1xf32>
    %1123 = vector.extract_strided_slice %1067 {offsets = [0, 6], sizes = [16, 1], strides = [1, 1]} : vector<16x16xf32> to vector<16x1xf32>
    %1124 = vector.extract_strided_slice %1057 {offsets = [6, 0], sizes = [1, 128], strides = [1, 1]} : vector<16x128xf32> to vector<1x128xf32>
    %1125 = vector.broadcast %1122 : vector<16x1xf32> to vector<16x128xf32>
    %1126 = vector.broadcast %1124 : vector<1x128xf32> to vector<16x128xf32>
    %1127 = arith.mulf %1125, %1126 : vector<16x128xf32>
    %1128 = vector.broadcast %1123 : vector<16x1xf32> to vector<16x128xf32>
    %1129 = arith.addf %1127, %1128 : vector<16x128xf32>
    %1130 = arith.maximumf %1121, %1129 : vector<16x128xf32>
    %1131 = vector.extract_strided_slice %1064 {offsets = [0, 7], sizes = [16, 1], strides = [1, 1]} : vector<16x16xf32> to vector<16x1xf32>
    %1132 = vector.extract_strided_slice %1067 {offsets = [0, 7], sizes = [16, 1], strides = [1, 1]} : vector<16x16xf32> to vector<16x1xf32>
    %1133 = vector.extract_strided_slice %1057 {offsets = [7, 0], sizes = [1, 128], strides = [1, 1]} : vector<16x128xf32> to vector<1x128xf32>
    %1134 = vector.broadcast %1131 : vector<16x1xf32> to vector<16x128xf32>
    %1135 = vector.broadcast %1133 : vector<1x128xf32> to vector<16x128xf32>
    %1136 = arith.mulf %1134, %1135 : vector<16x128xf32>
    %1137 = vector.broadcast %1132 : vector<16x1xf32> to vector<16x128xf32>
    %1138 = arith.addf %1136, %1137 : vector<16x128xf32>
    %1139 = arith.maximumf %1130, %1138 : vector<16x128xf32>
    %1140 = vector.extract_strided_slice %1064 {offsets = [0, 8], sizes = [16, 1], strides = [1, 1]} : vector<16x16xf32> to vector<16x1xf32>
    %1141 = vector.extract_strided_slice %1067 {offsets = [0, 8], sizes = [16, 1], strides = [1, 1]} : vector<16x16xf32> to vector<16x1xf32>
    %1142 = vector.extract_strided_slice %1057 {offsets = [8, 0], sizes = [1, 128], strides = [1, 1]} : vector<16x128xf32> to vector<1x128xf32>
    %1143 = vector.broadcast %1140 : vector<16x1xf32> to vector<16x128xf32>
    %1144 = vector.broadcast %1142 : vector<1x128xf32> to vector<16x128xf32>
    %1145 = arith.mulf %1143, %1144 : vector<16x128xf32>
    %1146 = vector.broadcast %1141 : vector<16x1xf32> to vector<16x128xf32>
    %1147 = arith.addf %1145, %1146 : vector<16x128xf32>
    %1148 = arith.maximumf %1139, %1147 : vector<16x128xf32>
    %1149 = vector.extract_strided_slice %1064 {offsets = [0, 9], sizes = [16, 1], strides = [1, 1]} : vector<16x16xf32> to vector<16x1xf32>
    %1150 = vector.extract_strided_slice %1067 {offsets = [0, 9], sizes = [16, 1], strides = [1, 1]} : vector<16x16xf32> to vector<16x1xf32>
    %1151 = vector.extract_strided_slice %1057 {offsets = [9, 0], sizes = [1, 128], strides = [1, 1]} : vector<16x128xf32> to vector<1x128xf32>
    %1152 = vector.broadcast %1149 : vector<16x1xf32> to vector<16x128xf32>
    %1153 = vector.broadcast %1151 : vector<1x128xf32> to vector<16x128xf32>
    %1154 = arith.mulf %1152, %1153 : vector<16x128xf32>
    %1155 = vector.broadcast %1150 : vector<16x1xf32> to vector<16x128xf32>
    %1156 = arith.addf %1154, %1155 : vector<16x128xf32>
    %1157 = arith.maximumf %1148, %1156 : vector<16x128xf32>
    %1158 = vector.extract_strided_slice %1064 {offsets = [0, 10], sizes = [16, 1], strides = [1, 1]} : vector<16x16xf32> to vector<16x1xf32>
    %1159 = vector.extract_strided_slice %1067 {offsets = [0, 10], sizes = [16, 1], strides = [1, 1]} : vector<16x16xf32> to vector<16x1xf32>
    %1160 = vector.extract_strided_slice %1057 {offsets = [10, 0], sizes = [1, 128], strides = [1, 1]} : vector<16x128xf32> to vector<1x128xf32>
    %1161 = vector.broadcast %1158 : vector<16x1xf32> to vector<16x128xf32>
    %1162 = vector.broadcast %1160 : vector<1x128xf32> to vector<16x128xf32>
    %1163 = arith.mulf %1161, %1162 : vector<16x128xf32>
    %1164 = vector.broadcast %1159 : vector<16x1xf32> to vector<16x128xf32>
    %1165 = arith.addf %1163, %1164 : vector<16x128xf32>
    %1166 = arith.maximumf %1157, %1165 : vector<16x128xf32>
    %1167 = vector.extract_strided_slice %1064 {offsets = [0, 11], sizes = [16, 1], strides = [1, 1]} : vector<16x16xf32> to vector<16x1xf32>
    %1168 = vector.extract_strided_slice %1067 {offsets = [0, 11], sizes = [16, 1], strides = [1, 1]} : vector<16x16xf32> to vector<16x1xf32>
    %1169 = vector.extract_strided_slice %1057 {offsets = [11, 0], sizes = [1, 128], strides = [1, 1]} : vector<16x128xf32> to vector<1x128xf32>
    %1170 = vector.broadcast %1167 : vector<16x1xf32> to vector<16x128xf32>
    %1171 = vector.broadcast %1169 : vector<1x128xf32> to vector<16x128xf32>
    %1172 = arith.mulf %1170, %1171 : vector<16x128xf32>
    %1173 = vector.broadcast %1168 : vector<16x1xf32> to vector<16x128xf32>
    %1174 = arith.addf %1172, %1173 : vector<16x128xf32>
    %1175 = arith.maximumf %1166, %1174 : vector<16x128xf32>
    %1176 = vector.extract_strided_slice %1064 {offsets = [0, 12], sizes = [16, 1], strides = [1, 1]} : vector<16x16xf32> to vector<16x1xf32>
    %1177 = vector.extract_strided_slice %1067 {offsets = [0, 12], sizes = [16, 1], strides = [1, 1]} : vector<16x16xf32> to vector<16x1xf32>
    %1178 = vector.extract_strided_slice %1057 {offsets = [12, 0], sizes = [1, 128], strides = [1, 1]} : vector<16x128xf32> to vector<1x128xf32>
    %1179 = vector.broadcast %1176 : vector<16x1xf32> to vector<16x128xf32>
    %1180 = vector.broadcast %1178 : vector<1x128xf32> to vector<16x128xf32>
    %1181 = arith.mulf %1179, %1180 : vector<16x128xf32>
    %1182 = vector.broadcast %1177 : vector<16x1xf32> to vector<16x128xf32>
    %1183 = arith.addf %1181, %1182 : vector<16x128xf32>
    %1184 = arith.maximumf %1175, %1183 : vector<16x128xf32>
    %1185 = vector.extract_strided_slice %1064 {offsets = [0, 13], sizes = [16, 1], strides = [1, 1]} : vector<16x16xf32> to vector<16x1xf32>
    %1186 = vector.extract_strided_slice %1067 {offsets = [0, 13], sizes = [16, 1], strides = [1, 1]} : vector<16x16xf32> to vector<16x1xf32>
    %1187 = vector.extract_strided_slice %1057 {offsets = [13, 0], sizes = [1, 128], strides = [1, 1]} : vector<16x128xf32> to vector<1x128xf32>
    %1188 = vector.broadcast %1185 : vector<16x1xf32> to vector<16x128xf32>
    %1189 = vector.broadcast %1187 : vector<1x128xf32> to vector<16x128xf32>
    %1190 = arith.mulf %1188, %1189 : vector<16x128xf32>
    %1191 = vector.broadcast %1186 : vector<16x1xf32> to vector<16x128xf32>
    %1192 = arith.addf %1190, %1191 : vector<16x128xf32>
    %1193 = arith.maximumf %1184, %1192 : vector<16x128xf32>
    %1194 = vector.extract_strided_slice %1064 {offsets = [0, 14], sizes = [16, 1], strides = [1, 1]} : vector<16x16xf32> to vector<16x1xf32>
    %1195 = vector.extract_strided_slice %1067 {offsets = [0, 14], sizes = [16, 1], strides = [1, 1]} : vector<16x16xf32> to vector<16x1xf32>
    %1196 = vector.extract_strided_slice %1057 {offsets = [14, 0], sizes = [1, 128], strides = [1, 1]} : vector<16x128xf32> to vector<1x128xf32>
    %1197 = vector.broadcast %1194 : vector<16x1xf32> to vector<16x128xf32>
    %1198 = vector.broadcast %1196 : vector<1x128xf32> to vector<16x128xf32>
    %1199 = arith.mulf %1197, %1198 : vector<16x128xf32>
    %1200 = vector.broadcast %1195 : vector<16x1xf32> to vector<16x128xf32>
    %1201 = arith.addf %1199, %1200 : vector<16x128xf32>
    %1202 = arith.maximumf %1193, %1201 : vector<16x128xf32>
    %1203 = vector.extract_strided_slice %1064 {offsets = [0, 15], sizes = [16, 1], strides = [1, 1]} : vector<16x16xf32> to vector<16x1xf32>
    %1204 = vector.extract_strided_slice %1067 {offsets = [0, 15], sizes = [16, 1], strides = [1, 1]} : vector<16x16xf32> to vector<16x1xf32>
    %1205 = vector.extract_strided_slice %1057 {offsets = [15, 0], sizes = [1, 128], strides = [1, 1]} : vector<16x128xf32> to vector<1x128xf32>
    %1206 = vector.broadcast %1203 : vector<16x1xf32> to vector<16x128xf32>
    %1207 = vector.broadcast %1205 : vector<1x128xf32> to vector<16x128xf32>
    %1208 = arith.mulf %1206, %1207 : vector<16x128xf32>
    %1209 = vector.broadcast %1204 : vector<16x1xf32> to vector<16x128xf32>
    %1210 = arith.addf %1208, %1209 : vector<16x128xf32>
    %1211 = arith.maximumf %1202, %1210 : vector<16x128xf32>
    %cst_77 = arith.constant -9.99999968E+37 : f32
    %1212 = vector.broadcast %cst_77 : f32 to vector<16x128xf32>
    %1213 = arith.cmpf ogt, %1211, %1212 : vector<16x128xf32>
    %cst_78 = arith.constant 0.000000e+00 : f32
    %1214 = vector.broadcast %cst_78 : f32 to vector<16x128xf32>
    %1215 = arith.select %1213, %1211, %1214 : vector<16x128xi1>, vector<16x128xf32>
    %1216 = vector.broadcast %0 : f32 to vector<16x128xf32>
    %1217 = arith.mulf %1216, %1057 : vector<16x128xf32>
    %1218 = vector.broadcast %1 : f32 to vector<16x128xf32>
    %1219 = arith.mulf %1218, %1215 : vector<16x128xf32>
    %1220 = arith.addf %1217, %1219 : vector<16x128xf32>
    %cst_79 = arith.constant dense<0.000000e+00> : vector<128xf32>
    %1221 = vector.multi_reduction <add>, %1220, %cst_79 [0] : vector<16x128xf32> to vector<128xf32>
    %1222 = vector.shape_cast %1221 : vector<128xf32> to vector<1x128xf32>
    %1223 = vector.broadcast %c6_i32 : i32 to vector<8x1xi32>
    %1224 = arith.cmpi eq, %3, %1223 : vector<8x1xi32>
    %1225 = vector.shape_cast %1224 : vector<8x1xi1> to vector<8x1xi1>
    %1226 = vector.broadcast %1225 : vector<8x1xi1> to vector<8x128xi1>
    %1227 = vector.shape_cast %1222 : vector<1x128xf32> to vector<1x128xf32>
    %1228 = vector.broadcast %1227 : vector<1x128xf32> to vector<8x128xf32>
    %1229 = arith.select %1226, %1228, %1054 : vector<8x128xi1>, vector<8x128xf32>
    %c7_i32 = arith.constant 7 : i32
    %1230 = arith.index_cast %c7_i32 : i32 to index
    %c0_80 = arith.constant 0 : index
    %c0_81 = arith.constant 0 : index
    %1231 = vector.load %arg2[%1230, %c0_80, %c0_81] : memref<8x16x128xf32, #tpu.memory_space<vmem>>, vector<1x16x128xf32>
    %1232 = vector.shape_cast %1231 : vector<1x16x128xf32> to vector<16x128xf32>
    %1233 = arith.index_cast %c7_i32 : i32 to index
    %c0_82 = arith.constant 0 : index
    %c0_83 = arith.constant 0 : index
    %1234 = vector.load %arg3[%1233, %c0_82, %c0_83] : memref<8x16x16xf32, #tpu.memory_space<vmem>>, vector<1x16x16xf32>
    %1235 = vector.shape_cast %1234 : vector<1x16x16xf32> to vector<16x16xf32>
    %1236 = arith.cmpf one, %1235, %1235 : vector<16x16xf32>
    %cst_84 = arith.constant dense<true> : vector<16x16xi1>
    %1237 = arith.xori %1236, %cst_84 : vector<16x16xi1>
    %cst_85 = arith.constant 0.000000e+00 : f32
    %1238 = vector.broadcast %cst_85 : f32 to vector<16x16xf32>
    %1239 = arith.select %1237, %1235, %1238 : vector<16x16xi1>, vector<16x16xf32>
    %cst_86 = arith.constant 0.000000e+00 : f32
    %cst_87 = arith.constant -3.400000e+38 : f32
    %1240 = vector.broadcast %cst_86 : f32 to vector<16x16xf32>
    %1241 = vector.broadcast %cst_87 : f32 to vector<16x16xf32>
    %1242 = arith.select %1237, %1240, %1241 : vector<16x16xi1>, vector<16x16xf32>
    %1243 = vector.extract_strided_slice %1239 {offsets = [0, 0], sizes = [16, 1], strides = [1, 1]} : vector<16x16xf32> to vector<16x1xf32>
    %1244 = vector.extract_strided_slice %1242 {offsets = [0, 0], sizes = [16, 1], strides = [1, 1]} : vector<16x16xf32> to vector<16x1xf32>
    %1245 = vector.extract_strided_slice %1232 {offsets = [0, 0], sizes = [1, 128], strides = [1, 1]} : vector<16x128xf32> to vector<1x128xf32>
    %1246 = vector.broadcast %1243 : vector<16x1xf32> to vector<16x128xf32>
    %1247 = vector.broadcast %1245 : vector<1x128xf32> to vector<16x128xf32>
    %1248 = arith.mulf %1246, %1247 : vector<16x128xf32>
    %1249 = vector.broadcast %1244 : vector<16x1xf32> to vector<16x128xf32>
    %1250 = arith.addf %1248, %1249 : vector<16x128xf32>
    %1251 = arith.maximumf %2, %1250 : vector<16x128xf32>
    %1252 = vector.extract_strided_slice %1239 {offsets = [0, 1], sizes = [16, 1], strides = [1, 1]} : vector<16x16xf32> to vector<16x1xf32>
    %1253 = vector.extract_strided_slice %1242 {offsets = [0, 1], sizes = [16, 1], strides = [1, 1]} : vector<16x16xf32> to vector<16x1xf32>
    %1254 = vector.extract_strided_slice %1232 {offsets = [1, 0], sizes = [1, 128], strides = [1, 1]} : vector<16x128xf32> to vector<1x128xf32>
    %1255 = vector.broadcast %1252 : vector<16x1xf32> to vector<16x128xf32>
    %1256 = vector.broadcast %1254 : vector<1x128xf32> to vector<16x128xf32>
    %1257 = arith.mulf %1255, %1256 : vector<16x128xf32>
    %1258 = vector.broadcast %1253 : vector<16x1xf32> to vector<16x128xf32>
    %1259 = arith.addf %1257, %1258 : vector<16x128xf32>
    %1260 = arith.maximumf %1251, %1259 : vector<16x128xf32>
    %1261 = vector.extract_strided_slice %1239 {offsets = [0, 2], sizes = [16, 1], strides = [1, 1]} : vector<16x16xf32> to vector<16x1xf32>
    %1262 = vector.extract_strided_slice %1242 {offsets = [0, 2], sizes = [16, 1], strides = [1, 1]} : vector<16x16xf32> to vector<16x1xf32>
    %1263 = vector.extract_strided_slice %1232 {offsets = [2, 0], sizes = [1, 128], strides = [1, 1]} : vector<16x128xf32> to vector<1x128xf32>
    %1264 = vector.broadcast %1261 : vector<16x1xf32> to vector<16x128xf32>
    %1265 = vector.broadcast %1263 : vector<1x128xf32> to vector<16x128xf32>
    %1266 = arith.mulf %1264, %1265 : vector<16x128xf32>
    %1267 = vector.broadcast %1262 : vector<16x1xf32> to vector<16x128xf32>
    %1268 = arith.addf %1266, %1267 : vector<16x128xf32>
    %1269 = arith.maximumf %1260, %1268 : vector<16x128xf32>
    %1270 = vector.extract_strided_slice %1239 {offsets = [0, 3], sizes = [16, 1], strides = [1, 1]} : vector<16x16xf32> to vector<16x1xf32>
    %1271 = vector.extract_strided_slice %1242 {offsets = [0, 3], sizes = [16, 1], strides = [1, 1]} : vector<16x16xf32> to vector<16x1xf32>
    %1272 = vector.extract_strided_slice %1232 {offsets = [3, 0], sizes = [1, 128], strides = [1, 1]} : vector<16x128xf32> to vector<1x128xf32>
    %1273 = vector.broadcast %1270 : vector<16x1xf32> to vector<16x128xf32>
    %1274 = vector.broadcast %1272 : vector<1x128xf32> to vector<16x128xf32>
    %1275 = arith.mulf %1273, %1274 : vector<16x128xf32>
    %1276 = vector.broadcast %1271 : vector<16x1xf32> to vector<16x128xf32>
    %1277 = arith.addf %1275, %1276 : vector<16x128xf32>
    %1278 = arith.maximumf %1269, %1277 : vector<16x128xf32>
    %1279 = vector.extract_strided_slice %1239 {offsets = [0, 4], sizes = [16, 1], strides = [1, 1]} : vector<16x16xf32> to vector<16x1xf32>
    %1280 = vector.extract_strided_slice %1242 {offsets = [0, 4], sizes = [16, 1], strides = [1, 1]} : vector<16x16xf32> to vector<16x1xf32>
    %1281 = vector.extract_strided_slice %1232 {offsets = [4, 0], sizes = [1, 128], strides = [1, 1]} : vector<16x128xf32> to vector<1x128xf32>
    %1282 = vector.broadcast %1279 : vector<16x1xf32> to vector<16x128xf32>
    %1283 = vector.broadcast %1281 : vector<1x128xf32> to vector<16x128xf32>
    %1284 = arith.mulf %1282, %1283 : vector<16x128xf32>
    %1285 = vector.broadcast %1280 : vector<16x1xf32> to vector<16x128xf32>
    %1286 = arith.addf %1284, %1285 : vector<16x128xf32>
    %1287 = arith.maximumf %1278, %1286 : vector<16x128xf32>
    %1288 = vector.extract_strided_slice %1239 {offsets = [0, 5], sizes = [16, 1], strides = [1, 1]} : vector<16x16xf32> to vector<16x1xf32>
    %1289 = vector.extract_strided_slice %1242 {offsets = [0, 5], sizes = [16, 1], strides = [1, 1]} : vector<16x16xf32> to vector<16x1xf32>
    %1290 = vector.extract_strided_slice %1232 {offsets = [5, 0], sizes = [1, 128], strides = [1, 1]} : vector<16x128xf32> to vector<1x128xf32>
    %1291 = vector.broadcast %1288 : vector<16x1xf32> to vector<16x128xf32>
    %1292 = vector.broadcast %1290 : vector<1x128xf32> to vector<16x128xf32>
    %1293 = arith.mulf %1291, %1292 : vector<16x128xf32>
    %1294 = vector.broadcast %1289 : vector<16x1xf32> to vector<16x128xf32>
    %1295 = arith.addf %1293, %1294 : vector<16x128xf32>
    %1296 = arith.maximumf %1287, %1295 : vector<16x128xf32>
    %1297 = vector.extract_strided_slice %1239 {offsets = [0, 6], sizes = [16, 1], strides = [1, 1]} : vector<16x16xf32> to vector<16x1xf32>
    %1298 = vector.extract_strided_slice %1242 {offsets = [0, 6], sizes = [16, 1], strides = [1, 1]} : vector<16x16xf32> to vector<16x1xf32>
    %1299 = vector.extract_strided_slice %1232 {offsets = [6, 0], sizes = [1, 128], strides = [1, 1]} : vector<16x128xf32> to vector<1x128xf32>
    %1300 = vector.broadcast %1297 : vector<16x1xf32> to vector<16x128xf32>
    %1301 = vector.broadcast %1299 : vector<1x128xf32> to vector<16x128xf32>
    %1302 = arith.mulf %1300, %1301 : vector<16x128xf32>
    %1303 = vector.broadcast %1298 : vector<16x1xf32> to vector<16x128xf32>
    %1304 = arith.addf %1302, %1303 : vector<16x128xf32>
    %1305 = arith.maximumf %1296, %1304 : vector<16x128xf32>
    %1306 = vector.extract_strided_slice %1239 {offsets = [0, 7], sizes = [16, 1], strides = [1, 1]} : vector<16x16xf32> to vector<16x1xf32>
    %1307 = vector.extract_strided_slice %1242 {offsets = [0, 7], sizes = [16, 1], strides = [1, 1]} : vector<16x16xf32> to vector<16x1xf32>
    %1308 = vector.extract_strided_slice %1232 {offsets = [7, 0], sizes = [1, 128], strides = [1, 1]} : vector<16x128xf32> to vector<1x128xf32>
    %1309 = vector.broadcast %1306 : vector<16x1xf32> to vector<16x128xf32>
    %1310 = vector.broadcast %1308 : vector<1x128xf32> to vector<16x128xf32>
    %1311 = arith.mulf %1309, %1310 : vector<16x128xf32>
    %1312 = vector.broadcast %1307 : vector<16x1xf32> to vector<16x128xf32>
    %1313 = arith.addf %1311, %1312 : vector<16x128xf32>
    %1314 = arith.maximumf %1305, %1313 : vector<16x128xf32>
    %1315 = vector.extract_strided_slice %1239 {offsets = [0, 8], sizes = [16, 1], strides = [1, 1]} : vector<16x16xf32> to vector<16x1xf32>
    %1316 = vector.extract_strided_slice %1242 {offsets = [0, 8], sizes = [16, 1], strides = [1, 1]} : vector<16x16xf32> to vector<16x1xf32>
    %1317 = vector.extract_strided_slice %1232 {offsets = [8, 0], sizes = [1, 128], strides = [1, 1]} : vector<16x128xf32> to vector<1x128xf32>
    %1318 = vector.broadcast %1315 : vector<16x1xf32> to vector<16x128xf32>
    %1319 = vector.broadcast %1317 : vector<1x128xf32> to vector<16x128xf32>
    %1320 = arith.mulf %1318, %1319 : vector<16x128xf32>
    %1321 = vector.broadcast %1316 : vector<16x1xf32> to vector<16x128xf32>
    %1322 = arith.addf %1320, %1321 : vector<16x128xf32>
    %1323 = arith.maximumf %1314, %1322 : vector<16x128xf32>
    %1324 = vector.extract_strided_slice %1239 {offsets = [0, 9], sizes = [16, 1], strides = [1, 1]} : vector<16x16xf32> to vector<16x1xf32>
    %1325 = vector.extract_strided_slice %1242 {offsets = [0, 9], sizes = [16, 1], strides = [1, 1]} : vector<16x16xf32> to vector<16x1xf32>
    %1326 = vector.extract_strided_slice %1232 {offsets = [9, 0], sizes = [1, 128], strides = [1, 1]} : vector<16x128xf32> to vector<1x128xf32>
    %1327 = vector.broadcast %1324 : vector<16x1xf32> to vector<16x128xf32>
    %1328 = vector.broadcast %1326 : vector<1x128xf32> to vector<16x128xf32>
    %1329 = arith.mulf %1327, %1328 : vector<16x128xf32>
    %1330 = vector.broadcast %1325 : vector<16x1xf32> to vector<16x128xf32>
    %1331 = arith.addf %1329, %1330 : vector<16x128xf32>
    %1332 = arith.maximumf %1323, %1331 : vector<16x128xf32>
    %1333 = vector.extract_strided_slice %1239 {offsets = [0, 10], sizes = [16, 1], strides = [1, 1]} : vector<16x16xf32> to vector<16x1xf32>
    %1334 = vector.extract_strided_slice %1242 {offsets = [0, 10], sizes = [16, 1], strides = [1, 1]} : vector<16x16xf32> to vector<16x1xf32>
    %1335 = vector.extract_strided_slice %1232 {offsets = [10, 0], sizes = [1, 128], strides = [1, 1]} : vector<16x128xf32> to vector<1x128xf32>
    %1336 = vector.broadcast %1333 : vector<16x1xf32> to vector<16x128xf32>
    %1337 = vector.broadcast %1335 : vector<1x128xf32> to vector<16x128xf32>
    %1338 = arith.mulf %1336, %1337 : vector<16x128xf32>
    %1339 = vector.broadcast %1334 : vector<16x1xf32> to vector<16x128xf32>
    %1340 = arith.addf %1338, %1339 : vector<16x128xf32>
    %1341 = arith.maximumf %1332, %1340 : vector<16x128xf32>
    %1342 = vector.extract_strided_slice %1239 {offsets = [0, 11], sizes = [16, 1], strides = [1, 1]} : vector<16x16xf32> to vector<16x1xf32>
    %1343 = vector.extract_strided_slice %1242 {offsets = [0, 11], sizes = [16, 1], strides = [1, 1]} : vector<16x16xf32> to vector<16x1xf32>
    %1344 = vector.extract_strided_slice %1232 {offsets = [11, 0], sizes = [1, 128], strides = [1, 1]} : vector<16x128xf32> to vector<1x128xf32>
    %1345 = vector.broadcast %1342 : vector<16x1xf32> to vector<16x128xf32>
    %1346 = vector.broadcast %1344 : vector<1x128xf32> to vector<16x128xf32>
    %1347 = arith.mulf %1345, %1346 : vector<16x128xf32>
    %1348 = vector.broadcast %1343 : vector<16x1xf32> to vector<16x128xf32>
    %1349 = arith.addf %1347, %1348 : vector<16x128xf32>
    %1350 = arith.maximumf %1341, %1349 : vector<16x128xf32>
    %1351 = vector.extract_strided_slice %1239 {offsets = [0, 12], sizes = [16, 1], strides = [1, 1]} : vector<16x16xf32> to vector<16x1xf32>
    %1352 = vector.extract_strided_slice %1242 {offsets = [0, 12], sizes = [16, 1], strides = [1, 1]} : vector<16x16xf32> to vector<16x1xf32>
    %1353 = vector.extract_strided_slice %1232 {offsets = [12, 0], sizes = [1, 128], strides = [1, 1]} : vector<16x128xf32> to vector<1x128xf32>
    %1354 = vector.broadcast %1351 : vector<16x1xf32> to vector<16x128xf32>
    %1355 = vector.broadcast %1353 : vector<1x128xf32> to vector<16x128xf32>
    %1356 = arith.mulf %1354, %1355 : vector<16x128xf32>
    %1357 = vector.broadcast %1352 : vector<16x1xf32> to vector<16x128xf32>
    %1358 = arith.addf %1356, %1357 : vector<16x128xf32>
    %1359 = arith.maximumf %1350, %1358 : vector<16x128xf32>
    %1360 = vector.extract_strided_slice %1239 {offsets = [0, 13], sizes = [16, 1], strides = [1, 1]} : vector<16x16xf32> to vector<16x1xf32>
    %1361 = vector.extract_strided_slice %1242 {offsets = [0, 13], sizes = [16, 1], strides = [1, 1]} : vector<16x16xf32> to vector<16x1xf32>
    %1362 = vector.extract_strided_slice %1232 {offsets = [13, 0], sizes = [1, 128], strides = [1, 1]} : vector<16x128xf32> to vector<1x128xf32>
    %1363 = vector.broadcast %1360 : vector<16x1xf32> to vector<16x128xf32>
    %1364 = vector.broadcast %1362 : vector<1x128xf32> to vector<16x128xf32>
    %1365 = arith.mulf %1363, %1364 : vector<16x128xf32>
    %1366 = vector.broadcast %1361 : vector<16x1xf32> to vector<16x128xf32>
    %1367 = arith.addf %1365, %1366 : vector<16x128xf32>
    %1368 = arith.maximumf %1359, %1367 : vector<16x128xf32>
    %1369 = vector.extract_strided_slice %1239 {offsets = [0, 14], sizes = [16, 1], strides = [1, 1]} : vector<16x16xf32> to vector<16x1xf32>
    %1370 = vector.extract_strided_slice %1242 {offsets = [0, 14], sizes = [16, 1], strides = [1, 1]} : vector<16x16xf32> to vector<16x1xf32>
    %1371 = vector.extract_strided_slice %1232 {offsets = [14, 0], sizes = [1, 128], strides = [1, 1]} : vector<16x128xf32> to vector<1x128xf32>
    %1372 = vector.broadcast %1369 : vector<16x1xf32> to vector<16x128xf32>
    %1373 = vector.broadcast %1371 : vector<1x128xf32> to vector<16x128xf32>
    %1374 = arith.mulf %1372, %1373 : vector<16x128xf32>
    %1375 = vector.broadcast %1370 : vector<16x1xf32> to vector<16x128xf32>
    %1376 = arith.addf %1374, %1375 : vector<16x128xf32>
    %1377 = arith.maximumf %1368, %1376 : vector<16x128xf32>
    %1378 = vector.extract_strided_slice %1239 {offsets = [0, 15], sizes = [16, 1], strides = [1, 1]} : vector<16x16xf32> to vector<16x1xf32>
    %1379 = vector.extract_strided_slice %1242 {offsets = [0, 15], sizes = [16, 1], strides = [1, 1]} : vector<16x16xf32> to vector<16x1xf32>
    %1380 = vector.extract_strided_slice %1232 {offsets = [15, 0], sizes = [1, 128], strides = [1, 1]} : vector<16x128xf32> to vector<1x128xf32>
    %1381 = vector.broadcast %1378 : vector<16x1xf32> to vector<16x128xf32>
    %1382 = vector.broadcast %1380 : vector<1x128xf32> to vector<16x128xf32>
    %1383 = arith.mulf %1381, %1382 : vector<16x128xf32>
    %1384 = vector.broadcast %1379 : vector<16x1xf32> to vector<16x128xf32>
    %1385 = arith.addf %1383, %1384 : vector<16x128xf32>
    %1386 = arith.maximumf %1377, %1385 : vector<16x128xf32>
    %cst_88 = arith.constant -9.99999968E+37 : f32
    %1387 = vector.broadcast %cst_88 : f32 to vector<16x128xf32>
    %1388 = arith.cmpf ogt, %1386, %1387 : vector<16x128xf32>
    %cst_89 = arith.constant 0.000000e+00 : f32
    %1389 = vector.broadcast %cst_89 : f32 to vector<16x128xf32>
    %1390 = arith.select %1388, %1386, %1389 : vector<16x128xi1>, vector<16x128xf32>
    %1391 = vector.broadcast %0 : f32 to vector<16x128xf32>
    %1392 = arith.mulf %1391, %1232 : vector<16x128xf32>
    %1393 = vector.broadcast %1 : f32 to vector<16x128xf32>
    %1394 = arith.mulf %1393, %1390 : vector<16x128xf32>
    %1395 = arith.addf %1392, %1394 : vector<16x128xf32>
    %cst_90 = arith.constant dense<0.000000e+00> : vector<128xf32>
    %1396 = vector.multi_reduction <add>, %1395, %cst_90 [0] : vector<16x128xf32> to vector<128xf32>
    %1397 = vector.shape_cast %1396 : vector<128xf32> to vector<1x128xf32>
    %1398 = vector.broadcast %c7_i32 : i32 to vector<8x1xi32>
    %1399 = arith.cmpi eq, %3, %1398 : vector<8x1xi32>
    %1400 = vector.shape_cast %1399 : vector<8x1xi1> to vector<8x1xi1>
    %1401 = vector.broadcast %1400 : vector<8x1xi1> to vector<8x128xi1>
    %1402 = vector.shape_cast %1397 : vector<1x128xf32> to vector<1x128xf32>
    %1403 = vector.broadcast %1402 : vector<1x128xf32> to vector<8x128xf32>
    %1404 = arith.select %1401, %1403, %1229 : vector<8x128xi1>, vector<8x128xf32>
    %c8_i32 = arith.constant 8 : i32
    %cst_91 = arith.constant 0.000000e+00 : f32
    %1405 = vector.broadcast %cst_91 : f32 to vector<8x128xf32>
    %1406 = arith.maximumf %1404, %1405 : vector<8x128xf32>
    %c0_92 = arith.constant 0 : index
    %c0_93 = arith.constant 0 : index
    %1407 = vector.load %arg4[%c0_92, %c0_93] : memref<8x128xf32, #tpu.memory_space<vmem>>, vector<8x128xf32>
    tpu.vector_store %arg4[%c0_92, %c0_93], %1406 {strides = array<i32>} : memref<8x128xf32, #tpu.memory_space<vmem>>, vector<8x128xf32>,
    return
  }
  func.func @transform_0(%arg0: i32) -> (i32, i32) {
    %c0_i32 = arith.constant 0 : i32
    %c0_i32_0 = arith.constant 0 : i32
    %c0_i32_1 = arith.constant 0 : i32
    return %c0_i32, %c0_i32_0 : i32, i32
  }
  func.func @transform_1(%arg0: i32) -> (i32, i32, i32) {
    %c0_i32 = arith.constant 0 : i32
    %c0_i32_0 = arith.constant 0 : i32
    %c0_i32_1 = arith.constant 0 : i32
    return %arg0, %c0_i32, %c0_i32_0 : i32, i32, i32
  }
  func.func @transform_2(%arg0: i32) -> (i32, i32, i32) {
    %c0_i32 = arith.constant 0 : i32
    %c0_i32_0 = arith.constant 0 : i32
    %c0_i32_1 = arith.constant 0 : i32
    return %arg0, %c0_i32, %c0_i32_0 : i32, i32, i32
  }
  func.func @transform_3(%arg0: i32) -> (i32, i32) {
    %c0_i32 = arith.constant 0 : i32
    %c0_i32_0 = arith.constant 0 : i32
    return %arg0, %c0_i32 : i32, i32
  }
}

</mosaic_0001>

<llo_original>
// kernel: tpu_custom_call.1
$region0: #{tpu_custom_call.1}
  #allocation0 [shape = 'u32[]', space=smem, size = 0x4, offset = 0x4, fixed_abs, tag = 'smem constant byte address 0x4 - core index']
  #allocation1 [shape = 'u32[72,128]{1,0:T(1,128)}', space=vmem, size = 0x9000, scoped, tag = 'internal scratch']
  #allocation2 [shape = 'f32[1,1]{1,0:T(1,128)S(6)}', space=smem, size = 0x200, scoped, tag = 'scoped memory for tpu_custom_call.1']
  %s0 = inlined_call_operand.<no memory space> [shape: f32[1,1], index: 0, kind: input, shape index: {}]
  %s1 = inlined_call_operand.vmem [shape: f32[32,16,128], index: 1, kind: input, shape index: {}]
  %s2 = inlined_call_operand.vmem [shape: f32[32,16,16], index: 2, kind: input, shape index: {}]
  %s3 = inlined_call_operand.hbm [shape: f32[32,128], index: 3, kind: output, shape index: {}]
  %s4 = sld [smem:[#allocation0]]
  $region45: #{tpu_custom_call.1} parent=0
    _
  %s6 = ssub.s32 1, %s4
  %s7 = scalar_select 0, %s6, %s4
  %8 = sst [smem:[#allocation2]] %s0
  $region1: #{tpu_custom_call.1} parent=0
    #allocation3 [shape = 'u8[8192]{0}', space=vmem, size = 0x2000, scoped, tag = 'output window, operand 0']
    #allocation4 [shape = 's32[2]{0}', space=sflag, size = 0x8, scoped, tag = 'scoped memory for tpu_custom_call.1']
    %9 = vsyncpa [#allocation4], 0
    %s10 = scalar_lea.sflag [#allocation4], 1
    %11 = vsyncpa %s10, 0
    loop: start=0, step=1, limit=6
    $region2: #{tpu_custom_call.1} parent=1 // loop_pre_header
      _
    $region3: #{tpu_custom_call.1} parent=1 // loop_header
      %s13 = sphi 0, %s17
      %p14 = scmp.ge.s32.totalorder %s13, 6
      %s21 = sphi 0, %s21
      %s23 = sphi 0, %s21
      %s24 = sphi 0, %s23
      %s38 = sphi 0, %s24
      %s44 = sphi 0, %s46
      %s47 = sphi 0, %s44
      %s48 = sphi 0, %s47
      %s64 = sphi 0, %s48
      %s70 = sphi 0, %s72
      %s73 = sphi 0, %s70
      %s74 = sphi 0, %s73
      %s90 = sphi 0, %s74
      %s96 = sphi 0, %s98
      %s99 = sphi 0, %s96
      %s100 = sphi 0, %s99
      %s116 = sphi 0, %s100
    $region4: #{tpu_custom_call.1} parent=1 // loop_header_branch
      %16 = sbr.rel (%p14) target = $region8
    $region5: #{tpu_custom_call.1} parent=1 // loop_body
      %s18 = ssub.s32 %s13, 1
      %s19 = ssub.s32 %s13, 2
      %s20 = sadd.s32 %s13, 1
      %s22 = sadd.s32 %s21, 1
      %p25 = scmp.eq.s32.totalorder %s13, 3
      %p26 = scmp.ne.s32.totalorder %s21, %s23
      %p27 = scmp.eq.s32.totalorder %s13, 0
      %p28 = por %p26, %p27
      %p29 = scmp.ne.s32.totalorder %s21, %s23
      %p30 = scmp.eq.s32.totalorder %s18, 3
      %p31 = por %p29, %p30
      %p32 = scmp.ne.s32.totalorder %s23, %s24
      %p33 = scmp.eq.s32.totalorder %s18, 0
      %p34 = por %p32, %p33
      %p35 = scmp.ne.s32.totalorder %s23, %s24
      %p36 = scmp.eq.s32.totalorder %s19, 3
      %p37 = por %p35, %p36
      %p39 = scmp.ne.s32.totalorder %s24, %s38
      %p40 = scmp.eq.s32.totalorder %s19, 0
      %p41 = por %p39, %p40
      %s42 = ssub.s32 %s13, %s20
      %p43 = scmp.eq.s32.totalorder %s42, 0
      %s45 = sadd.s32 %s44, 1
      %s46 = scalar_select %p43, %s44, %s45
      %p49 = pneg %p43
      %p50 = scmp.eq.s32.totalorder %s13, 3
      %p51 = por %p49, %p50
      %p52 = scmp.ne.s32.totalorder %s44, %s47
      %p53 = scmp.eq.s32.totalorder %s13, 0
      %p54 = por %p52, %p53
      %p55 = scmp.ne.s32.totalorder %s44, %s47
      %p56 = scmp.eq.s32.totalorder %s18, 3
      %p57 = por %p55, %p56
      %p58 = scmp.ne.s32.totalorder %s47, %s48
      %p59 = scmp.eq.s32.totalorder %s18, 0
      %p60 = por %p58, %p59
      %p61 = scmp.ne.s32.totalorder %s47, %s48
      %p62 = scmp.eq.s32.totalorder %s19, 3
      %p63 = por %p61, %p62
      %p65 = scmp.ne.s32.totalorder %s48, %s64
      %p66 = scmp.eq.s32.totalorder %s19, 0
      %p67 = por %p65, %p66
      %s68 = ssub.s32 %s13, %s20
      %p69 = scmp.eq.s32.totalorder %s68, 0
      %s71 = sadd.s32 %s70, 1
      %s72 = scalar_select %p69, %s70, %s71
      %p75 = pneg %p69
      %p76 = scmp.eq.s32.totalorder %s13, 3
      %p77 = por %p75, %p76
      %p78 = scmp.ne.s32.totalorder %s70, %s73
      %p79 = scmp.eq.s32.totalorder %s13, 0
      %p80 = por %p78, %p79
      %p81 = scmp.ne.s32.totalorder %s70, %s73
      %p82 = scmp.eq.s32.totalorder %s18, 3
      %p83 = por %p81, %p82
      %p84 = scmp.ne.s32.totalorder %s73, %s74
      %p85 = scmp.eq.s32.totalorder %s18, 0
      %p86 = por %p84, %p85
      %p87 = scmp.ne.s32.totalorder %s73, %s74
      %p88 = scmp.eq.s32.totalorder %s19, 3
      %p89 = por %p87, %p88
      %p91 = scmp.ne.s32.totalorder %s74, %s90
      %p92 = scmp.eq.s32.totalorder %s19, 0
      %p93 = por %p91, %p92
      %s94 = ssub.s32 %s13, %s20
      %p95 = scmp.eq.s32.totalorder %s94, 0
      %s97 = sadd.s32 %s96, 1
      %s98 = scalar_select %p95, %s96, %s97
      %p101 = pneg %p95
      %p102 = scmp.eq.s32.totalorder %s13, 3
      %p103 = por %p101, %p102
      %p104 = scmp.ne.s32.totalorder %s96, %s99
      %p105 = scmp.eq.s32.totalorder %s13, 0
      %p106 = por %p104, %p105
      %p107 = scmp.ne.s32.totalorder %s96, %s99
      %p108 = scmp.eq.s32.totalorder %s18, 3
      %p109 = por %p107, %p108
      %p110 = scmp.ne.s32.totalorder %s99, %s100
      %p111 = scmp.eq.s32.totalorder %s18, 0
      %p112 = por %p110, %p111
      %p113 = scmp.ne.s32.totalorder %s99, %s100
      %p114 = scmp.eq.s32.totalorder %s19, 3
      %p115 = por %p113, %p114
      %p117 = scmp.ne.s32.totalorder %s100, %s116
      %p118 = scmp.eq.s32.totalorder %s19, 0
      %p119 = por %p117, %p118
      %p120 = scmp.le.s32.totalorder 1, %s13
      %p121 = scmp.lt.s32.totalorder %s13, 5
      %p122 = pnand %p120, %p121
      %p123 = pneg %p122
      // Predicated region
      $region9: #{tpu_custom_call.1} parent=5 // pred_check
        _
      $region10: #{tpu_custom_call.1} parent=5 // pred_check_branch
        %125 = sbr.rel (%p122) target = $region12
      $region11: #{tpu_custom_call.1} parent=5 // pred_region
        %s126 = ssub.s32 %s13, 1
        // Predicated region
        $region13: #{tpu_custom_call.1} parent=11 // pred_check
          %p127 = pneg %p34
        $region14: #{tpu_custom_call.1} parent=11 // pred_check_branch
          %129 = sbr.rel (%p127) target = $region16
        $region15: #{tpu_custom_call.1} parent=11 // pred_region
          _
        $region16: #{tpu_custom_call.1} parent=11 // pred_fallthru
          _
      $region12: #{tpu_custom_call.1} parent=5 // pred_fallthru
        _
      %p130 = scmp.lt.s32.totalorder %s13, 4
      // Predicated region
      $region17: #{tpu_custom_call.1} parent=5 // pred_check
        %p131 = pneg %p130
      $region18: #{tpu_custom_call.1} parent=5 // pred_check_branch
        %133 = sbr.rel (%p131) target = $region20
      $region19: #{tpu_custom_call.1} parent=5 // pred_region
        // Predicated region
        $region21: #{tpu_custom_call.1} parent=19 // pred_check
          %p134 = pneg %p54
        $region22: #{tpu_custom_call.1} parent=19 // pred_check_branch
          %136 = sbr.rel (%p134) target = $region24
        $region23: #{tpu_custom_call.1} parent=19 // pred_region
          %s137 = smul.u32 8, %s13
          %p138 = scmp.lt.s32.totalorder %s137, 31
          %s139 = scalar_select %p138, %s137, 31
          %s140 = smul.addr %s139, 2
          %s141 = smul.addr %s140, 8
          %s142 = scalar_lea.vmem %s1, %s141
          %s143 = smul.u32 8, %s13
        $region24: #{tpu_custom_call.1} parent=19 // pred_fallthru
          _
        // Predicated region
        $region25: #{tpu_custom_call.1} parent=19 // pred_check
          %p144 = pneg %p80
        $region26: #{tpu_custom_call.1} parent=19 // pred_check_branch
          %146 = sbr.rel (%p144) target = $region28
        $region27: #{tpu_custom_call.1} parent=19 // pred_region
          %s147 = smul.u32 8, %s13
          %p148 = scmp.lt.s32.totalorder %s147, 31
          %s149 = scalar_select %p148, %s147, 31
          %s150 = smul.addr %s149, 2
          %s151 = smul.addr %s150, 8
          %s152 = scalar_lea.vmem %s2, %s151
          %s153 = smul.u32 8, %s13
        $region28: #{tpu_custom_call.1} parent=19 // pred_fallthru
          _
      $region20: #{tpu_custom_call.1} parent=5 // pred_fallthru
        _
      %p154 = scmp.le.s32.totalorder 1, %s13
      %p155 = scmp.lt.s32.totalorder %s13, 5
      %p156 = pnand %p154, %p155
      %p157 = pneg %p156
      // Predicated region
      $region29: #{tpu_custom_call.1} parent=5 // pred_check
        _
      $region30: #{tpu_custom_call.1} parent=5 // pred_check_branch
        %159 = sbr.rel (%p156) target = $region32
      $region31: #{tpu_custom_call.1} parent=5 // pred_region
        %s160 = ssub.s32 %s13, 1
        %p161 = pneg %p34
        %p162 = pneg %p31
        %s163 = smul.u32 8, %s18
        %p164 = scmp.lt.s32.totalorder %s163, 31
        %s165 = scalar_select %p164, %s163, 31
        %s166 = smul.addr %s165, 2
        %s167 = smul.addr %s166, 8
        %s168 = scalar_lea.vmem %s1, %s167
        %p169 = pneg %p60
        %p170 = pneg %p57
        %s171 = smul.u32 8, %s18
        %p172 = scmp.lt.s32.totalorder %s171, 31
        %s173 = scalar_select %p172, %s171, 31
        %s174 = smul.addr %s173, 2
        %s175 = smul.addr %s174, 8
        %s176 = scalar_lea.vmem %s2, %s175
        %p177 = pneg %p86
        %p178 = pneg %p83
        %p179 = pneg %p112
        %p180 = pneg %p109
        %s181 = sand.u32 %s99, 1
        %s182 = scalar_lea.sflag [#allocation4], %s181
        %s183 = sand.u32 %s99, 1
        %s184 = smul.addr %s183, 8
        %s185 = scalar_lea.vmem [#allocation3], %s184
        %s186 = smul.u32 8, %s18
        %p187 = scmp.lt.s32.totalorder %s186, 31
        %s188 = scalar_select %p187, %s186, 31
        %s189 = smul.addr %s188, 2
        %s190 = smul.addr %s189, 8
        %s191 = scalar_lea.vmem %s1, %s190
        %s192 = smul.u32 8, %s18
        %s193 = smul.u32 8, %s18
        %p194 = scmp.lt.s32.totalorder %s193, 31
        %s195 = scalar_select %p194, %s193, 31
        %s196 = smul.addr %s195, 2
        %s197 = smul.addr %s196, 8
        %s198 = scalar_lea.vmem %s2, %s197
        %s199 = smul.u32 8, %s18
        %s200 = sld [smem:[#allocation2]]
        %s201 = ssub.f32 1.0, %s200
        %v202 = vlaneseq
        %v203 = vshrl.u32 %v202, 7
        %v204 = vld [vmem:[%s191] sm:$0xff]
        %v205 = vld [vmem:[%s191 + $0x8] sm:$0xff]
        %v206 = vld [vmem:[%s198] sm:$0xff]
        %v207 = vld [vmem:[%s198 + $0x8] sm:$0xff]
        %vm208 = vcmp.ne.f32.partialorder %v206, %v206
        %vm209 = vcmp.ne.f32.partialorder %v207, %v207
        %vm210 = vmxor %vm208, 1
        %vm211 = vmxor %vm209, 1
        %v212 = vsel %vm210, %v206, 0.0
        %v213 = vsel %vm211, %v207, 0.0
        %v214 = vsel %vm210, 0.0, -3.4e+38
        %v215 = vsel %vm211, 0.0, -3.4e+38
        %217 = vset.pattern.permute.xlu0 0
        %218 = vperm.xlu0 %217, %v212
        %v219 = vpop.permute.xlu0 %218
        %222 = vset.pattern.permute.xlu0 0
        %223 = vperm.xlu0 %222, %v213
        %v224 = vpop.permute.xlu0 %223
        %v226 = vperm.slane %v204, 0
        %v227 = vmul.f32 %v219, %v226
        %v228 = vmul.f32 %v224, %v226
        %230 = vset.pattern.permute.xlu0 0
        %231 = vperm.xlu0 %230, %v214
        %v232 = vpop.permute.xlu0 %231
        %235 = vset.pattern.permute.xlu0 0
        %236 = vperm.xlu0 %235, %v215
        %v237 = vpop.permute.xlu0 %236
        %v239 = vadd.f32 %v227, %v232
        %v240 = vadd.f32 %v228, %v237
        %v241 = vmax.f32 %v239, -3.4e+38
        %v242 = vmax.f32 %v240, -3.4e+38
        %243 = vset.pattern.permute.xlu0 1
        %244 = vperm.xlu0 %243, %v212
        %v245 = vpop.permute.xlu0 %244
        %247 = vset.pattern.permute.xlu0 1
        %248 = vperm.xlu0 %247, %v213
        %v249 = vpop.permute.xlu0 %248
        %v251 = vperm.slane %v204, 1
        %v252 = vmul.f32 %v245, %v251
        %v253 = vmul.f32 %v249, %v251
        %254 = vset.pattern.permute.xlu0 1
        %255 = vperm.xlu0 %254, %v214
        %v256 = vpop.permute.xlu0 %255
        %258 = vset.pattern.permute.xlu0 1
        %259 = vperm.xlu0 %258, %v215
        %v260 = vpop.permute.xlu0 %259
        %v262 = vadd.f32 %v252, %v256
        %v263 = vadd.f32 %v253, %v260
        %v264 = vmax.f32 %v241, %v262
        %v265 = vmax.f32 %v242, %v263
        %266 = vset.pattern.permute.xlu0 2
        %267 = vperm.xlu0 %266, %v212
        %v268 = vpop.permute.xlu0 %267
        %270 = vset.pattern.permute.xlu0 2
        %271 = vperm.xlu0 %270, %v213
        %v272 = vpop.permute.xlu0 %271
        %v274 = vperm.slane %v204, 2
        %v275 = vmul.f32 %v268, %v274
        %v276 = vmul.f32 %v272, %v274
        %277 = vset.pattern.permute.xlu0 2
        %278 = vperm.xlu0 %277, %v214
        %v279 = vpop.permute.xlu0 %278
        %281 = vset.pattern.permute.xlu0 2
        %282 = vperm.xlu0 %281, %v215
        %v283 = vpop.permute.xlu0 %282
        %v285 = vadd.f32 %v275, %v279
        %v286 = vadd.f32 %v276, %v283
        %v287 = vmax.f32 %v264, %v285
        %v288 = vmax.f32 %v265, %v286
        %289 = vset.pattern.permute.xlu0 3
        %290 = vperm.xlu0 %289, %v212
        %v291 = vpop.permute.xlu0 %290
        %293 = vset.pattern.permute.xlu0 3
        %294 = vperm.xlu0 %293, %v213
        %v295 = vpop.permute.xlu0 %294
        %v297 = vperm.slane %v204, 3
        %v298 = vmul.f32 %v291, %v297
        %v299 = vmul.f32 %v295, %v297
        %300 = vset.pattern.permute.xlu0 3
        %301 = vperm.xlu0 %300, %v214
        %v302 = vpop.permute.xlu0 %301
        %304 = vset.pattern.permute.xlu0 3
        %305 = vperm.xlu0 %304, %v215
        %v306 = vpop.permute.xlu0 %305
        %v308 = vadd.f32 %v298, %v302
        %v309 = vadd.f32 %v299, %v306
        %v310 = vmax.f32 %v287, %v308
        %v311 = vmax.f32 %v288, %v309
        %312 = vset.pattern.permute.xlu0 4
        %313 = vperm.xlu0 %312, %v212
        %v314 = vpop.permute.xlu0 %313
        %316 = vset.pattern.permute.xlu0 4
        %317 = vperm.xlu0 %316, %v213
        %v318 = vpop.permute.xlu0 %317
        %v320 = vperm.slane %v204, 4
        %v321 = vmul.f32 %v314, %v320
        %v322 = vmul.f32 %v318, %v320
        %323 = vset.pattern.permute.xlu0 4
        %324 = vperm.xlu0 %323, %v214
        %v325 = vpop.permute.xlu0 %324
        %327 = vset.pattern.permute.xlu0 4
        %328 = vperm.xlu0 %327, %v215
        %v329 = vpop.permute.xlu0 %328
        %v331 = vadd.f32 %v321, %v325
        %v332 = vadd.f32 %v322, %v329
        %v333 = vmax.f32 %v310, %v331
        %v334 = vmax.f32 %v311, %v332
        %335 = vset.pattern.permute.xlu0 5
        %336 = vperm.xlu0 %335, %v212
        %v337 = vpop.permute.xlu0 %336
        %339 = vset.pattern.permute.xlu0 5
        %340 = vperm.xlu0 %339, %v213
        %v341 = vpop.permute.xlu0 %340
        %v343 = vperm.slane %v204, 5
        %v344 = vmul.f32 %v337, %v343
        %v345 = vmul.f32 %v341, %v343
        %346 = vset.pattern.permute.xlu0 5
        %347 = vperm.xlu0 %346, %v214
        %v348 = vpop.permute.xlu0 %347
        %350 = vset.pattern.permute.xlu0 5
        %351 = vperm.xlu0 %350, %v215
        %v352 = vpop.permute.xlu0 %351
        %v354 = vadd.f32 %v344, %v348
        %v355 = vadd.f32 %v345, %v352
        %v356 = vmax.f32 %v333, %v354
        %v357 = vmax.f32 %v334, %v355
        %358 = vset.pattern.permute.xlu0 6
        %359 = vperm.xlu0 %358, %v212
        %v360 = vpop.permute.xlu0 %359
        %362 = vset.pattern.permute.xlu0 6
        %363 = vperm.xlu0 %362, %v213
        %v364 = vpop.permute.xlu0 %363
        %v366 = vperm.slane %v204, 6
        %v367 = vmul.f32 %v360, %v366
        %v368 = vmul.f32 %v364, %v366
        %369 = vset.pattern.permute.xlu0 6
        %370 = vperm.xlu0 %369, %v214
        %v371 = vpop.permute.xlu0 %370
        %373 = vset.pattern.permute.xlu0 6
        %374 = vperm.xlu0 %373, %v215
        %v375 = vpop.permute.xlu0 %374
        %v377 = vadd.f32 %v367, %v371
        %v378 = vadd.f32 %v368, %v375
        %v379 = vmax.f32 %v356, %v377
        %v380 = vmax.f32 %v357, %v378
        %381 = vset.pattern.permute.xlu0 7
        %382 = vperm.xlu0 %381, %v212
        %v383 = vpop.permute.xlu0 %382
        %385 = vset.pattern.permute.xlu0 7
        %386 = vperm.xlu0 %385, %v213
        %v387 = vpop.permute.xlu0 %386
        %v389 = vperm.slane %v204, 7
        %v390 = vmul.f32 %v383, %v389
        %v391 = vmul.f32 %v387, %v389
        %392 = vset.pattern.permute.xlu0 7
        %393 = vperm.xlu0 %392, %v214
        %v394 = vpop.permute.xlu0 %393
        %396 = vset.pattern.permute.xlu0 7
        %397 = vperm.xlu0 %396, %v215
        %v398 = vpop.permute.xlu0 %397
        %v400 = vadd.f32 %v390, %v394
        %v401 = vadd.f32 %v391, %v398
        %v402 = vmax.f32 %v379, %v400
        %v403 = vmax.f32 %v380, %v401
        %404 = vset.pattern.permute.xlu0 8
        %405 = vperm.xlu0 %404, %v212
        %v406 = vpop.permute.xlu0 %405
        %408 = vset.pattern.permute.xlu0 8
        %409 = vperm.xlu0 %408, %v213
        %v410 = vpop.permute.xlu0 %409
        %v412 = vperm.slane %v205, 0
        %v413 = vmul.f32 %v406, %v412
        %v414 = vmul.f32 %v410, %v412
        %415 = vset.pattern.permute.xlu0 8
        %416 = vperm.xlu0 %415, %v214
        %v417 = vpop.permute.xlu0 %416
        %419 = vset.pattern.permute.xlu0 8
        %420 = vperm.xlu0 %419, %v215
        %v421 = vpop.permute.xlu0 %420
        %v423 = vadd.f32 %v413, %v417
        %v424 = vadd.f32 %v414, %v421
        %v425 = vmax.f32 %v402, %v423
        %v426 = vmax.f32 %v403, %v424
        %427 = vset.pattern.permute.xlu0 9
        %428 = vperm.xlu0 %427, %v212
        %v429 = vpop.permute.xlu0 %428
        %431 = vset.pattern.permute.xlu0 9
        %432 = vperm.xlu0 %431, %v213
        %v433 = vpop.permute.xlu0 %432
        %v435 = vperm.slane %v205, 1
        %v436 = vmul.f32 %v429, %v435
        %v437 = vmul.f32 %v433, %v435
        %438 = vset.pattern.permute.xlu0 9
        %439 = vperm.xlu0 %438, %v214
        %v440 = vpop.permute.xlu0 %439
        %442 = vset.pattern.permute.xlu0 9
        %443 = vperm.xlu0 %442, %v215
        %v444 = vpop.permute.xlu0 %443
        %v446 = vadd.f32 %v436, %v440
        %v447 = vadd.f32 %v437, %v444
        %v448 = vmax.f32 %v425, %v446
        %v449 = vmax.f32 %v426, %v447
        %450 = vset.pattern.permute.xlu0 10
        %451 = vperm.xlu0 %450, %v212
        %v452 = vpop.permute.xlu0 %451
        %454 = vset.pattern.permute.xlu0 10
        %455 = vperm.xlu0 %454, %v213
        %v456 = vpop.permute.xlu0 %455
        %v458 = vperm.slane %v205, 2
        %v459 = vmul.f32 %v452, %v458
        %v460 = vmul.f32 %v456, %v458
        %461 = vset.pattern.permute.xlu0 10
        %462 = vperm.xlu0 %461, %v214
        %v463 = vpop.permute.xlu0 %462
        %465 = vset.pattern.permute.xlu0 10
        %466 = vperm.xlu0 %465, %v215
        %v467 = vpop.permute.xlu0 %466
        %v469 = vadd.f32 %v459, %v463
        %v470 = vadd.f32 %v460, %v467
        %v471 = vmax.f32 %v448, %v469
        %v472 = vmax.f32 %v449, %v470
        %473 = vset.pattern.permute.xlu0 11
        %474 = vperm.xlu0 %473, %v212
        %v475 = vpop.permute.xlu0 %474
        %477 = vset.pattern.permute.xlu0 11
        %478 = vperm.xlu0 %477, %v213
        %v479 = vpop.permute.xlu0 %478
        %v481 = vperm.slane %v205, 3
        %v482 = vmul.f32 %v475, %v481
        %v483 = vmul.f32 %v479, %v481
        %484 = vset.pattern.permute.xlu0 11
        %485 = vperm.xlu0 %484, %v214
        %v486 = vpop.permute.xlu0 %485
        %488 = vset.pattern.permute.xlu0 11
        %489 = vperm.xlu0 %488, %v215
        %v490 = vpop.permute.xlu0 %489
        %v492 = vadd.f32 %v482, %v486
        %v493 = vadd.f32 %v483, %v490
        %v494 = vmax.f32 %v471, %v492
        %v495 = vmax.f32 %v472, %v493
        %496 = vset.pattern.permute.xlu0 12
        %497 = vperm.xlu0 %496, %v212
        %v498 = vpop.permute.xlu0 %497
        %500 = vset.pattern.permute.xlu0 12
        %501 = vperm.xlu0 %500, %v213
        %v502 = vpop.permute.xlu0 %501
        %v504 = vperm.slane %v205, 4
        %v505 = vmul.f32 %v498, %v504
        %v506 = vmul.f32 %v502, %v504
        %507 = vset.pattern.permute.xlu0 12
        %508 = vperm.xlu0 %507, %v214
        %v509 = vpop.permute.xlu0 %508
        %511 = vset.pattern.permute.xlu0 12
        %512 = vperm.xlu0 %511, %v215
        %v513 = vpop.permute.xlu0 %512
        %v515 = vadd.f32 %v505, %v509
        %v516 = vadd.f32 %v506, %v513
        %v517 = vmax.f32 %v494, %v515
        %v518 = vmax.f32 %v495, %v516
        %519 = vset.pattern.permute.xlu0 13
        %520 = vperm.xlu0 %519, %v212
        %v521 = vpop.permute.xlu0 %520
        %523 = vset.pattern.permute.xlu0 13
        %524 = vperm.xlu0 %523, %v213
        %v525 = vpop.permute.xlu0 %524
        %v527 = vperm.slane %v205, 5
        %v528 = vmul.f32 %v521, %v527
        %v529 = vmul.f32 %v525, %v527
        %530 = vset.pattern.permute.xlu0 13
        %531 = vperm.xlu0 %530, %v214
        %v532 = vpop.permute.xlu0 %531
        %534 = vset.pattern.permute.xlu0 13
        %535 = vperm.xlu0 %534, %v215
        %v536 = vpop.permute.xlu0 %535
        %v538 = vadd.f32 %v528, %v532
        %v539 = vadd.f32 %v529, %v536
        %v540 = vmax.f32 %v517, %v538
        %v541 = vmax.f32 %v518, %v539
        %542 = vset.pattern.permute.xlu0 14
        %543 = vperm.xlu0 %542, %v212
        %v544 = vpop.permute.xlu0 %543
        %546 = vset.pattern.permute.xlu0 14
        %547 = vperm.xlu0 %546, %v213
        %v548 = vpop.permute.xlu0 %547
        %v550 = vperm.slane %v205, 6
        %v551 = vmul.f32 %v544, %v550
        %v552 = vmul.f32 %v548, %v550
        %553 = vset.pattern.permute.xlu0 14
        %554 = vperm.xlu0 %553, %v214
        %v555 = vpop.permute.xlu0 %554
        %557 = vset.pattern.permute.xlu0 14
        %558 = vperm.xlu0 %557, %v215
        %v559 = vpop.permute.xlu0 %558
        %v561 = vadd.f32 %v551, %v555
        %v562 = vadd.f32 %v552, %v559
        %v563 = vmax.f32 %v540, %v561
        %v564 = vmax.f32 %v541, %v562
        %565 = vset.pattern.permute.xlu0 15
        %566 = vperm.xlu0 %565, %v212
        %v567 = vpop.permute.xlu0 %566
        %569 = vset.pattern.permute.xlu0 15
        %570 = vperm.xlu0 %569, %v213
        %v571 = vpop.permute.xlu0 %570
        %v573 = vperm.slane %v205, 7
        %v574 = vmul.f32 %v567, %v573
        %v575 = vmul.f32 %v571, %v573
        %576 = vset.pattern.permute.xlu0 15
        %577 = vperm.xlu0 %576, %v214
        %v578 = vpop.permute.xlu0 %577
        %580 = vset.pattern.permute.xlu0 15
        %581 = vperm.xlu0 %580, %v215
        %v582 = vpop.permute.xlu0 %581
        %v584 = vadd.f32 %v574, %v578
        %v585 = vadd.f32 %v575, %v582
        %v586 = vmax.f32 %v563, %v584
        %v587 = vmax.f32 %v564, %v585
        %vm588 = vcmp.gt.f32.partialorder %v586, -1e+38
        %vm589 = vcmp.gt.f32.partialorder %v587, -1e+38
        %v590 = vsel %vm588, %v586, 0.0
        %v591 = vsel %vm589, %v587, 0.0
        %v592 = vstv %s200
        %v593 = vmul.f32 %v592, %v204
        %v594 = vmul.f32 %v592, %v205
        %v595 = vstv %s201
        %v596 = vmul.f32 %v595, %v590
        %v597 = vmul.f32 %v595, %v591
        %v598 = vadd.f32 %v593, %v596
        %v599 = vadd.f32 %v594, %v597
        %v600 = vadd.f32 %v598, %v599
        %v601 = vrot.slane %v600, 4
        %v602 = vadd.f32 %v600, %v601
        %v603 = vrot.slane %v602, 2
        %v604 = vadd.f32 %v602, %v603
        %v605 = vrot.slane %v604, 1
        %v606 = vadd.f32 %v604, %v605
        %vm607 = vcmp.eq.s32.totalorder %v203, 0
        %v608 = vsel %vm607, 1, 0
        %vm609 = vcmp.eq.s32.totalorder %v608, 1
        %v610 = vsel %vm609, %v606, 0.0
        %s611 = scalar_lea.vmem %s191, 16
        %v612 = vld [vmem:[%s611] sm:$0xff]
        %v613 = vld [vmem:[%s611 + $0x8] sm:$0xff]
        %s614 = scalar_lea.vmem %s198, 16
        %v615 = vld [vmem:[%s614] sm:$0xff]
        %v616 = vld [vmem:[%s614 + $0x8] sm:$0xff]
        %vm617 = vcmp.ne.f32.partialorder %v615, %v615
        %vm618 = vcmp.ne.f32.partialorder %v616, %v616
        %vm619 = vmxor %vm617, 1
        %vm620 = vmxor %vm618, 1
        %v621 = vsel %vm619, %v615, 0.0
        %v622 = vsel %vm620, %v616, 0.0
        %v623 = vsel %vm619, 0.0, -3.4e+38
        %v624 = vsel %vm620, 0.0, -3.4e+38
        %626 = vset.pattern.permute.xlu0 0
        %627 = vperm.xlu0 %626, %v621
        %v628 = vpop.permute.xlu0 %627
        %631 = vset.pattern.permute.xlu0 0
        %632 = vperm.xlu0 %631, %v622
        %v633 = vpop.permute.xlu0 %632
        %v635 = vperm.slane %v612, 0
        %v636 = vmul.f32 %v628, %v635
        %v637 = vmul.f32 %v633, %v635
        %639 = vset.pattern.permute.xlu0 0
        %640 = vperm.xlu0 %639, %v623
        %v641 = vpop.permute.xlu0 %640
        %644 = vset.pattern.permute.xlu0 0
        %645 = vperm.xlu0 %644, %v624
        %v646 = vpop.permute.xlu0 %645
        %v648 = vadd.f32 %v636, %v641
        %v649 = vadd.f32 %v637, %v646
        %v650 = vmax.f32 %v648, -3.4e+38
        %v651 = vmax.f32 %v649, -3.4e+38
        %652 = vset.pattern.permute.xlu0 1
        %653 = vperm.xlu0 %652, %v621
        %v654 = vpop.permute.xlu0 %653
        %656 = vset.pattern.permute.xlu0 1
        %657 = vperm.xlu0 %656, %v622
        %v658 = vpop.permute.xlu0 %657
        %v660 = vperm.slane %v612, 1
        %v661 = vmul.f32 %v654, %v660
        %v662 = vmul.f32 %v658, %v660
        %663 = vset.pattern.permute.xlu0 1
        %664 = vperm.xlu0 %663, %v623
        %v665 = vpop.permute.xlu0 %664
        %667 = vset.pattern.permute.xlu0 1
        %668 = vperm.xlu0 %667, %v624
        %v669 = vpop.permute.xlu0 %668
        %v671 = vadd.f32 %v661, %v665
        %v672 = vadd.f32 %v662, %v669
        %v673 = vmax.f32 %v650, %v671
        %v674 = vmax.f32 %v651, %v672
        %675 = vset.pattern.permute.xlu0 2
        %676 = vperm.xlu0 %675, %v621
        %v677 = vpop.permute.xlu0 %676
        %679 = vset.pattern.permute.xlu0 2
        %680 = vperm.xlu0 %679, %v622
        %v681 = vpop.permute.xlu0 %680
        %v683 = vperm.slane %v612, 2
        %v684 = vmul.f32 %v677, %v683
        %v685 = vmul.f32 %v681, %v683
        %686 = vset.pattern.permute.xlu0 2
        %687 = vperm.xlu0 %686, %v623
        %v688 = vpop.permute.xlu0 %687
        %690 = vset.pattern.permute.xlu0 2
        %691 = vperm.xlu0 %690, %v624
        %v692 = vpop.permute.xlu0 %691
        %v694 = vadd.f32 %v684, %v688
        %v695 = vadd.f32 %v685, %v692
        %v696 = vmax.f32 %v673, %v694
        %v697 = vmax.f32 %v674, %v695
        %698 = vset.pattern.permute.xlu0 3
        %699 = vperm.xlu0 %698, %v621
        %v700 = vpop.permute.xlu0 %699
        %702 = vset.pattern.permute.xlu0 3
        %703 = vperm.xlu0 %702, %v622
        %v704 = vpop.permute.xlu0 %703
        %v706 = vperm.slane %v612, 3
        %v707 = vmul.f32 %v700, %v706
        %v708 = vmul.f32 %v704, %v706
        %709 = vset.pattern.permute.xlu0 3
        %710 = vperm.xlu0 %709, %v623
        %v711 = vpop.permute.xlu0 %710
        %713 = vset.pattern.permute.xlu0 3
        %714 = vperm.xlu0 %713, %v624
        %v715 = vpop.permute.xlu0 %714
        %v717 = vadd.f32 %v707, %v711
        %v718 = vadd.f32 %v708, %v715
        %v719 = vmax.f32 %v696, %v717
        %v720 = vmax.f32 %v697, %v718
        %721 = vset.pattern.permute.xlu0 4
        %722 = vperm.xlu0 %721, %v621
        %v723 = vpop.permute.xlu0 %722
        %725 = vset.pattern.permute.xlu0 4
        %726 = vperm.xlu0 %725, %v622
        %v727 = vpop.permute.xlu0 %726
        %v729 = vperm.slane %v612, 4
        %v730 = vmul.f32 %v723, %v729
        %v731 = vmul.f32 %v727, %v729
        %732 = vset.pattern.permute.xlu0 4
        %733 = vperm.xlu0 %732, %v623
        %v734 = vpop.permute.xlu0 %733
        %736 = vset.pattern.permute.xlu0 4
        %737 = vperm.xlu0 %736, %v624
        %v738 = vpop.permute.xlu0 %737
        %v740 = vadd.f32 %v730, %v734
        %v741 = vadd.f32 %v731, %v738
        %v742 = vmax.f32 %v719, %v740
        %v743 = vmax.f32 %v720, %v741
        %744 = vset.pattern.permute.xlu0 5
        %745 = vperm.xlu0 %744, %v621
        %v746 = vpop.permute.xlu0 %745
        %748 = vset.pattern.permute.xlu0 5
        %749 = vperm.xlu0 %748, %v622
        %v750 = vpop.permute.xlu0 %749
        %v752 = vperm.slane %v612, 5
        %v753 = vmul.f32 %v746, %v752
        %v754 = vmul.f32 %v750, %v752
        %755 = vset.pattern.permute.xlu0 5
        %756 = vperm.xlu0 %755, %v623
        %v757 = vpop.permute.xlu0 %756
        %759 = vset.pattern.permute.xlu0 5
        %760 = vperm.xlu0 %759, %v624
        %v761 = vpop.permute.xlu0 %760
        %v763 = vadd.f32 %v753, %v757
        %v764 = vadd.f32 %v754, %v761
        %v765 = vmax.f32 %v742, %v763
        %v766 = vmax.f32 %v743, %v764
        %767 = vset.pattern.permute.xlu0 6
        %768 = vperm.xlu0 %767, %v621
        %v769 = vpop.permute.xlu0 %768
        %771 = vset.pattern.permute.xlu0 6
        %772 = vperm.xlu0 %771, %v622
        %v773 = vpop.permute.xlu0 %772
        %v775 = vperm.slane %v612, 6
        %v776 = vmul.f32 %v769, %v775
        %v777 = vmul.f32 %v773, %v775
        %778 = vset.pattern.permute.xlu0 6
        %779 = vperm.xlu0 %778, %v623
        %v780 = vpop.permute.xlu0 %779
        %782 = vset.pattern.permute.xlu0 6
        %783 = vperm.xlu0 %782, %v624
        %v784 = vpop.permute.xlu0 %783
        %v786 = vadd.f32 %v776, %v780
        %v787 = vadd.f32 %v777, %v784
        %v788 = vmax.f32 %v765, %v786
        %v789 = vmax.f32 %v766, %v787
        %790 = vset.pattern.permute.xlu0 7
        %791 = vperm.xlu0 %790, %v621
        %v792 = vpop.permute.xlu0 %791
        %794 = vset.pattern.permute.xlu0 7
        %795 = vperm.xlu0 %794, %v622
        %v796 = vpop.permute.xlu0 %795
        %v798 = vperm.slane %v612, 7
        %v799 = vmul.f32 %v792, %v798
        %v800 = vmul.f32 %v796, %v798
        %801 = vset.pattern.permute.xlu0 7
        %802 = vperm.xlu0 %801, %v623
        %v803 = vpop.permute.xlu0 %802
        %805 = vset.pattern.permute.xlu0 7
        %806 = vperm.xlu0 %805, %v624
        %v807 = vpop.permute.xlu0 %806
        %v809 = vadd.f32 %v799, %v803
        %v810 = vadd.f32 %v800, %v807
        %v811 = vmax.f32 %v788, %v809
        %v812 = vmax.f32 %v789, %v810
        %813 = vset.pattern.permute.xlu0 8
        %814 = vperm.xlu0 %813, %v621
        %v815 = vpop.permute.xlu0 %814
        %817 = vset.pattern.permute.xlu0 8
        %818 = vperm.xlu0 %817, %v622
        %v819 = vpop.permute.xlu0 %818
        %v821 = vperm.slane %v613, 0
        %v822 = vmul.f32 %v815, %v821
        %v823 = vmul.f32 %v819, %v821
        %824 = vset.pattern.permute.xlu0 8
        %825 = vperm.xlu0 %824, %v623
        %v826 = vpop.permute.xlu0 %825
        %828 = vset.pattern.permute.xlu0 8
        %829 = vperm.xlu0 %828, %v624
        %v830 = vpop.permute.xlu0 %829
        %v832 = vadd.f32 %v822, %v826
        %v833 = vadd.f32 %v823, %v830
        %v834 = vmax.f32 %v811, %v832
        %v835 = vmax.f32 %v812, %v833
        %836 = vset.pattern.permute.xlu0 9
        %837 = vperm.xlu0 %836, %v621
        %v838 = vpop.permute.xlu0 %837
        %840 = vset.pattern.permute.xlu0 9
        %841 = vperm.xlu0 %840, %v622
        %v842 = vpop.permute.xlu0 %841
        %v844 = vperm.slane %v613, 1
        %v845 = vmul.f32 %v838, %v844
        %v846 = vmul.f32 %v842, %v844
        %847 = vset.pattern.permute.xlu0 9
        %848 = vperm.xlu0 %847, %v623
        %v849 = vpop.permute.xlu0 %848
        %851 = vset.pattern.permute.xlu0 9
        %852 = vperm.xlu0 %851, %v624
        %v853 = vpop.permute.xlu0 %852
        %v855 = vadd.f32 %v845, %v849
        %v856 = vadd.f32 %v846, %v853
        %v857 = vmax.f32 %v834, %v855
        %v858 = vmax.f32 %v835, %v856
        %859 = vset.pattern.permute.xlu0 10
        %860 = vperm.xlu0 %859, %v621
        %v861 = vpop.permute.xlu0 %860
        %863 = vset.pattern.permute.xlu0 10
        %864 = vperm.xlu0 %863, %v622
        %v865 = vpop.permute.xlu0 %864
        %v867 = vperm.slane %v613, 2
        %v868 = vmul.f32 %v861, %v867
        %v869 = vmul.f32 %v865, %v867
        %870 = vset.pattern.permute.xlu0 10
        %871 = vperm.xlu0 %870, %v623
        %v872 = vpop.permute.xlu0 %871
        %874 = vset.pattern.permute.xlu0 10
        %875 = vperm.xlu0 %874, %v624
        %v876 = vpop.permute.xlu0 %875
        %v878 = vadd.f32 %v868, %v872
        %v879 = vadd.f32 %v869, %v876
        %v880 = vmax.f32 %v857, %v878
        %v881 = vmax.f32 %v858, %v879
        %882 = vset.pattern.permute.xlu0 11
        %883 = vperm.xlu0 %882, %v621
        %v884 = vpop.permute.xlu0 %883
        %886 = vset.pattern.permute.xlu0 11
        %887 = vperm.xlu0 %886, %v622
        %v888 = vpop.permute.xlu0 %887
        %v890 = vperm.slane %v613, 3
        %v891 = vmul.f32 %v884, %v890
        %v892 = vmul.f32 %v888, %v890
        %893 = vset.pattern.permute.xlu0 11
        %894 = vperm.xlu0 %893, %v623
        %v895 = vpop.permute.xlu0 %894
        %897 = vset.pattern.permute.xlu0 11
        %898 = vperm.xlu0 %897, %v624
        %v899 = vpop.permute.xlu0 %898
        %v901 = vadd.f32 %v891, %v895
        %v902 = vadd.f32 %v892, %v899
        %v903 = vmax.f32 %v880, %v901
        %v904 = vmax.f32 %v881, %v902
        %905 = vset.pattern.permute.xlu0 12
        %906 = vperm.xlu0 %905, %v621
        %v907 = vpop.permute.xlu0 %906
        %909 = vset.pattern.permute.xlu0 12
        %910 = vperm.xlu0 %909, %v622
        %v911 = vpop.permute.xlu0 %910
        %v913 = vperm.slane %v613, 4
        %v914 = vmul.f32 %v907, %v913
        %v915 = vmul.f32 %v911, %v913
        %916 = vset.pattern.permute.xlu0 12
        %917 = vperm.xlu0 %916, %v623
        %v918 = vpop.permute.xlu0 %917
        %920 = vset.pattern.permute.xlu0 12
        %921 = vperm.xlu0 %920, %v624
        %v922 = vpop.permute.xlu0 %921
        %v924 = vadd.f32 %v914, %v918
        %v925 = vadd.f32 %v915, %v922
        %v926 = vmax.f32 %v903, %v924
        %v927 = vmax.f32 %v904, %v925
        %928 = vset.pattern.permute.xlu0 13
        %929 = vperm.xlu0 %928, %v621
        %v930 = vpop.permute.xlu0 %929
        %932 = vset.pattern.permute.xlu0 13
        %933 = vperm.xlu0 %932, %v622
        %v934 = vpop.permute.xlu0 %933
        %v936 = vperm.slane %v613, 5
        %v937 = vmul.f32 %v930, %v936
        %v938 = vmul.f32 %v934, %v936
        %939 = vset.pattern.permute.xlu0 13
        %940 = vperm.xlu0 %939, %v623
        %v941 = vpop.permute.xlu0 %940
        %943 = vset.pattern.permute.xlu0 13
        %944 = vperm.xlu0 %943, %v624
        %v945 = vpop.permute.xlu0 %944
        %v947 = vadd.f32 %v937, %v941
        %v948 = vadd.f32 %v938, %v945
        %v949 = vmax.f32 %v926, %v947
        %v950 = vmax.f32 %v927, %v948
        %951 = vset.pattern.permute.xlu0 14
        %952 = vperm.xlu0 %951, %v621
        %v953 = vpop.permute.xlu0 %952
        %955 = vset.pattern.permute.xlu0 14
        %956 = vperm.xlu0 %955, %v622
        %v957 = vpop.permute.xlu0 %956
        %v959 = vperm.slane %v613, 6
        %v960 = vmul.f32 %v953, %v959
        %v961 = vmul.f32 %v957, %v959
        %962 = vset.pattern.permute.xlu0 14
        %963 = vperm.xlu0 %962, %v623
        %v964 = vpop.permute.xlu0 %963
        %966 = vset.pattern.permute.xlu0 14
        %967 = vperm.xlu0 %966, %v624
        %v968 = vpop.permute.xlu0 %967
        %v970 = vadd.f32 %v960, %v964
        %v971 = vadd.f32 %v961, %v968
        %v972 = vmax.f32 %v949, %v970
        %v973 = vmax.f32 %v950, %v971
        %974 = vset.pattern.permute.xlu0 15
        %975 = vperm.xlu0 %974, %v621
        %v976 = vpop.permute.xlu0 %975
        %978 = vset.pattern.permute.xlu0 15
        %979 = vperm.xlu0 %978, %v622
        %v980 = vpop.permute.xlu0 %979
        %v982 = vperm.slane %v613, 7
        %v983 = vmul.f32 %v976, %v982
        %v984 = vmul.f32 %v980, %v982
        %985 = vset.pattern.permute.xlu0 15
        %986 = vperm.xlu0 %985, %v623
        %v987 = vpop.permute.xlu0 %986
        %989 = vset.pattern.permute.xlu0 15
        %990 = vperm.xlu0 %989, %v624
        %v991 = vpop.permute.xlu0 %990
        %v993 = vadd.f32 %v983, %v987
        %v994 = vadd.f32 %v984, %v991
        %v995 = vmax.f32 %v972, %v993
        %v996 = vmax.f32 %v973, %v994
        %vm997 = vcmp.gt.f32.partialorder %v995, -1e+38
        %vm998 = vcmp.gt.f32.partialorder %v996, -1e+38
        %v999 = vsel %vm997, %v995, 0.0
        %v1000 = vsel %vm998, %v996, 0.0
        %v1001 = vmul.f32 %v592, %v612
        %v1002 = vmul.f32 %v592, %v613
        %v1003 = vmul.f32 %v595, %v999
        %v1004 = vmul.f32 %v595, %v1000
        %v1005 = vadd.f32 %v1001, %v1003
        %v1006 = vadd.f32 %v1002, %v1004
        %v1007 = vadd.f32 %v1005, %v1006
        %v1008 = vrot.slane %v1007, 4
        %v1009 = vadd.f32 %v1007, %v1008
        %v1010 = vrot.slane %v1009, 2
        %v1011 = vadd.f32 %v1009, %v1010
        %v1012 = vrot.slane %v1011, 1
        %v1013 = vadd.f32 %v1011, %v1012
        %vm1014 = vcmp.eq.s32.totalorder %v203, 1
        %v1015 = vsel %vm1014, 1, 0
        %vm1016 = vcmp.eq.s32.totalorder %v1015, 1
        %v1017 = vsel %vm1016, %v1013, %v610
        %s1018 = scalar_lea.vmem %s191, 32
        %v1019 = vld [vmem:[%s1018] sm:$0xff]
        %v1020 = vld [vmem:[%s1018 + $0x8] sm:$0xff]
        %s1021 = scalar_lea.vmem %s198, 32
        %v1022 = vld [vmem:[%s1021] sm:$0xff]
        %v1023 = vld [vmem:[%s1021 + $0x8] sm:$0xff]
        %vm1024 = vcmp.ne.f32.partialorder %v1022, %v1022
        %vm1025 = vcmp.ne.f32.partialorder %v1023, %v1023
        %vm1026 = vmxor %vm1024, 1
        %vm1027 = vmxor %vm1025, 1
        %v1028 = vsel %vm1026, %v1022, 0.0
        %v1029 = vsel %vm1027, %v1023, 0.0
        %v1030 = vsel %vm1026, 0.0, -3.4e+38
        %v1031 = vsel %vm1027, 0.0, -3.4e+38
        %1033 = vset.pattern.permute.xlu0 0
        %1034 = vperm.xlu0 %1033, %v1028
        %v1035 = vpop.permute.xlu0 %1034
        %1038 = vset.pattern.permute.xlu0 0
        %1039 = vperm.xlu0 %1038, %v1029
        %v1040 = vpop.permute.xlu0 %1039
        %v1042 = vperm.slane %v1019, 0
        %v1043 = vmul.f32 %v1035, %v1042
        %v1044 = vmul.f32 %v1040, %v1042
        %1046 = vset.pattern.permute.xlu0 0
        %1047 = vperm.xlu0 %1046, %v1030
        %v1048 = vpop.permute.xlu0 %1047
        %1051 = vset.pattern.permute.xlu0 0
        %1052 = vperm.xlu0 %1051, %v1031
        %v1053 = vpop.permute.xlu0 %1052
        %v1055 = vadd.f32 %v1043, %v1048
        %v1056 = vadd.f32 %v1044, %v1053
        %v1057 = vmax.f32 %v1055, -3.4e+38
        %v1058 = vmax.f32 %v1056, -3.4e+38
        %1059 = vset.pattern.permute.xlu0 1
        %1060 = vperm.xlu0 %1059, %v1028
        %v1061 = vpop.permute.xlu0 %1060
        %1063 = vset.pattern.permute.xlu0 1
        %1064 = vperm.xlu0 %1063, %v1029
        %v1065 = vpop.permute.xlu0 %1064
        %v1067 = vperm.slane %v1019, 1
        %v1068 = vmul.f32 %v1061, %v1067
        %v1069 = vmul.f32 %v1065, %v1067
        %1070 = vset.pattern.permute.xlu0 1
        %1071 = vperm.xlu0 %1070, %v1030
        %v1072 = vpop.permute.xlu0 %1071
        %1074 = vset.pattern.permute.xlu0 1
        %1075 = vperm.xlu0 %1074, %v1031
        %v1076 = vpop.permute.xlu0 %1075
        %v1078 = vadd.f32 %v1068, %v1072
        %v1079 = vadd.f32 %v1069, %v1076
        %v1080 = vmax.f32 %v1057, %v1078
        %v1081 = vmax.f32 %v1058, %v1079
        %1082 = vset.pattern.permute.xlu0 2
        %1083 = vperm.xlu0 %1082, %v1028
        %v1084 = vpop.permute.xlu0 %1083
        %1086 = vset.pattern.permute.xlu0 2
        %1087 = vperm.xlu0 %1086, %v1029
        %v1088 = vpop.permute.xlu0 %1087
        %v1090 = vperm.slane %v1019, 2
        %v1091 = vmul.f32 %v1084, %v1090
        %v1092 = vmul.f32 %v1088, %v1090
        %1093 = vset.pattern.permute.xlu0 2
        %1094 = vperm.xlu0 %1093, %v1030
        %v1095 = vpop.permute.xlu0 %1094
        %1097 = vset.pattern.permute.xlu0 2
        %1098 = vperm.xlu0 %1097, %v1031
        %v1099 = vpop.permute.xlu0 %1098
        %v1101 = vadd.f32 %v1091, %v1095
        %v1102 = vadd.f32 %v1092, %v1099
        %v1103 = vmax.f32 %v1080, %v1101
        %v1104 = vmax.f32 %v1081, %v1102
        %1105 = vset.pattern.permute.xlu0 3
        %1106 = vperm.xlu0 %1105, %v1028
        %v1107 = vpop.permute.xlu0 %1106
        %1109 = vset.pattern.permute.xlu0 3
        %1110 = vperm.xlu0 %1109, %v1029
        %v1111 = vpop.permute.xlu0 %1110
        %v1113 = vperm.slane %v1019, 3
        %v1114 = vmul.f32 %v1107, %v1113
        %v1115 = vmul.f32 %v1111, %v1113
        %1116 = vset.pattern.permute.xlu0 3
        %1117 = vperm.xlu0 %1116, %v1030
        %v1118 = vpop.permute.xlu0 %1117
        %1120 = vset.pattern.permute.xlu0 3
        %1121 = vperm.xlu0 %1120, %v1031
        %v1122 = vpop.permute.xlu0 %1121
        %v1124 = vadd.f32 %v1114, %v1118
        %v1125 = vadd.f32 %v1115, %v1122
        %v1126 = vmax.f32 %v1103, %v1124
        %v1127 = vmax.f32 %v1104, %v1125
        %1128 = vset.pattern.permute.xlu0 4
        %1129 = vperm.xlu0 %1128, %v1028
        %v1130 = vpop.permute.xlu0 %1129
        %1132 = vset.pattern.permute.xlu0 4
        %1133 = vperm.xlu0 %1132, %v1029
        %v1134 = vpop.permute.xlu0 %1133
        %v1136 = vperm.slane %v1019, 4
        %v1137 = vmul.f32 %v1130, %v1136
        %v1138 = vmul.f32 %v1134, %v1136
        %1139 = vset.pattern.permute.xlu0 4
        %1140 = vperm.xlu0 %1139, %v1030
        %v1141 = vpop.permute.xlu0 %1140
        %1143 = vset.pattern.permute.xlu0 4
        %1144 = vperm.xlu0 %1143, %v1031
        %v1145 = vpop.permute.xlu0 %1144
        %v1147 = vadd.f32 %v1137, %v1141
        %v1148 = vadd.f32 %v1138, %v1145
        %v1149 = vmax.f32 %v1126, %v1147
        %v1150 = vmax.f32 %v1127, %v1148
        %1151 = vset.pattern.permute.xlu0 5
        %1152 = vperm.xlu0 %1151, %v1028
        %v1153 = vpop.permute.xlu0 %1152
        %1155 = vset.pattern.permute.xlu0 5
        %1156 = vperm.xlu0 %1155, %v1029
        %v1157 = vpop.permute.xlu0 %1156
        %v1159 = vperm.slane %v1019, 5
        %v1160 = vmul.f32 %v1153, %v1159
        %v1161 = vmul.f32 %v1157, %v1159
        %1162 = vset.pattern.permute.xlu0 5
        %1163 = vperm.xlu0 %1162, %v1030
        %v1164 = vpop.permute.xlu0 %1163
        %1166 = vset.pattern.permute.xlu0 5
        %1167 = vperm.xlu0 %1166, %v1031
        %v1168 = vpop.permute.xlu0 %1167
        %v1170 = vadd.f32 %v1160, %v1164
        %v1171 = vadd.f32 %v1161, %v1168
        %v1172 = vmax.f32 %v1149, %v1170
        %v1173 = vmax.f32 %v1150, %v1171
        %1174 = vset.pattern.permute.xlu0 6
        %1175 = vperm.xlu0 %1174, %v1028
        %v1176 = vpop.permute.xlu0 %1175
        %1178 = vset.pattern.permute.xlu0 6
        %1179 = vperm.xlu0 %1178, %v1029
        %v1180 = vpop.permute.xlu0 %1179
        %v1182 = vperm.slane %v1019, 6
        %v1183 = vmul.f32 %v1176, %v1182
        %v1184 = vmul.f32 %v1180, %v1182
        %1185 = vset.pattern.permute.xlu0 6
        %1186 = vperm.xlu0 %1185, %v1030
        %v1187 = vpop.permute.xlu0 %1186
        %1189 = vset.pattern.permute.xlu0 6
        %1190 = vperm.xlu0 %1189, %v1031
        %v1191 = vpop.permute.xlu0 %1190
        %v1193 = vadd.f32 %v1183, %v1187
        %v1194 = vadd.f32 %v1184, %v1191
        %v1195 = vmax.f32 %v1172, %v1193
        %v1196 = vmax.f32 %v1173, %v1194
        %1197 = vset.pattern.permute.xlu0 7
        %1198 = vperm.xlu0 %1197, %v1028
        %v1199 = vpop.permute.xlu0 %1198
        %1201 = vset.pattern.permute.xlu0 7
        %1202 = vperm.xlu0 %1201, %v1029
        %v1203 = vpop.permute.xlu0 %1202
        %v1205 = vperm.slane %v1019, 7
        %v1206 = vmul.f32 %v1199, %v1205
        %v1207 = vmul.f32 %v1203, %v1205
        %1208 = vset.pattern.permute.xlu0 7
        %1209 = vperm.xlu0 %1208, %v1030
        %v1210 = vpop.permute.xlu0 %1209
        %1212 = vset.pattern.permute.xlu0 7
        %1213 = vperm.xlu0 %1212, %v1031
        %v1214 = vpop.permute.xlu0 %1213
        %v1216 = vadd.f32 %v1206, %v1210
        %v1217 = vadd.f32 %v1207, %v1214
        %v1218 = vmax.f32 %v1195, %v1216
        %v1219 = vmax.f32 %v1196, %v1217
        %1220 = vset.pattern.permute.xlu0 8
        %1221 = vperm.xlu0 %1220, %v1028
        %v1222 = vpop.permute.xlu0 %1221
        %1224 = vset.pattern.permute.xlu0 8
        %1225 = vperm.xlu0 %1224, %v1029
        %v1226 = vpop.permute.xlu0 %1225
        %v1228 = vperm.slane %v1020, 0
        %v1229 = vmul.f32 %v1222, %v1228
        %v1230 = vmul.f32 %v1226, %v1228
        %1231 = vset.pattern.permute.xlu0 8
        %1232 = vperm.xlu0 %1231, %v1030
        %v1233 = vpop.permute.xlu0 %1232
        %1235 = vset.pattern.permute.xlu0 8
        %1236 = vperm.xlu0 %1235, %v1031
        %v1237 = vpop.permute.xlu0 %1236
        %v1239 = vadd.f32 %v1229, %v1233
        %v1240 = vadd.f32 %v1230, %v1237
        %v1241 = vmax.f32 %v1218, %v1239
        %v1242 = vmax.f32 %v1219, %v1240
        %1243 = vset.pattern.permute.xlu0 9
        %1244 = vperm.xlu0 %1243, %v1028
        %v1245 = vpop.permute.xlu0 %1244
        %1247 = vset.pattern.permute.xlu0 9
        %1248 = vperm.xlu0 %1247, %v1029
        %v1249 = vpop.permute.xlu0 %1248
        %v1251 = vperm.slane %v1020, 1
        %v1252 = vmul.f32 %v1245, %v1251
        %v1253 = vmul.f32 %v1249, %v1251
        %1254 = vset.pattern.permute.xlu0 9
        %1255 = vperm.xlu0 %1254, %v1030
        %v1256 = vpop.permute.xlu0 %1255
        %1258 = vset.pattern.permute.xlu0 9
        %1259 = vperm.xlu0 %1258, %v1031
        %v1260 = vpop.permute.xlu0 %1259
        %v1262 = vadd.f32 %v1252, %v1256
        %v1263 = vadd.f32 %v1253, %v1260
        %v1264 = vmax.f32 %v1241, %v1262
        %v1265 = vmax.f32 %v1242, %v1263
        %1266 = vset.pattern.permute.xlu0 10
        %1267 = vperm.xlu0 %1266, %v1028
        %v1268 = vpop.permute.xlu0 %1267
        %1270 = vset.pattern.permute.xlu0 10
        %1271 = vperm.xlu0 %1270, %v1029
        %v1272 = vpop.permute.xlu0 %1271
        %v1274 = vperm.slane %v1020, 2
        %v1275 = vmul.f32 %v1268, %v1274
        %v1276 = vmul.f32 %v1272, %v1274
        %1277 = vset.pattern.permute.xlu0 10
        %1278 = vperm.xlu0 %1277, %v1030
        %v1279 = vpop.permute.xlu0 %1278
        %1281 = vset.pattern.permute.xlu0 10
        %1282 = vperm.xlu0 %1281, %v1031
        %v1283 = vpop.permute.xlu0 %1282
        %v1285 = vadd.f32 %v1275, %v1279
        %v1286 = vadd.f32 %v1276, %v1283
        %v1287 = vmax.f32 %v1264, %v1285
        %v1288 = vmax.f32 %v1265, %v1286
        %1289 = vset.pattern.permute.xlu0 11
        %1290 = vperm.xlu0 %1289, %v1028
        %v1291 = vpop.permute.xlu0 %1290
        %1293 = vset.pattern.permute.xlu0 11
        %1294 = vperm.xlu0 %1293, %v1029
        %v1295 = vpop.permute.xlu0 %1294
        %v1297 = vperm.slane %v1020, 3
        %v1298 = vmul.f32 %v1291, %v1297
        %v1299 = vmul.f32 %v1295, %v1297
        %1300 = vset.pattern.permute.xlu0 11
        %1301 = vperm.xlu0 %1300, %v1030
        %v1302 = vpop.permute.xlu0 %1301
        %1304 = vset.pattern.permute.xlu0 11
        %1305 = vperm.xlu0 %1304, %v1031
        %v1306 = vpop.permute.xlu0 %1305
        %v1308 = vadd.f32 %v1298, %v1302
        %v1309 = vadd.f32 %v1299, %v1306
        %v1310 = vmax.f32 %v1287, %v1308
        %v1311 = vmax.f32 %v1288, %v1309
        %1312 = vset.pattern.permute.xlu0 12
        %1313 = vperm.xlu0 %1312, %v1028
        %v1314 = vpop.permute.xlu0 %1313
        %1316 = vset.pattern.permute.xlu0 12
        %1317 = vperm.xlu0 %1316, %v1029
        %v1318 = vpop.permute.xlu0 %1317
        %v1320 = vperm.slane %v1020, 4
        %v1321 = vmul.f32 %v1314, %v1320
        %v1322 = vmul.f32 %v1318, %v1320
        %1323 = vset.pattern.permute.xlu0 12
        %1324 = vperm.xlu0 %1323, %v1030
        %v1325 = vpop.permute.xlu0 %1324
        %1327 = vset.pattern.permute.xlu0 12
        %1328 = vperm.xlu0 %1327, %v1031
        %v1329 = vpop.permute.xlu0 %1328
        %v1331 = vadd.f32 %v1321, %v1325
        %v1332 = vadd.f32 %v1322, %v1329
        %v1333 = vmax.f32 %v1310, %v1331
        %v1334 = vmax.f32 %v1311, %v1332
        %1335 = vset.pattern.permute.xlu0 13
        %1336 = vperm.xlu0 %1335, %v1028
        %v1337 = vpop.permute.xlu0 %1336
        %1339 = vset.pattern.permute.xlu0 13
        %1340 = vperm.xlu0 %1339, %v1029
        %v1341 = vpop.permute.xlu0 %1340
        %v1343 = vperm.slane %v1020, 5
        %v1344 = vmul.f32 %v1337, %v1343
        %v1345 = vmul.f32 %v1341, %v1343
        %1346 = vset.pattern.permute.xlu0 13
        %1347 = vperm.xlu0 %1346, %v1030
        %v1348 = vpop.permute.xlu0 %1347
        %1350 = vset.pattern.permute.xlu0 13
        %1351 = vperm.xlu0 %1350, %v1031
        %v1352 = vpop.permute.xlu0 %1351
        %v1354 = vadd.f32 %v1344, %v1348
        %v1355 = vadd.f32 %v1345, %v1352
        %v1356 = vmax.f32 %v1333, %v1354
        %v1357 = vmax.f32 %v1334, %v1355
        %1358 = vset.pattern.permute.xlu0 14
        %1359 = vperm.xlu0 %1358, %v1028
        %v1360 = vpop.permute.xlu0 %1359
        %1362 = vset.pattern.permute.xlu0 14
        %1363 = vperm.xlu0 %1362, %v1029
        %v1364 = vpop.permute.xlu0 %1363
        %v1366 = vperm.slane %v1020, 6
        %v1367 = vmul.f32 %v1360, %v1366
        %v1368 = vmul.f32 %v1364, %v1366
        %1369 = vset.pattern.permute.xlu0 14
        %1370 = vperm.xlu0 %1369, %v1030
        %v1371 = vpop.permute.xlu0 %1370
        %1373 = vset.pattern.permute.xlu0 14
        %1374 = vperm.xlu0 %1373, %v1031
        %v1375 = vpop.permute.xlu0 %1374
        %v1377 = vadd.f32 %v1367, %v1371
        %v1378 = vadd.f32 %v1368, %v1375
        %v1379 = vmax.f32 %v1356, %v1377
        %v1380 = vmax.f32 %v1357, %v1378
        %1381 = vset.pattern.permute.xlu0 15
        %1382 = vperm.xlu0 %1381, %v1028
        %v1383 = vpop.permute.xlu0 %1382
        %1385 = vset.pattern.permute.xlu0 15
        %1386 = vperm.xlu0 %1385, %v1029
        %v1387 = vpop.permute.xlu0 %1386
        %v1389 = vperm.slane %v1020, 7
        %v1390 = vmul.f32 %v1383, %v1389
        %v1391 = vmul.f32 %v1387, %v1389
        %1392 = vset.pattern.permute.xlu0 15
        %1393 = vperm.xlu0 %1392, %v1030
        %v1394 = vpop.permute.xlu0 %1393
        %1396 = vset.pattern.permute.xlu0 15
        %1397 = vperm.xlu0 %1396, %v1031
        %v1398 = vpop.permute.xlu0 %1397
        %v1400 = vadd.f32 %v1390, %v1394
        %v1401 = vadd.f32 %v1391, %v1398
        %v1402 = vmax.f32 %v1379, %v1400
        %v1403 = vmax.f32 %v1380, %v1401
        %vm1404 = vcmp.gt.f32.partialorder %v1402, -1e+38
        %vm1405 = vcmp.gt.f32.partialorder %v1403, -1e+38
        %v1406 = vsel %vm1404, %v1402, 0.0
        %v1407 = vsel %vm1405, %v1403, 0.0
        %v1408 = vmul.f32 %v592, %v1019
        %v1409 = vmul.f32 %v592, %v1020
        %v1410 = vmul.f32 %v595, %v1406
        %v1411 = vmul.f32 %v595, %v1407
        %v1412 = vadd.f32 %v1408, %v1410
        %v1413 = vadd.f32 %v1409, %v1411
        %v1414 = vadd.f32 %v1412, %v1413
        %v1415 = vrot.slane %v1414, 4
        %v1416 = vadd.f32 %v1414, %v1415
        %v1417 = vrot.slane %v1416, 2
        %v1418 = vadd.f32 %v1416, %v1417
        %v1419 = vrot.slane %v1418, 1
        %v1420 = vadd.f32 %v1418, %v1419
        %vm1421 = vcmp.eq.s32.totalorder %v203, 2
        %v1422 = vsel %vm1421, 1, 0
        %vm1423 = vcmp.eq.s32.totalorder %v1422, 1
        %v1424 = vsel %vm1423, %v1420, %v1017
        %s1425 = scalar_lea.vmem %s191, 48
        %v1426 = vld [vmem:[%s1425] sm:$0xff]
        %v1427 = vld [vmem:[%s1425 + $0x8] sm:$0xff]
        %s1428 = scalar_lea.vmem %s198, 48
        %v1429 = vld [vmem:[%s1428] sm:$0xff]
        %v1430 = vld [vmem:[%s1428 + $0x8] sm:$0xff]
        %vm1431 = vcmp.ne.f32.partialorder %v1429, %v1429
        %vm1432 = vcmp.ne.f32.partialorder %v1430, %v1430
        %vm1433 = vmxor %vm1431, 1
        %vm1434 = vmxor %vm1432, 1
        %v1435 = vsel %vm1433, %v1429, 0.0
        %v1436 = vsel %vm1434, %v1430, 0.0
        %v1437 = vsel %vm1433, 0.0, -3.4e+38
        %v1438 = vsel %vm1434, 0.0, -3.4e+38
        %1440 = vset.pattern.permute.xlu0 0
        %1441 = vperm.xlu0 %1440, %v1435
        %v1442 = vpop.permute.xlu0 %1441
        %1445 = vset.pattern.permute.xlu0 0
        %1446 = vperm.xlu0 %1445, %v1436
        %v1447 = vpop.permute.xlu0 %1446
        %v1449 = vperm.slane %v1426, 0
        %v1450 = vmul.f32 %v1442, %v1449
        %v1451 = vmul.f32 %v1447, %v1449
        %1453 = vset.pattern.permute.xlu0 0
        %1454 = vperm.xlu0 %1453, %v1437
        %v1455 = vpop.permute.xlu0 %1454
        %1458 = vset.pattern.permute.xlu0 0
        %1459 = vperm.xlu0 %1458, %v1438
        %v1460 = vpop.permute.xlu0 %1459
        %v1462 = vadd.f32 %v1450, %v1455
        %v1463 = vadd.f32 %v1451, %v1460
        %v1464 = vmax.f32 %v1462, -3.4e+38
        %v1465 = vmax.f32 %v1463, -3.4e+38
        %1466 = vset.pattern.permute.xlu0 1
        %1467 = vperm.xlu0 %1466, %v1435
        %v1468 = vpop.permute.xlu0 %1467
        %1470 = vset.pattern.permute.xlu0 1
        %1471 = vperm.xlu0 %1470, %v1436
        %v1472 = vpop.permute.xlu0 %1471
        %v1474 = vperm.slane %v1426, 1
        %v1475 = vmul.f32 %v1468, %v1474
        %v1476 = vmul.f32 %v1472, %v1474
        %1477 = vset.pattern.permute.xlu0 1
        %1478 = vperm.xlu0 %1477, %v1437
        %v1479 = vpop.permute.xlu0 %1478
        %1481 = vset.pattern.permute.xlu0 1
        %1482 = vperm.xlu0 %1481, %v1438
        %v1483 = vpop.permute.xlu0 %1482
        %v1485 = vadd.f32 %v1475, %v1479
        %v1486 = vadd.f32 %v1476, %v1483
        %v1487 = vmax.f32 %v1464, %v1485
        %v1488 = vmax.f32 %v1465, %v1486
        %1489 = vset.pattern.permute.xlu0 2
        %1490 = vperm.xlu0 %1489, %v1435
        %v1491 = vpop.permute.xlu0 %1490
        %1493 = vset.pattern.permute.xlu0 2
        %1494 = vperm.xlu0 %1493, %v1436
        %v1495 = vpop.permute.xlu0 %1494
        %v1497 = vperm.slane %v1426, 2
        %v1498 = vmul.f32 %v1491, %v1497
        %v1499 = vmul.f32 %v1495, %v1497
        %1500 = vset.pattern.permute.xlu0 2
        %1501 = vperm.xlu0 %1500, %v1437
        %v1502 = vpop.permute.xlu0 %1501
        %1504 = vset.pattern.permute.xlu0 2
        %1505 = vperm.xlu0 %1504, %v1438
        %v1506 = vpop.permute.xlu0 %1505
        %v1508 = vadd.f32 %v1498, %v1502
        %v1509 = vadd.f32 %v1499, %v1506
        %v1510 = vmax.f32 %v1487, %v1508
        %v1511 = vmax.f32 %v1488, %v1509
        %1512 = vset.pattern.permute.xlu0 3
        %1513 = vperm.xlu0 %1512, %v1435
        %v1514 = vpop.permute.xlu0 %1513
        %1516 = vset.pattern.permute.xlu0 3
        %1517 = vperm.xlu0 %1516, %v1436
        %v1518 = vpop.permute.xlu0 %1517
        %v1520 = vperm.slane %v1426, 3
        %v1521 = vmul.f32 %v1514, %v1520
        %v1522 = vmul.f32 %v1518, %v1520
        %1523 = vset.pattern.permute.xlu0 3
        %1524 = vperm.xlu0 %1523, %v1437
        %v1525 = vpop.permute.xlu0 %1524
        %1527 = vset.pattern.permute.xlu0 3
        %1528 = vperm.xlu0 %1527, %v1438
        %v1529 = vpop.permute.xlu0 %1528
        %v1531 = vadd.f32 %v1521, %v1525
        %v1532 = vadd.f32 %v1522, %v1529
        %v1533 = vmax.f32 %v1510, %v1531
        %v1534 = vmax.f32 %v1511, %v1532
        %1535 = vset.pattern.permute.xlu0 4
        %1536 = vperm.xlu0 %1535, %v1435
        %v1537 = vpop.permute.xlu0 %1536
        %1539 = vset.pattern.permute.xlu0 4
        %1540 = vperm.xlu0 %1539, %v1436
        %v1541 = vpop.permute.xlu0 %1540
        %v1543 = vperm.slane %v1426, 4
        %v1544 = vmul.f32 %v1537, %v1543
        %v1545 = vmul.f32 %v1541, %v1543
        %1546 = vset.pattern.permute.xlu0 4
        %1547 = vperm.xlu0 %1546, %v1437
        %v1548 = vpop.permute.xlu0 %1547
        %1550 = vset.pattern.permute.xlu0 4
        %1551 = vperm.xlu0 %1550, %v1438
        %v1552 = vpop.permute.xlu0 %1551
        %v1554 = vadd.f32 %v1544, %v1548
        %v1555 = vadd.f32 %v1545, %v1552
        %v1556 = vmax.f32 %v1533, %v1554
        %v1557 = vmax.f32 %v1534, %v1555
        %1558 = vset.pattern.permute.xlu0 5
        %1559 = vperm.xlu0 %1558, %v1435
        %v1560 = vpop.permute.xlu0 %1559
        %1562 = vset.pattern.permute.xlu0 5
        %1563 = vperm.xlu0 %1562, %v1436
        %v1564 = vpop.permute.xlu0 %1563
        %v1566 = vperm.slane %v1426, 5
        %v1567 = vmul.f32 %v1560, %v1566
        %v1568 = vmul.f32 %v1564, %v1566
        %1569 = vset.pattern.permute.xlu0 5
        %1570 = vperm.xlu0 %1569, %v1437
        %v1571 = vpop.permute.xlu0 %1570
        %1573 = vset.pattern.permute.xlu0 5
        %1574 = vperm.xlu0 %1573, %v1438
        %v1575 = vpop.permute.xlu0 %1574
        %v1577 = vadd.f32 %v1567, %v1571
        %v1578 = vadd.f32 %v1568, %v1575
        %v1579 = vmax.f32 %v1556, %v1577
        %v1580 = vmax.f32 %v1557, %v1578
        %1581 = vset.pattern.permute.xlu0 6
        %1582 = vperm.xlu0 %1581, %v1435
        %v1583 = vpop.permute.xlu0 %1582
        %1585 = vset.pattern.permute.xlu0 6
        %1586 = vperm.xlu0 %1585, %v1436
        %v1587 = vpop.permute.xlu0 %1586
        %v1589 = vperm.slane %v1426, 6
        %v1590 = vmul.f32 %v1583, %v1589
        %v1591 = vmul.f32 %v1587, %v1589
        %1592 = vset.pattern.permute.xlu0 6
        %1593 = vperm.xlu0 %1592, %v1437
        %v1594 = vpop.permute.xlu0 %1593
        %1596 = vset.pattern.permute.xlu0 6
        %1597 = vperm.xlu0 %1596, %v1438
        %v1598 = vpop.permute.xlu0 %1597
        %v1600 = vadd.f32 %v1590, %v1594
        %v1601 = vadd.f32 %v1591, %v1598
        %v1602 = vmax.f32 %v1579, %v1600
        %v1603 = vmax.f32 %v1580, %v1601
        %1604 = vset.pattern.permute.xlu0 7
        %1605 = vperm.xlu0 %1604, %v1435
        %v1606 = vpop.permute.xlu0 %1605
        %1608 = vset.pattern.permute.xlu0 7
        %1609 = vperm.xlu0 %1608, %v1436
        %v1610 = vpop.permute.xlu0 %1609
        %v1612 = vperm.slane %v1426, 7
        %v1613 = vmul.f32 %v1606, %v1612
        %v1614 = vmul.f32 %v1610, %v1612
        %1615 = vset.pattern.permute.xlu0 7
        %1616 = vperm.xlu0 %1615, %v1437
        %v1617 = vpop.permute.xlu0 %1616
        %1619 = vset.pattern.permute.xlu0 7
        %1620 = vperm.xlu0 %1619, %v1438
        %v1621 = vpop.permute.xlu0 %1620
        %v1623 = vadd.f32 %v1613, %v1617
        %v1624 = vadd.f32 %v1614, %v1621
        %v1625 = vmax.f32 %v1602, %v1623
        %v1626 = vmax.f32 %v1603, %v1624
        %1627 = vset.pattern.permute.xlu0 8
        %1628 = vperm.xlu0 %1627, %v1435
        %v1629 = vpop.permute.xlu0 %1628
        %1631 = vset.pattern.permute.xlu0 8
        %1632 = vperm.xlu0 %1631, %v1436
        %v1633 = vpop.permute.xlu0 %1632
        %v1635 = vperm.slane %v1427, 0
        %v1636 = vmul.f32 %v1629, %v1635
        %v1637 = vmul.f32 %v1633, %v1635
        %1638 = vset.pattern.permute.xlu0 8
        %1639 = vperm.xlu0 %1638, %v1437
        %v1640 = vpop.permute.xlu0 %1639
        %1642 = vset.pattern.permute.xlu0 8
        %1643 = vperm.xlu0 %1642, %v1438
        %v1644 = vpop.permute.xlu0 %1643
        %v1646 = vadd.f32 %v1636, %v1640
        %v1647 = vadd.f32 %v1637, %v1644
        %v1648 = vmax.f32 %v1625, %v1646
        %v1649 = vmax.f32 %v1626, %v1647
        %1650 = vset.pattern.permute.xlu0 9
        %1651 = vperm.xlu0 %1650, %v1435
        %v1652 = vpop.permute.xlu0 %1651
        %1654 = vset.pattern.permute.xlu0 9
        %1655 = vperm.xlu0 %1654, %v1436
        %v1656 = vpop.permute.xlu0 %1655
        %v1658 = vperm.slane %v1427, 1
        %v1659 = vmul.f32 %v1652, %v1658
        %v1660 = vmul.f32 %v1656, %v1658
        %1661 = vset.pattern.permute.xlu0 9
        %1662 = vperm.xlu0 %1661, %v1437
        %v1663 = vpop.permute.xlu0 %1662
        %1665 = vset.pattern.permute.xlu0 9
        %1666 = vperm.xlu0 %1665, %v1438
        %v1667 = vpop.permute.xlu0 %1666
        %v1669 = vadd.f32 %v1659, %v1663
        %v1670 = vadd.f32 %v1660, %v1667
        %v1671 = vmax.f32 %v1648, %v1669
        %v1672 = vmax.f32 %v1649, %v1670
        %1673 = vset.pattern.permute.xlu0 10
        %1674 = vperm.xlu0 %1673, %v1435
        %v1675 = vpop.permute.xlu0 %1674
        %1677 = vset.pattern.permute.xlu0 10
        %1678 = vperm.xlu0 %1677, %v1436
        %v1679 = vpop.permute.xlu0 %1678
        %v1681 = vperm.slane %v1427, 2
        %v1682 = vmul.f32 %v1675, %v1681
        %v1683 = vmul.f32 %v1679, %v1681
        %1684 = vset.pattern.permute.xlu0 10
        %1685 = vperm.xlu0 %1684, %v1437
        %v1686 = vpop.permute.xlu0 %1685
        %1688 = vset.pattern.permute.xlu0 10
        %1689 = vperm.xlu0 %1688, %v1438
        %v1690 = vpop.permute.xlu0 %1689
        %v1692 = vadd.f32 %v1682, %v1686
        %v1693 = vadd.f32 %v1683, %v1690
        %v1694 = vmax.f32 %v1671, %v1692
        %v1695 = vmax.f32 %v1672, %v1693
        %1696 = vset.pattern.permute.xlu0 11
        %1697 = vperm.xlu0 %1696, %v1435
        %v1698 = vpop.permute.xlu0 %1697
        %1700 = vset.pattern.permute.xlu0 11
        %1701 = vperm.xlu0 %1700, %v1436
        %v1702 = vpop.permute.xlu0 %1701
        %v1704 = vperm.slane %v1427, 3
        %v1705 = vmul.f32 %v1698, %v1704
        %v1706 = vmul.f32 %v1702, %v1704
        %1707 = vset.pattern.permute.xlu0 11
        %1708 = vperm.xlu0 %1707, %v1437
        %v1709 = vpop.permute.xlu0 %1708
        %1711 = vset.pattern.permute.xlu0 11
        %1712 = vperm.xlu0 %1711, %v1438
        %v1713 = vpop.permute.xlu0 %1712
        %v1715 = vadd.f32 %v1705, %v1709
        %v1716 = vadd.f32 %v1706, %v1713
        %v1717 = vmax.f32 %v1694, %v1715
        %v1718 = vmax.f32 %v1695, %v1716
        %1719 = vset.pattern.permute.xlu0 12
        %1720 = vperm.xlu0 %1719, %v1435
        %v1721 = vpop.permute.xlu0 %1720
        %1723 = vset.pattern.permute.xlu0 12
        %1724 = vperm.xlu0 %1723, %v1436
        %v1725 = vpop.permute.xlu0 %1724
        %v1727 = vperm.slane %v1427, 4
        %v1728 = vmul.f32 %v1721, %v1727
        %v1729 = vmul.f32 %v1725, %v1727
        %1730 = vset.pattern.permute.xlu0 12
        %1731 = vperm.xlu0 %1730, %v1437
        %v1732 = vpop.permute.xlu0 %1731
        %1734 = vset.pattern.permute.xlu0 12
        %1735 = vperm.xlu0 %1734, %v1438
        %v1736 = vpop.permute.xlu0 %1735
        %v1738 = vadd.f32 %v1728, %v1732
        %v1739 = vadd.f32 %v1729, %v1736
        %v1740 = vmax.f32 %v1717, %v1738
        %v1741 = vmax.f32 %v1718, %v1739
        %1742 = vset.pattern.permute.xlu0 13
        %1743 = vperm.xlu0 %1742, %v1435
        %v1744 = vpop.permute.xlu0 %1743
        %1746 = vset.pattern.permute.xlu0 13
        %1747 = vperm.xlu0 %1746, %v1436
        %v1748 = vpop.permute.xlu0 %1747
        %v1750 = vperm.slane %v1427, 5
        %v1751 = vmul.f32 %v1744, %v1750
        %v1752 = vmul.f32 %v1748, %v1750
        %1753 = vset.pattern.permute.xlu0 13
        %1754 = vperm.xlu0 %1753, %v1437
        %v1755 = vpop.permute.xlu0 %1754
        %1757 = vset.pattern.permute.xlu0 13
        %1758 = vperm.xlu0 %1757, %v1438
        %v1759 = vpop.permute.xlu0 %1758
        %v1761 = vadd.f32 %v1751, %v1755
        %v1762 = vadd.f32 %v1752, %v1759
        %v1763 = vmax.f32 %v1740, %v1761
        %v1764 = vmax.f32 %v1741, %v1762
        %1765 = vset.pattern.permute.xlu0 14
        %1766 = vperm.xlu0 %1765, %v1435
        %v1767 = vpop.permute.xlu0 %1766
        %1769 = vset.pattern.permute.xlu0 14
        %1770 = vperm.xlu0 %1769, %v1436
        %v1771 = vpop.permute.xlu0 %1770
        %v1773 = vperm.slane %v1427, 6
        %v1774 = vmul.f32 %v1767, %v1773
        %v1775 = vmul.f32 %v1771, %v1773
        %1776 = vset.pattern.permute.xlu0 14
        %1777 = vperm.xlu0 %1776, %v1437
        %v1778 = vpop.permute.xlu0 %1777
        %1780 = vset.pattern.permute.xlu0 14
        %1781 = vperm.xlu0 %1780, %v1438
        %v1782 = vpop.permute.xlu0 %1781
        %v1784 = vadd.f32 %v1774, %v1778
        %v1785 = vadd.f32 %v1775, %v1782
        %v1786 = vmax.f32 %v1763, %v1784
        %v1787 = vmax.f32 %v1764, %v1785
        %1788 = vset.pattern.permute.xlu0 15
        %1789 = vperm.xlu0 %1788, %v1435
        %v1790 = vpop.permute.xlu0 %1789
        %1792 = vset.pattern.permute.xlu0 15
        %1793 = vperm.xlu0 %1792, %v1436
        %v1794 = vpop.permute.xlu0 %1793
        %v1796 = vperm.slane %v1427, 7
        %v1797 = vmul.f32 %v1790, %v1796
        %v1798 = vmul.f32 %v1794, %v1796
        %1799 = vset.pattern.permute.xlu0 15
        %1800 = vperm.xlu0 %1799, %v1437
        %v1801 = vpop.permute.xlu0 %1800
        %1803 = vset.pattern.permute.xlu0 15
        %1804 = vperm.xlu0 %1803, %v1438
        %v1805 = vpop.permute.xlu0 %1804
        %v1807 = vadd.f32 %v1797, %v1801
        %v1808 = vadd.f32 %v1798, %v1805
        %v1809 = vmax.f32 %v1786, %v1807
        %v1810 = vmax.f32 %v1787, %v1808
        %vm1811 = vcmp.gt.f32.partialorder %v1809, -1e+38
        %vm1812 = vcmp.gt.f32.partialorder %v1810, -1e+38
        %v1813 = vsel %vm1811, %v1809, 0.0
        %v1814 = vsel %vm1812, %v1810, 0.0
        %v1815 = vmul.f32 %v592, %v1426
        %v1816 = vmul.f32 %v592, %v1427
        %v1817 = vmul.f32 %v595, %v1813
        %v1818 = vmul.f32 %v595, %v1814
        %v1819 = vadd.f32 %v1815, %v1817
        %v1820 = vadd.f32 %v1816, %v1818
        %v1821 = vadd.f32 %v1819, %v1820
        %v1822 = vrot.slane %v1821, 4
        %v1823 = vadd.f32 %v1821, %v1822
        %v1824 = vrot.slane %v1823, 2
        %v1825 = vadd.f32 %v1823, %v1824
        %v1826 = vrot.slane %v1825, 1
        %v1827 = vadd.f32 %v1825, %v1826
        %vm1828 = vcmp.eq.s32.totalorder %v203, 3
        %v1829 = vsel %vm1828, 1, 0
        %vm1830 = vcmp.eq.s32.totalorder %v1829, 1
        %v1831 = vsel %vm1830, %v1827, %v1424
        %s1832 = scalar_lea.vmem %s191, 64
        %v1833 = vld [vmem:[%s1832] sm:$0xff]
        %v1834 = vld [vmem:[%s1832 + $0x8] sm:$0xff]
        %s1835 = scalar_lea.vmem %s198, 64
        %v1836 = vld [vmem:[%s1835] sm:$0xff]
        %v1837 = vld [vmem:[%s1835 + $0x8] sm:$0xff]
        %vm1838 = vcmp.ne.f32.partialorder %v1836, %v1836
        %vm1839 = vcmp.ne.f32.partialorder %v1837, %v1837
        %vm1840 = vmxor %vm1838, 1
        %vm1841 = vmxor %vm1839, 1
        %v1842 = vsel %vm1840, %v1836, 0.0
        %v1843 = vsel %vm1841, %v1837, 0.0
        %v1844 = vsel %vm1840, 0.0, -3.4e+38
        %v1845 = vsel %vm1841, 0.0, -3.4e+38
        %1847 = vset.pattern.permute.xlu0 0
        %1848 = vperm.xlu0 %1847, %v1842
        %v1849 = vpop.permute.xlu0 %1848
        %1852 = vset.pattern.permute.xlu0 0
        %1853 = vperm.xlu0 %1852, %v1843
        %v1854 = vpop.permute.xlu0 %1853
        %v1856 = vperm.slane %v1833, 0
        %v1857 = vmul.f32 %v1849, %v1856
        %v1858 = vmul.f32 %v1854, %v1856
        %1860 = vset.pattern.permute.xlu0 0
        %1861 = vperm.xlu0 %1860, %v1844
        %v1862 = vpop.permute.xlu0 %1861
        %1865 = vset.pattern.permute.xlu0 0
        %1866 = vperm.xlu0 %1865, %v1845
        %v1867 = vpop.permute.xlu0 %1866
        %v1869 = vadd.f32 %v1857, %v1862
        %v1870 = vadd.f32 %v1858, %v1867
        %v1871 = vmax.f32 %v1869, -3.4e+38
        %v1872 = vmax.f32 %v1870, -3.4e+38
        %1873 = vset.pattern.permute.xlu0 1
        %1874 = vperm.xlu0 %1873, %v1842
        %v1875 = vpop.permute.xlu0 %1874
        %1877 = vset.pattern.permute.xlu0 1
        %1878 = vperm.xlu0 %1877, %v1843
        %v1879 = vpop.permute.xlu0 %1878
        %v1881 = vperm.slane %v1833, 1
        %v1882 = vmul.f32 %v1875, %v1881
        %v1883 = vmul.f32 %v1879, %v1881
        %1884 = vset.pattern.permute.xlu0 1
        %1885 = vperm.xlu0 %1884, %v1844
        %v1886 = vpop.permute.xlu0 %1885
        %1888 = vset.pattern.permute.xlu0 1
        %1889 = vperm.xlu0 %1888, %v1845
        %v1890 = vpop.permute.xlu0 %1889
        %v1892 = vadd.f32 %v1882, %v1886
        %v1893 = vadd.f32 %v1883, %v1890
        %v1894 = vmax.f32 %v1871, %v1892
        %v1895 = vmax.f32 %v1872, %v1893
        %1896 = vset.pattern.permute.xlu0 2
        %1897 = vperm.xlu0 %1896, %v1842
        %v1898 = vpop.permute.xlu0 %1897
        %1900 = vset.pattern.permute.xlu0 2
        %1901 = vperm.xlu0 %1900, %v1843
        %v1902 = vpop.permute.xlu0 %1901
        %v1904 = vperm.slane %v1833, 2
        %v1905 = vmul.f32 %v1898, %v1904
        %v1906 = vmul.f32 %v1902, %v1904
        %1907 = vset.pattern.permute.xlu0 2
        %1908 = vperm.xlu0 %1907, %v1844
        %v1909 = vpop.permute.xlu0 %1908
        %1911 = vset.pattern.permute.xlu0 2
        %1912 = vperm.xlu0 %1911, %v1845
        %v1913 = vpop.permute.xlu0 %1912
        %v1915 = vadd.f32 %v1905, %v1909
        %v1916 = vadd.f32 %v1906, %v1913
        %v1917 = vmax.f32 %v1894, %v1915
        %v1918 = vmax.f32 %v1895, %v1916
        %1919 = vset.pattern.permute.xlu0 3
        %1920 = vperm.xlu0 %1919, %v1842
        %v1921 = vpop.permute.xlu0 %1920
        %1923 = vset.pattern.permute.xlu0 3
        %1924 = vperm.xlu0 %1923, %v1843
        %v1925 = vpop.permute.xlu0 %1924
        %v1927 = vperm.slane %v1833, 3
        %v1928 = vmul.f32 %v1921, %v1927
        %v1929 = vmul.f32 %v1925, %v1927
        %1930 = vset.pattern.permute.xlu0 3
        %1931 = vperm.xlu0 %1930, %v1844
        %v1932 = vpop.permute.xlu0 %1931
        %1934 = vset.pattern.permute.xlu0 3
        %1935 = vperm.xlu0 %1934, %v1845
        %v1936 = vpop.permute.xlu0 %1935
        %v1938 = vadd.f32 %v1928, %v1932
        %v1939 = vadd.f32 %v1929, %v1936
        %v1940 = vmax.f32 %v1917, %v1938
        %v1941 = vmax.f32 %v1918, %v1939
        %1942 = vset.pattern.permute.xlu0 4
        %1943 = vperm.xlu0 %1942, %v1842
        %v1944 = vpop.permute.xlu0 %1943
        %1946 = vset.pattern.permute.xlu0 4
        %1947 = vperm.xlu0 %1946, %v1843
        %v1948 = vpop.permute.xlu0 %1947
        %v1950 = vperm.slane %v1833, 4
        %v1951 = vmul.f32 %v1944, %v1950
        %v1952 = vmul.f32 %v1948, %v1950
        %1953 = vset.pattern.permute.xlu0 4
        %1954 = vperm.xlu0 %1953, %v1844
        %v1955 = vpop.permute.xlu0 %1954
        %1957 = vset.pattern.permute.xlu0 4
        %1958 = vperm.xlu0 %1957, %v1845
        %v1959 = vpop.permute.xlu0 %1958
        %v1961 = vadd.f32 %v1951, %v1955
        %v1962 = vadd.f32 %v1952, %v1959
        %v1963 = vmax.f32 %v1940, %v1961
        %v1964 = vmax.f32 %v1941, %v1962
        %1965 = vset.pattern.permute.xlu0 5
        %1966 = vperm.xlu0 %1965, %v1842
        %v1967 = vpop.permute.xlu0 %1966
        %1969 = vset.pattern.permute.xlu0 5
        %1970 = vperm.xlu0 %1969, %v1843
        %v1971 = vpop.permute.xlu0 %1970
        %v1973 = vperm.slane %v1833, 5
        %v1974 = vmul.f32 %v1967, %v1973
        %v1975 = vmul.f32 %v1971, %v1973
        %1976 = vset.pattern.permute.xlu0 5
        %1977 = vperm.xlu0 %1976, %v1844
        %v1978 = vpop.permute.xlu0 %1977
        %1980 = vset.pattern.permute.xlu0 5
        %1981 = vperm.xlu0 %1980, %v1845
        %v1982 = vpop.permute.xlu0 %1981
        %v1984 = vadd.f32 %v1974, %v1978
        %v1985 = vadd.f32 %v1975, %v1982
        %v1986 = vmax.f32 %v1963, %v1984
        %v1987 = vmax.f32 %v1964, %v1985
        %1988 = vset.pattern.permute.xlu0 6
        %1989 = vperm.xlu0 %1988, %v1842
        %v1990 = vpop.permute.xlu0 %1989
        %1992 = vset.pattern.permute.xlu0 6
        %1993 = vperm.xlu0 %1992, %v1843
        %v1994 = vpop.permute.xlu0 %1993
        %v1996 = vperm.slane %v1833, 6
        %v1997 = vmul.f32 %v1990, %v1996
        %v1998 = vmul.f32 %v1994, %v1996
        %1999 = vset.pattern.permute.xlu0 6
        %2000 = vperm.xlu0 %1999, %v1844
        %v2001 = vpop.permute.xlu0 %2000
        %2003 = vset.pattern.permute.xlu0 6
        %2004 = vperm.xlu0 %2003, %v1845
        %v2005 = vpop.permute.xlu0 %2004
        %v2007 = vadd.f32 %v1997, %v2001
        %v2008 = vadd.f32 %v1998, %v2005
        %v2009 = vmax.f32 %v1986, %v2007
        %v2010 = vmax.f32 %v1987, %v2008
        %2011 = vset.pattern.permute.xlu0 7
        %2012 = vperm.xlu0 %2011, %v1842
        %v2013 = vpop.permute.xlu0 %2012
        %2015 = vset.pattern.permute.xlu0 7
        %2016 = vperm.xlu0 %2015, %v1843
        %v2017 = vpop.permute.xlu0 %2016
        %v2019 = vperm.slane %v1833, 7
        %v2020 = vmul.f32 %v2013, %v2019
        %v2021 = vmul.f32 %v2017, %v2019
        %2022 = vset.pattern.permute.xlu0 7
        %2023 = vperm.xlu0 %2022, %v1844
        %v2024 = vpop.permute.xlu0 %2023
        %2026 = vset.pattern.permute.xlu0 7
        %2027 = vperm.xlu0 %2026, %v1845
        %v2028 = vpop.permute.xlu0 %2027
        %v2030 = vadd.f32 %v2020, %v2024
        %v2031 = vadd.f32 %v2021, %v2028
        %v2032 = vmax.f32 %v2009, %v2030
        %v2033 = vmax.f32 %v2010, %v2031
        %2034 = vset.pattern.permute.xlu0 8
        %2035 = vperm.xlu0 %2034, %v1842
        %v2036 = vpop.permute.xlu0 %2035
        %2038 = vset.pattern.permute.xlu0 8
        %2039 = vperm.xlu0 %2038, %v1843
        %v2040 = vpop.permute.xlu0 %2039
        %v2042 = vperm.slane %v1834, 0
        %v2043 = vmul.f32 %v2036, %v2042
        %v2044 = vmul.f32 %v2040, %v2042
        %2045 = vset.pattern.permute.xlu0 8
        %2046 = vperm.xlu0 %2045, %v1844
        %v2047 = vpop.permute.xlu0 %2046
        %2049 = vset.pattern.permute.xlu0 8
        %2050 = vperm.xlu0 %2049, %v1845
        %v2051 = vpop.permute.xlu0 %2050
        %v2053 = vadd.f32 %v2043, %v2047
        %v2054 = vadd.f32 %v2044, %v2051
        %v2055 = vmax.f32 %v2032, %v2053
        %v2056 = vmax.f32 %v2033, %v2054
        %2057 = vset.pattern.permute.xlu0 9
        %2058 = vperm.xlu0 %2057, %v1842
        %v2059 = vpop.permute.xlu0 %2058
        %2061 = vset.pattern.permute.xlu0 9
        %2062 = vperm.xlu0 %2061, %v1843
        %v2063 = vpop.permute.xlu0 %2062
        %v2065 = vperm.slane %v1834, 1
        %v2066 = vmul.f32 %v2059, %v2065
        %v2067 = vmul.f32 %v2063, %v2065
        %2068 = vset.pattern.permute.xlu0 9
        %2069 = vperm.xlu0 %2068, %v1844
        %v2070 = vpop.permute.xlu0 %2069
        %2072 = vset.pattern.permute.xlu0 9
        %2073 = vperm.xlu0 %2072, %v1845
        %v2074 = vpop.permute.xlu0 %2073
        %v2076 = vadd.f32 %v2066, %v2070
        %v2077 = vadd.f32 %v2067, %v2074
        %v2078 = vmax.f32 %v2055, %v2076
        %v2079 = vmax.f32 %v2056, %v2077
        %2080 = vset.pattern.permute.xlu0 10
        %2081 = vperm.xlu0 %2080, %v1842
        %v2082 = vpop.permute.xlu0 %2081
        %2084 = vset.pattern.permute.xlu0 10
        %2085 = vperm.xlu0 %2084, %v1843
        %v2086 = vpop.permute.xlu0 %2085
        %v2088 = vperm.slane %v1834, 2
        %v2089 = vmul.f32 %v2082, %v2088
        %v2090 = vmul.f32 %v2086, %v2088
        %2091 = vset.pattern.permute.xlu0 10
        %2092 = vperm.xlu0 %2091, %v1844
        %v2093 = vpop.permute.xlu0 %2092
        %2095 = vset.pattern.permute.xlu0 10
        %2096 = vperm.xlu0 %2095, %v1845
        %v2097 = vpop.permute.xlu0 %2096
        %v2099 = vadd.f32 %v2089, %v2093
        %v2100 = vadd.f32 %v2090, %v2097
        %v2101 = vmax.f32 %v2078, %v2099
        %v2102 = vmax.f32 %v2079, %v2100
        %2103 = vset.pattern.permute.xlu0 11
        %2104 = vperm.xlu0 %2103, %v1842
        %v2105 = vpop.permute.xlu0 %2104
        %2107 = vset.pattern.permute.xlu0 11
        %2108 = vperm.xlu0 %2107, %v1843
        %v2109 = vpop.permute.xlu0 %2108
        %v2111 = vperm.slane %v1834, 3
        %v2112 = vmul.f32 %v2105, %v2111
        %v2113 = vmul.f32 %v2109, %v2111
        %2114 = vset.pattern.permute.xlu0 11
        %2115 = vperm.xlu0 %2114, %v1844
        %v2116 = vpop.permute.xlu0 %2115
        %2118 = vset.pattern.permute.xlu0 11
        %2119 = vperm.xlu0 %2118, %v1845
        %v2120 = vpop.permute.xlu0 %2119
        %v2122 = vadd.f32 %v2112, %v2116
        %v2123 = vadd.f32 %v2113, %v2120
        %v2124 = vmax.f32 %v2101, %v2122
        %v2125 = vmax.f32 %v2102, %v2123
        %2126 = vset.pattern.permute.xlu0 12
        %2127 = vperm.xlu0 %2126, %v1842
        %v2128 = vpop.permute.xlu0 %2127
        %2130 = vset.pattern.permute.xlu0 12
        %2131 = vperm.xlu0 %2130, %v1843
        %v2132 = vpop.permute.xlu0 %2131
        %v2134 = vperm.slane %v1834, 4
        %v2135 = vmul.f32 %v2128, %v2134
        %v2136 = vmul.f32 %v2132, %v2134
        %2137 = vset.pattern.permute.xlu0 12
        %2138 = vperm.xlu0 %2137, %v1844
        %v2139 = vpop.permute.xlu0 %2138
        %2141 = vset.pattern.permute.xlu0 12
        %2142 = vperm.xlu0 %2141, %v1845
        %v2143 = vpop.permute.xlu0 %2142
        %v2145 = vadd.f32 %v2135, %v2139
        %v2146 = vadd.f32 %v2136, %v2143
        %v2147 = vmax.f32 %v2124, %v2145
        %v2148 = vmax.f32 %v2125, %v2146
        %2149 = vset.pattern.permute.xlu0 13
        %2150 = vperm.xlu0 %2149, %v1842
        %v2151 = vpop.permute.xlu0 %2150
        %2153 = vset.pattern.permute.xlu0 13
        %2154 = vperm.xlu0 %2153, %v1843
        %v2155 = vpop.permute.xlu0 %2154
        %v2157 = vperm.slane %v1834, 5
        %v2158 = vmul.f32 %v2151, %v2157
        %v2159 = vmul.f32 %v2155, %v2157
        %2160 = vset.pattern.permute.xlu0 13
        %2161 = vperm.xlu0 %2160, %v1844
        %v2162 = vpop.permute.xlu0 %2161
        %2164 = vset.pattern.permute.xlu0 13
        %2165 = vperm.xlu0 %2164, %v1845
        %v2166 = vpop.permute.xlu0 %2165
        %v2168 = vadd.f32 %v2158, %v2162
        %v2169 = vadd.f32 %v2159, %v2166
        %v2170 = vmax.f32 %v2147, %v2168
        %v2171 = vmax.f32 %v2148, %v2169
        %2172 = vset.pattern.permute.xlu0 14
        %2173 = vperm.xlu0 %2172, %v1842
        %v2174 = vpop.permute.xlu0 %2173
        %2176 = vset.pattern.permute.xlu0 14
        %2177 = vperm.xlu0 %2176, %v1843
        %v2178 = vpop.permute.xlu0 %2177
        %v2180 = vperm.slane %v1834, 6
        %v2181 = vmul.f32 %v2174, %v2180
        %v2182 = vmul.f32 %v2178, %v2180
        %2183 = vset.pattern.permute.xlu0 14
        %2184 = vperm.xlu0 %2183, %v1844
        %v2185 = vpop.permute.xlu0 %2184
        %2187 = vset.pattern.permute.xlu0 14
        %2188 = vperm.xlu0 %2187, %v1845
        %v2189 = vpop.permute.xlu0 %2188
        %v2191 = vadd.f32 %v2181, %v2185
        %v2192 = vadd.f32 %v2182, %v2189
        %v2193 = vmax.f32 %v2170, %v2191
        %v2194 = vmax.f32 %v2171, %v2192
        %2195 = vset.pattern.permute.xlu0 15
        %2196 = vperm.xlu0 %2195, %v1842
        %v2197 = vpop.permute.xlu0 %2196
        %2199 = vset.pattern.permute.xlu0 15
        %2200 = vperm.xlu0 %2199, %v1843
        %v2201 = vpop.permute.xlu0 %2200
        %v2203 = vperm.slane %v1834, 7
        %v2204 = vmul.f32 %v2197, %v2203
        %v2205 = vmul.f32 %v2201, %v2203
        %2206 = vset.pattern.permute.xlu0 15
        %2207 = vperm.xlu0 %2206, %v1844
        %v2208 = vpop.permute.xlu0 %2207
        %2210 = vset.pattern.permute.xlu0 15
        %2211 = vperm.xlu0 %2210, %v1845
        %v2212 = vpop.permute.xlu0 %2211
        %v2214 = vadd.f32 %v2204, %v2208
        %v2215 = vadd.f32 %v2205, %v2212
        %v2216 = vmax.f32 %v2193, %v2214
        %v2217 = vmax.f32 %v2194, %v2215
        %vm2218 = vcmp.gt.f32.partialorder %v2216, -1e+38
        %vm2219 = vcmp.gt.f32.partialorder %v2217, -1e+38
        %v2220 = vsel %vm2218, %v2216, 0.0
        %v2221 = vsel %vm2219, %v2217, 0.0
        %v2222 = vmul.f32 %v592, %v1833
        %v2223 = vmul.f32 %v592, %v1834
        %v2224 = vmul.f32 %v595, %v2220
        %v2225 = vmul.f32 %v595, %v2221
        %v2226 = vadd.f32 %v2222, %v2224
        %v2227 = vadd.f32 %v2223, %v2225
        %v2228 = vadd.f32 %v2226, %v2227
        %v2229 = vrot.slane %v2228, 4
        %v2230 = vadd.f32 %v2228, %v2229
        %v2231 = vrot.slane %v2230, 2
        %v2232 = vadd.f32 %v2230, %v2231
        %v2233 = vrot.slane %v2232, 1
        %v2234 = vadd.f32 %v2232, %v2233
        %vm2235 = vcmp.eq.s32.totalorder %v203, 4
        %v2236 = vsel %vm2235, 1, 0
        %vm2237 = vcmp.eq.s32.totalorder %v2236, 1
        %v2238 = vsel %vm2237, %v2234, %v1831
        %s2239 = scalar_lea.vmem %s191, 80
        %v2240 = vld [vmem:[%s2239] sm:$0xff]
        %v2241 = vld [vmem:[%s2239 + $0x8] sm:$0xff]
        %s2242 = scalar_lea.vmem %s198, 80
        %v2243 = vld [vmem:[%s2242] sm:$0xff]
        %v2244 = vld [vmem:[%s2242 + $0x8] sm:$0xff]
        %vm2245 = vcmp.ne.f32.partialorder %v2243, %v2243
        %vm2246 = vcmp.ne.f32.partialorder %v2244, %v2244
        %vm2247 = vmxor %vm2245, 1
        %vm2248 = vmxor %vm2246, 1
        %v2249 = vsel %vm2247, %v2243, 0.0
        %v2250 = vsel %vm2248, %v2244, 0.0
        %v2251 = vsel %vm2247, 0.0, -3.4e+38
        %v2252 = vsel %vm2248, 0.0, -3.4e+38
        %2254 = vset.pattern.permute.xlu0 0
        %2255 = vperm.xlu0 %2254, %v2249
        %v2256 = vpop.permute.xlu0 %2255
        %2259 = vset.pattern.permute.xlu0 0
        %2260 = vperm.xlu0 %2259, %v2250
        %v2261 = vpop.permute.xlu0 %2260
        %v2263 = vperm.slane %v2240, 0
        %v2264 = vmul.f32 %v2256, %v2263
        %v2265 = vmul.f32 %v2261, %v2263
        %2267 = vset.pattern.permute.xlu0 0
        %2268 = vperm.xlu0 %2267, %v2251
        %v2269 = vpop.permute.xlu0 %2268
        %2272 = vset.pattern.permute.xlu0 0
        %2273 = vperm.xlu0 %2272, %v2252
        %v2274 = vpop.permute.xlu0 %2273
        %v2276 = vadd.f32 %v2264, %v2269
        %v2277 = vadd.f32 %v2265, %v2274
        %v2278 = vmax.f32 %v2276, -3.4e+38
        %v2279 = vmax.f32 %v2277, -3.4e+38
        %2280 = vset.pattern.permute.xlu0 1
        %2281 = vperm.xlu0 %2280, %v2249
        %v2282 = vpop.permute.xlu0 %2281
        %2284 = vset.pattern.permute.xlu0 1
        %2285 = vperm.xlu0 %2284, %v2250
        %v2286 = vpop.permute.xlu0 %2285
        %v2288 = vperm.slane %v2240, 1
        %v2289 = vmul.f32 %v2282, %v2288
        %v2290 = vmul.f32 %v2286, %v2288
        %2291 = vset.pattern.permute.xlu0 1
        %2292 = vperm.xlu0 %2291, %v2251
        %v2293 = vpop.permute.xlu0 %2292
        %2295 = vset.pattern.permute.xlu0 1
        %2296 = vperm.xlu0 %2295, %v2252
        %v2297 = vpop.permute.xlu0 %2296
        %v2299 = vadd.f32 %v2289, %v2293
        %v2300 = vadd.f32 %v2290, %v2297
        %v2301 = vmax.f32 %v2278, %v2299
        %v2302 = vmax.f32 %v2279, %v2300
        %2303 = vset.pattern.permute.xlu0 2
        %2304 = vperm.xlu0 %2303, %v2249
        %v2305 = vpop.permute.xlu0 %2304
        %2307 = vset.pattern.permute.xlu0 2
        %2308 = vperm.xlu0 %2307, %v2250
        %v2309 = vpop.permute.xlu0 %2308
        %v2311 = vperm.slane %v2240, 2
        %v2312 = vmul.f32 %v2305, %v2311
        %v2313 = vmul.f32 %v2309, %v2311
        %2314 = vset.pattern.permute.xlu0 2
        %2315 = vperm.xlu0 %2314, %v2251
        %v2316 = vpop.permute.xlu0 %2315
        %2318 = vset.pattern.permute.xlu0 2
        %2319 = vperm.xlu0 %2318, %v2252
        %v2320 = vpop.permute.xlu0 %2319
        %v2322 = vadd.f32 %v2312, %v2316
        %v2323 = vadd.f32 %v2313, %v2320
        %v2324 = vmax.f32 %v2301, %v2322
        %v2325 = vmax.f32 %v2302, %v2323
        %2326 = vset.pattern.permute.xlu0 3
        %2327 = vperm.xlu0 %2326, %v2249
        %v2328 = vpop.permute.xlu0 %2327
        %2330 = vset.pattern.permute.xlu0 3
        %2331 = vperm.xlu0 %2330, %v2250
        %v2332 = vpop.permute.xlu0 %2331
        %v2334 = vperm.slane %v2240, 3
        %v2335 = vmul.f32 %v2328, %v2334
        %v2336 = vmul.f32 %v2332, %v2334
        %2337 = vset.pattern.permute.xlu0 3
        %2338 = vperm.xlu0 %2337, %v2251
        %v2339 = vpop.permute.xlu0 %2338
        %2341 = vset.pattern.permute.xlu0 3
        %2342 = vperm.xlu0 %2341, %v2252
        %v2343 = vpop.permute.xlu0 %2342
        %v2345 = vadd.f32 %v2335, %v2339
        %v2346 = vadd.f32 %v2336, %v2343
        %v2347 = vmax.f32 %v2324, %v2345
        %v2348 = vmax.f32 %v2325, %v2346
        %2349 = vset.pattern.permute.xlu0 4
        %2350 = vperm.xlu0 %2349, %v2249
        %v2351 = vpop.permute.xlu0 %2350
        %2353 = vset.pattern.permute.xlu0 4
        %2354 = vperm.xlu0 %2353, %v2250
        %v2355 = vpop.permute.xlu0 %2354
        %v2357 = vperm.slane %v2240, 4
        %v2358 = vmul.f32 %v2351, %v2357
        %v2359 = vmul.f32 %v2355, %v2357
        %2360 = vset.pattern.permute.xlu0 4
        %2361 = vperm.xlu0 %2360, %v2251
        %v2362 = vpop.permute.xlu0 %2361
        %2364 = vset.pattern.permute.xlu0 4
        %2365 = vperm.xlu0 %2364, %v2252
        %v2366 = vpop.permute.xlu0 %2365
        %v2368 = vadd.f32 %v2358, %v2362
        %v2369 = vadd.f32 %v2359, %v2366
        %v2370 = vmax.f32 %v2347, %v2368
        %v2371 = vmax.f32 %v2348, %v2369
        %2372 = vset.pattern.permute.xlu0 5
        %2373 = vperm.xlu0 %2372, %v2249
        %v2374 = vpop.permute.xlu0 %2373
        %2376 = vset.pattern.permute.xlu0 5
        %2377 = vperm.xlu0 %2376, %v2250
        %v2378 = vpop.permute.xlu0 %2377
        %v2380 = vperm.slane %v2240, 5
        %v2381 = vmul.f32 %v2374, %v2380
        %v2382 = vmul.f32 %v2378, %v2380
        %2383 = vset.pattern.permute.xlu0 5
        %2384 = vperm.xlu0 %2383, %v2251
        %v2385 = vpop.permute.xlu0 %2384
        %2387 = vset.pattern.permute.xlu0 5
        %2388 = vperm.xlu0 %2387, %v2252
        %v2389 = vpop.permute.xlu0 %2388
        %v2391 = vadd.f32 %v2381, %v2385
        %v2392 = vadd.f32 %v2382, %v2389
        %v2393 = vmax.f32 %v2370, %v2391
        %v2394 = vmax.f32 %v2371, %v2392
        %2395 = vset.pattern.permute.xlu0 6
        %2396 = vperm.xlu0 %2395, %v2249
        %v2397 = vpop.permute.xlu0 %2396
        %2399 = vset.pattern.permute.xlu0 6
        %2400 = vperm.xlu0 %2399, %v2250
        %v2401 = vpop.permute.xlu0 %2400
        %v2403 = vperm.slane %v2240, 6
        %v2404 = vmul.f32 %v2397, %v2403
        %v2405 = vmul.f32 %v2401, %v2403
        %2406 = vset.pattern.permute.xlu0 6
        %2407 = vperm.xlu0 %2406, %v2251
        %v2408 = vpop.permute.xlu0 %2407
        %2410 = vset.pattern.permute.xlu0 6
        %2411 = vperm.xlu0 %2410, %v2252
        %v2412 = vpop.permute.xlu0 %2411
        %v2414 = vadd.f32 %v2404, %v2408
        %v2415 = vadd.f32 %v2405, %v2412
        %v2416 = vmax.f32 %v2393, %v2414
        %v2417 = vmax.f32 %v2394, %v2415
        %2418 = vset.pattern.permute.xlu0 7
        %2419 = vperm.xlu0 %2418, %v2249
        %v2420 = vpop.permute.xlu0 %2419
        %2422 = vset.pattern.permute.xlu0 7
        %2423 = vperm.xlu0 %2422, %v2250
        %v2424 = vpop.permute.xlu0 %2423
        %v2426 = vperm.slane %v2240, 7
        %v2427 = vmul.f32 %v2420, %v2426
        %v2428 = vmul.f32 %v2424, %v2426
        %2429 = vset.pattern.permute.xlu0 7
        %2430 = vperm.xlu0 %2429, %v2251
        %v2431 = vpop.permute.xlu0 %2430
        %2433 = vset.pattern.permute.xlu0 7
        %2434 = vperm.xlu0 %2433, %v2252
        %v2435 = vpop.permute.xlu0 %2434
        %v2437 = vadd.f32 %v2427, %v2431
        %v2438 = vadd.f32 %v2428, %v2435
        %v2439 = vmax.f32 %v2416, %v2437
        %v2440 = vmax.f32 %v2417, %v2438
        %2441 = vset.pattern.permute.xlu0 8
        %2442 = vperm.xlu0 %2441, %v2249
        %v2443 = vpop.permute.xlu0 %2442
        %2445 = vset.pattern.permute.xlu0 8
        %2446 = vperm.xlu0 %2445, %v2250
        %v2447 = vpop.permute.xlu0 %2446
        %v2449 = vperm.slane %v2241, 0
        %v2450 = vmul.f32 %v2443, %v2449
        %v2451 = vmul.f32 %v2447, %v2449
        %2452 = vset.pattern.permute.xlu0 8
        %2453 = vperm.xlu0 %2452, %v2251
        %v2454 = vpop.permute.xlu0 %2453
        %2456 = vset.pattern.permute.xlu0 8
        %2457 = vperm.xlu0 %2456, %v2252
        %v2458 = vpop.permute.xlu0 %2457
        %v2460 = vadd.f32 %v2450, %v2454
        %v2461 = vadd.f32 %v2451, %v2458
        %v2462 = vmax.f32 %v2439, %v2460
        %v2463 = vmax.f32 %v2440, %v2461
        %2464 = vset.pattern.permute.xlu0 9
        %2465 = vperm.xlu0 %2464, %v2249
        %v2466 = vpop.permute.xlu0 %2465
        %2468 = vset.pattern.permute.xlu0 9
        %2469 = vperm.xlu0 %2468, %v2250
        %v2470 = vpop.permute.xlu0 %2469
        %v2472 = vperm.slane %v2241, 1
        %v2473 = vmul.f32 %v2466, %v2472
        %v2474 = vmul.f32 %v2470, %v2472
        %2475 = vset.pattern.permute.xlu0 9
        %2476 = vperm.xlu0 %2475, %v2251
        %v2477 = vpop.permute.xlu0 %2476
        %2479 = vset.pattern.permute.xlu0 9
        %2480 = vperm.xlu0 %2479, %v2252
        %v2481 = vpop.permute.xlu0 %2480
        %v2483 = vadd.f32 %v2473, %v2477
        %v2484 = vadd.f32 %v2474, %v2481
        %v2485 = vmax.f32 %v2462, %v2483
        %v2486 = vmax.f32 %v2463, %v2484
        %2487 = vset.pattern.permute.xlu0 10
        %2488 = vperm.xlu0 %2487, %v2249
        %v2489 = vpop.permute.xlu0 %2488
        %2491 = vset.pattern.permute.xlu0 10
        %2492 = vperm.xlu0 %2491, %v2250
        %v2493 = vpop.permute.xlu0 %2492
        %v2495 = vperm.slane %v2241, 2
        %v2496 = vmul.f32 %v2489, %v2495
        %v2497 = vmul.f32 %v2493, %v2495
        %2498 = vset.pattern.permute.xlu0 10
        %2499 = vperm.xlu0 %2498, %v2251
        %v2500 = vpop.permute.xlu0 %2499
        %2502 = vset.pattern.permute.xlu0 10
        %2503 = vperm.xlu0 %2502, %v2252
        %v2504 = vpop.permute.xlu0 %2503
        %v2506 = vadd.f32 %v2496, %v2500
        %v2507 = vadd.f32 %v2497, %v2504
        %v2508 = vmax.f32 %v2485, %v2506
        %v2509 = vmax.f32 %v2486, %v2507
        %2510 = vset.pattern.permute.xlu0 11
        %2511 = vperm.xlu0 %2510, %v2249
        %v2512 = vpop.permute.xlu0 %2511
        %2514 = vset.pattern.permute.xlu0 11
        %2515 = vperm.xlu0 %2514, %v2250
        %v2516 = vpop.permute.xlu0 %2515
        %v2518 = vperm.slane %v2241, 3
        %v2519 = vmul.f32 %v2512, %v2518
        %v2520 = vmul.f32 %v2516, %v2518
        %2521 = vset.pattern.permute.xlu0 11
        %2522 = vperm.xlu0 %2521, %v2251
        %v2523 = vpop.permute.xlu0 %2522
        %2525 = vset.pattern.permute.xlu0 11
        %2526 = vperm.xlu0 %2525, %v2252
        %v2527 = vpop.permute.xlu0 %2526
        %v2529 = vadd.f32 %v2519, %v2523
        %v2530 = vadd.f32 %v2520, %v2527
        %v2531 = vmax.f32 %v2508, %v2529
        %v2532 = vmax.f32 %v2509, %v2530
        %2533 = vset.pattern.permute.xlu0 12
        %2534 = vperm.xlu0 %2533, %v2249
        %v2535 = vpop.permute.xlu0 %2534
        %2537 = vset.pattern.permute.xlu0 12
        %2538 = vperm.xlu0 %2537, %v2250
        %v2539 = vpop.permute.xlu0 %2538
        %v2541 = vperm.slane %v2241, 4
        %v2542 = vmul.f32 %v2535, %v2541
        %v2543 = vmul.f32 %v2539, %v2541
        %2544 = vset.pattern.permute.xlu0 12
        %2545 = vperm.xlu0 %2544, %v2251
        %v2546 = vpop.permute.xlu0 %2545
        %2548 = vset.pattern.permute.xlu0 12
        %2549 = vperm.xlu0 %2548, %v2252
        %v2550 = vpop.permute.xlu0 %2549
        %v2552 = vadd.f32 %v2542, %v2546
        %v2553 = vadd.f32 %v2543, %v2550
        %v2554 = vmax.f32 %v2531, %v2552
        %v2555 = vmax.f32 %v2532, %v2553
        %2556 = vset.pattern.permute.xlu0 13
        %2557 = vperm.xlu0 %2556, %v2249
        %v2558 = vpop.permute.xlu0 %2557
        %2560 = vset.pattern.permute.xlu0 13
        %2561 = vperm.xlu0 %2560, %v2250
        %v2562 = vpop.permute.xlu0 %2561
        %v2564 = vperm.slane %v2241, 5
        %v2565 = vmul.f32 %v2558, %v2564
        %v2566 = vmul.f32 %v2562, %v2564
        %2567 = vset.pattern.permute.xlu0 13
        %2568 = vperm.xlu0 %2567, %v2251
        %v2569 = vpop.permute.xlu0 %2568
        %2571 = vset.pattern.permute.xlu0 13
        %2572 = vperm.xlu0 %2571, %v2252
        %v2573 = vpop.permute.xlu0 %2572
        %v2575 = vadd.f32 %v2565, %v2569
        %v2576 = vadd.f32 %v2566, %v2573
        %v2577 = vmax.f32 %v2554, %v2575
        %v2578 = vmax.f32 %v2555, %v2576
        %2579 = vset.pattern.permute.xlu0 14
        %2580 = vperm.xlu0 %2579, %v2249
        %v2581 = vpop.permute.xlu0 %2580
        %2583 = vset.pattern.permute.xlu0 14
        %2584 = vperm.xlu0 %2583, %v2250
        %v2585 = vpop.permute.xlu0 %2584
        %v2587 = vperm.slane %v2241, 6
        %v2588 = vmul.f32 %v2581, %v2587
        %v2589 = vmul.f32 %v2585, %v2587
        %2590 = vset.pattern.permute.xlu0 14
        %2591 = vperm.xlu0 %2590, %v2251
        %v2592 = vpop.permute.xlu0 %2591
        %2594 = vset.pattern.permute.xlu0 14
        %2595 = vperm.xlu0 %2594, %v2252
        %v2596 = vpop.permute.xlu0 %2595
        %v2598 = vadd.f32 %v2588, %v2592
        %v2599 = vadd.f32 %v2589, %v2596
        %v2600 = vmax.f32 %v2577, %v2598
        %v2601 = vmax.f32 %v2578, %v2599
        %2602 = vset.pattern.permute.xlu0 15
        %2603 = vperm.xlu0 %2602, %v2249
        %v2604 = vpop.permute.xlu0 %2603
        %2606 = vset.pattern.permute.xlu0 15
        %2607 = vperm.xlu0 %2606, %v2250
        %v2608 = vpop.permute.xlu0 %2607
        %v2610 = vperm.slane %v2241, 7
        %v2611 = vmul.f32 %v2604, %v2610
        %v2612 = vmul.f32 %v2608, %v2610
        %2613 = vset.pattern.permute.xlu0 15
        %2614 = vperm.xlu0 %2613, %v2251
        %v2615 = vpop.permute.xlu0 %2614
        %2617 = vset.pattern.permute.xlu0 15
        %2618 = vperm.xlu0 %2617, %v2252
        %v2619 = vpop.permute.xlu0 %2618
        %v2621 = vadd.f32 %v2611, %v2615
        %v2622 = vadd.f32 %v2612, %v2619
        %v2623 = vmax.f32 %v2600, %v2621
        %v2624 = vmax.f32 %v2601, %v2622
        %vm2625 = vcmp.gt.f32.partialorder %v2623, -1e+38
        %vm2626 = vcmp.gt.f32.partialorder %v2624, -1e+38
        %v2627 = vsel %vm2625, %v2623, 0.0
        %v2628 = vsel %vm2626, %v2624, 0.0
        %v2629 = vmul.f32 %v592, %v2240
        %v2630 = vmul.f32 %v592, %v2241
        %v2631 = vmul.f32 %v595, %v2627
        %v2632 = vmul.f32 %v595, %v2628
        %v2633 = vadd.f32 %v2629, %v2631
        %v2634 = vadd.f32 %v2630, %v2632
        %v2635 = vadd.f32 %v2633, %v2634
        %v2636 = vrot.slane %v2635, 4
        %v2637 = vadd.f32 %v2635, %v2636
        %v2638 = vrot.slane %v2637, 2
        %v2639 = vadd.f32 %v2637, %v2638
        %v2640 = vrot.slane %v2639, 1
        %v2641 = vadd.f32 %v2639, %v2640
        %vm2642 = vcmp.eq.s32.totalorder %v203, 5
        %v2643 = vsel %vm2642, 1, 0
        %vm2644 = vcmp.eq.s32.totalorder %v2643, 1
        %v2645 = vsel %vm2644, %v2641, %v2238
        %s2646 = scalar_lea.vmem %s191, 96
        %v2647 = vld [vmem:[%s2646] sm:$0xff]
        %v2648 = vld [vmem:[%s2646 + $0x8] sm:$0xff]
        %s2649 = scalar_lea.vmem %s198, 96
        %v2650 = vld [vmem:[%s2649] sm:$0xff]
        %v2651 = vld [vmem:[%s2649 + $0x8] sm:$0xff]
        %vm2652 = vcmp.ne.f32.partialorder %v2650, %v2650
        %vm2653 = vcmp.ne.f32.partialorder %v2651, %v2651
        %vm2654 = vmxor %vm2652, 1
        %vm2655 = vmxor %vm2653, 1
        %v2656 = vsel %vm2654, %v2650, 0.0
        %v2657 = vsel %vm2655, %v2651, 0.0
        %v2658 = vsel %vm2654, 0.0, -3.4e+38
        %v2659 = vsel %vm2655, 0.0, -3.4e+38
        %2661 = vset.pattern.permute.xlu0 0
        %2662 = vperm.xlu0 %2661, %v2656
        %v2663 = vpop.permute.xlu0 %2662
        %2666 = vset.pattern.permute.xlu0 0
        %2667 = vperm.xlu0 %2666, %v2657
        %v2668 = vpop.permute.xlu0 %2667
        %v2670 = vperm.slane %v2647, 0
        %v2671 = vmul.f32 %v2663, %v2670
        %v2672 = vmul.f32 %v2668, %v2670
        %2674 = vset.pattern.permute.xlu0 0
        %2675 = vperm.xlu0 %2674, %v2658
        %v2676 = vpop.permute.xlu0 %2675
        %2679 = vset.pattern.permute.xlu0 0
        %2680 = vperm.xlu0 %2679, %v2659
        %v2681 = vpop.permute.xlu0 %2680
        %v2683 = vadd.f32 %v2671, %v2676
        %v2684 = vadd.f32 %v2672, %v2681
        %v2685 = vmax.f32 %v2683, -3.4e+38
        %v2686 = vmax.f32 %v2684, -3.4e+38
        %2687 = vset.pattern.permute.xlu0 1
        %2688 = vperm.xlu0 %2687, %v2656
        %v2689 = vpop.permute.xlu0 %2688
        %2691 = vset.pattern.permute.xlu0 1
        %2692 = vperm.xlu0 %2691, %v2657
        %v2693 = vpop.permute.xlu0 %2692
        %v2695 = vperm.slane %v2647, 1
        %v2696 = vmul.f32 %v2689, %v2695
        %v2697 = vmul.f32 %v2693, %v2695
        %2698 = vset.pattern.permute.xlu0 1
        %2699 = vperm.xlu0 %2698, %v2658
        %v2700 = vpop.permute.xlu0 %2699
        %2702 = vset.pattern.permute.xlu0 1
        %2703 = vperm.xlu0 %2702, %v2659
        %v2704 = vpop.permute.xlu0 %2703
        %v2706 = vadd.f32 %v2696, %v2700
        %v2707 = vadd.f32 %v2697, %v2704
        %v2708 = vmax.f32 %v2685, %v2706
        %v2709 = vmax.f32 %v2686, %v2707
        %2710 = vset.pattern.permute.xlu0 2
        %2711 = vperm.xlu0 %2710, %v2656
        %v2712 = vpop.permute.xlu0 %2711
        %2714 = vset.pattern.permute.xlu0 2
        %2715 = vperm.xlu0 %2714, %v2657
        %v2716 = vpop.permute.xlu0 %2715
        %v2718 = vperm.slane %v2647, 2
        %v2719 = vmul.f32 %v2712, %v2718
        %v2720 = vmul.f32 %v2716, %v2718
        %2721 = vset.pattern.permute.xlu0 2
        %2722 = vperm.xlu0 %2721, %v2658
        %v2723 = vpop.permute.xlu0 %2722
        %2725 = vset.pattern.permute.xlu0 2
        %2726 = vperm.xlu0 %2725, %v2659
        %v2727 = vpop.permute.xlu0 %2726
        %v2729 = vadd.f32 %v2719, %v2723
        %v2730 = vadd.f32 %v2720, %v2727
        %v2731 = vmax.f32 %v2708, %v2729
        %v2732 = vmax.f32 %v2709, %v2730
        %2733 = vset.pattern.permute.xlu0 3
        %2734 = vperm.xlu0 %2733, %v2656
        %v2735 = vpop.permute.xlu0 %2734
        %2737 = vset.pattern.permute.xlu0 3
        %2738 = vperm.xlu0 %2737, %v2657
        %v2739 = vpop.permute.xlu0 %2738
        %v2741 = vperm.slane %v2647, 3
        %v2742 = vmul.f32 %v2735, %v2741
        %v2743 = vmul.f32 %v2739, %v2741
        %2744 = vset.pattern.permute.xlu0 3
        %2745 = vperm.xlu0 %2744, %v2658
        %v2746 = vpop.permute.xlu0 %2745
        %2748 = vset.pattern.permute.xlu0 3
        %2749 = vperm.xlu0 %2748, %v2659
        %v2750 = vpop.permute.xlu0 %2749
        %v2752 = vadd.f32 %v2742, %v2746
        %v2753 = vadd.f32 %v2743, %v2750
        %v2754 = vmax.f32 %v2731, %v2752
        %v2755 = vmax.f32 %v2732, %v2753
        %2756 = vset.pattern.permute.xlu0 4
        %2757 = vperm.xlu0 %2756, %v2656
        %v2758 = vpop.permute.xlu0 %2757
        %2760 = vset.pattern.permute.xlu0 4
        %2761 = vperm.xlu0 %2760, %v2657
        %v2762 = vpop.permute.xlu0 %2761
        %v2764 = vperm.slane %v2647, 4
        %v2765 = vmul.f32 %v2758, %v2764
        %v2766 = vmul.f32 %v2762, %v2764
        %2767 = vset.pattern.permute.xlu0 4
        %2768 = vperm.xlu0 %2767, %v2658
        %v2769 = vpop.permute.xlu0 %2768
        %2771 = vset.pattern.permute.xlu0 4
        %2772 = vperm.xlu0 %2771, %v2659
        %v2773 = vpop.permute.xlu0 %2772
        %v2775 = vadd.f32 %v2765, %v2769
        %v2776 = vadd.f32 %v2766, %v2773
        %v2777 = vmax.f32 %v2754, %v2775
        %v2778 = vmax.f32 %v2755, %v2776
        %2779 = vset.pattern.permute.xlu0 5
        %2780 = vperm.xlu0 %2779, %v2656
        %v2781 = vpop.permute.xlu0 %2780
        %2783 = vset.pattern.permute.xlu0 5
        %2784 = vperm.xlu0 %2783, %v2657
        %v2785 = vpop.permute.xlu0 %2784
        %v2787 = vperm.slane %v2647, 5
        %v2788 = vmul.f32 %v2781, %v2787
        %v2789 = vmul.f32 %v2785, %v2787
        %2790 = vset.pattern.permute.xlu0 5
        %2791 = vperm.xlu0 %2790, %v2658
        %v2792 = vpop.permute.xlu0 %2791
        %2794 = vset.pattern.permute.xlu0 5
        %2795 = vperm.xlu0 %2794, %v2659
        %v2796 = vpop.permute.xlu0 %2795
        %v2798 = vadd.f32 %v2788, %v2792
        %v2799 = vadd.f32 %v2789, %v2796
        %v2800 = vmax.f32 %v2777, %v2798
        %v2801 = vmax.f32 %v2778, %v2799
        %2802 = vset.pattern.permute.xlu0 6
        %2803 = vperm.xlu0 %2802, %v2656
        %v2804 = vpop.permute.xlu0 %2803
        %2806 = vset.pattern.permute.xlu0 6
        %2807 = vperm.xlu0 %2806, %v2657
        %v2808 = vpop.permute.xlu0 %2807
        %v2810 = vperm.slane %v2647, 6
        %v2811 = vmul.f32 %v2804, %v2810
        %v2812 = vmul.f32 %v2808, %v2810
        %2813 = vset.pattern.permute.xlu0 6
        %2814 = vperm.xlu0 %2813, %v2658
        %v2815 = vpop.permute.xlu0 %2814
        %2817 = vset.pattern.permute.xlu0 6
        %2818 = vperm.xlu0 %2817, %v2659
        %v2819 = vpop.permute.xlu0 %2818
        %v2821 = vadd.f32 %v2811, %v2815
        %v2822 = vadd.f32 %v2812, %v2819
        %v2823 = vmax.f32 %v2800, %v2821
        %v2824 = vmax.f32 %v2801, %v2822
        %2825 = vset.pattern.permute.xlu0 7
        %2826 = vperm.xlu0 %2825, %v2656
        %v2827 = vpop.permute.xlu0 %2826
        %2829 = vset.pattern.permute.xlu0 7
        %2830 = vperm.xlu0 %2829, %v2657
        %v2831 = vpop.permute.xlu0 %2830
        %v2833 = vperm.slane %v2647, 7
        %v2834 = vmul.f32 %v2827, %v2833
        %v2835 = vmul.f32 %v2831, %v2833
        %2836 = vset.pattern.permute.xlu0 7
        %2837 = vperm.xlu0 %2836, %v2658
        %v2838 = vpop.permute.xlu0 %2837
        %2840 = vset.pattern.permute.xlu0 7
        %2841 = vperm.xlu0 %2840, %v2659
        %v2842 = vpop.permute.xlu0 %2841
        %v2844 = vadd.f32 %v2834, %v2838
        %v2845 = vadd.f32 %v2835, %v2842
        %v2846 = vmax.f32 %v2823, %v2844
        %v2847 = vmax.f32 %v2824, %v2845
        %2848 = vset.pattern.permute.xlu0 8
        %2849 = vperm.xlu0 %2848, %v2656
        %v2850 = vpop.permute.xlu0 %2849
        %2852 = vset.pattern.permute.xlu0 8
        %2853 = vperm.xlu0 %2852, %v2657
        %v2854 = vpop.permute.xlu0 %2853
        %v2856 = vperm.slane %v2648, 0
        %v2857 = vmul.f32 %v2850, %v2856
        %v2858 = vmul.f32 %v2854, %v2856
        %2859 = vset.pattern.permute.xlu0 8
        %2860 = vperm.xlu0 %2859, %v2658
        %v2861 = vpop.permute.xlu0 %2860
        %2863 = vset.pattern.permute.xlu0 8
        %2864 = vperm.xlu0 %2863, %v2659
        %v2865 = vpop.permute.xlu0 %2864
        %v2867 = vadd.f32 %v2857, %v2861
        %v2868 = vadd.f32 %v2858, %v2865
        %v2869 = vmax.f32 %v2846, %v2867
        %v2870 = vmax.f32 %v2847, %v2868
        %2871 = vset.pattern.permute.xlu0 9
        %2872 = vperm.xlu0 %2871, %v2656
        %v2873 = vpop.permute.xlu0 %2872
        %2875 = vset.pattern.permute.xlu0 9
        %2876 = vperm.xlu0 %2875, %v2657
        %v2877 = vpop.permute.xlu0 %2876
        %v2879 = vperm.slane %v2648, 1
        %v2880 = vmul.f32 %v2873, %v2879
        %v2881 = vmul.f32 %v2877, %v2879
        %2882 = vset.pattern.permute.xlu0 9
        %2883 = vperm.xlu0 %2882, %v2658
        %v2884 = vpop.permute.xlu0 %2883
        %2886 = vset.pattern.permute.xlu0 9
        %2887 = vperm.xlu0 %2886, %v2659
        %v2888 = vpop.permute.xlu0 %2887
        %v2890 = vadd.f32 %v2880, %v2884
        %v2891 = vadd.f32 %v2881, %v2888
        %v2892 = vmax.f32 %v2869, %v2890
        %v2893 = vmax.f32 %v2870, %v2891
        %2894 = vset.pattern.permute.xlu0 10
        %2895 = vperm.xlu0 %2894, %v2656
        %v2896 = vpop.permute.xlu0 %2895
        %2898 = vset.pattern.permute.xlu0 10
        %2899 = vperm.xlu0 %2898, %v2657
        %v2900 = vpop.permute.xlu0 %2899
        %v2902 = vperm.slane %v2648, 2
        %v2903 = vmul.f32 %v2896, %v2902
        %v2904 = vmul.f32 %v2900, %v2902
        %2905 = vset.pattern.permute.xlu0 10
        %2906 = vperm.xlu0 %2905, %v2658
        %v2907 = vpop.permute.xlu0 %2906
        %2909 = vset.pattern.permute.xlu0 10
        %2910 = vperm.xlu0 %2909, %v2659
        %v2911 = vpop.permute.xlu0 %2910
        %v2913 = vadd.f32 %v2903, %v2907
        %v2914 = vadd.f32 %v2904, %v2911
        %v2915 = vmax.f32 %v2892, %v2913
        %v2916 = vmax.f32 %v2893, %v2914
        %2917 = vset.pattern.permute.xlu0 11
        %2918 = vperm.xlu0 %2917, %v2656
        %v2919 = vpop.permute.xlu0 %2918
        %2921 = vset.pattern.permute.xlu0 11
        %2922 = vperm.xlu0 %2921, %v2657
        %v2923 = vpop.permute.xlu0 %2922
        %v2925 = vperm.slane %v2648, 3
        %v2926 = vmul.f32 %v2919, %v2925
        %v2927 = vmul.f32 %v2923, %v2925
        %2928 = vset.pattern.permute.xlu0 11
        %2929 = vperm.xlu0 %2928, %v2658
        %v2930 = vpop.permute.xlu0 %2929
        %2932 = vset.pattern.permute.xlu0 11
        %2933 = vperm.xlu0 %2932, %v2659
        %v2934 = vpop.permute.xlu0 %2933
        %v2936 = vadd.f32 %v2926, %v2930
        %v2937 = vadd.f32 %v2927, %v2934
        %v2938 = vmax.f32 %v2915, %v2936
        %v2939 = vmax.f32 %v2916, %v2937
        %2940 = vset.pattern.permute.xlu0 12
        %2941 = vperm.xlu0 %2940, %v2656
        %v2942 = vpop.permute.xlu0 %2941
        %2944 = vset.pattern.permute.xlu0 12
        %2945 = vperm.xlu0 %2944, %v2657
        %v2946 = vpop.permute.xlu0 %2945
        %v2948 = vperm.slane %v2648, 4
        %v2949 = vmul.f32 %v2942, %v2948
        %v2950 = vmul.f32 %v2946, %v2948
        %2951 = vset.pattern.permute.xlu0 12
        %2952 = vperm.xlu0 %2951, %v2658
        %v2953 = vpop.permute.xlu0 %2952
        %2955 = vset.pattern.permute.xlu0 12
        %2956 = vperm.xlu0 %2955, %v2659
        %v2957 = vpop.permute.xlu0 %2956
        %v2959 = vadd.f32 %v2949, %v2953
        %v2960 = vadd.f32 %v2950, %v2957
        %v2961 = vmax.f32 %v2938, %v2959
        %v2962 = vmax.f32 %v2939, %v2960
        %2963 = vset.pattern.permute.xlu0 13
        %2964 = vperm.xlu0 %2963, %v2656
        %v2965 = vpop.permute.xlu0 %2964
        %2967 = vset.pattern.permute.xlu0 13
        %2968 = vperm.xlu0 %2967, %v2657
        %v2969 = vpop.permute.xlu0 %2968
        %v2971 = vperm.slane %v2648, 5
        %v2972 = vmul.f32 %v2965, %v2971
        %v2973 = vmul.f32 %v2969, %v2971
        %2974 = vset.pattern.permute.xlu0 13
        %2975 = vperm.xlu0 %2974, %v2658
        %v2976 = vpop.permute.xlu0 %2975
        %2978 = vset.pattern.permute.xlu0 13
        %2979 = vperm.xlu0 %2978, %v2659
        %v2980 = vpop.permute.xlu0 %2979
        %v2982 = vadd.f32 %v2972, %v2976
        %v2983 = vadd.f32 %v2973, %v2980
        %v2984 = vmax.f32 %v2961, %v2982
        %v2985 = vmax.f32 %v2962, %v2983
        %2986 = vset.pattern.permute.xlu0 14
        %2987 = vperm.xlu0 %2986, %v2656
        %v2988 = vpop.permute.xlu0 %2987
        %2990 = vset.pattern.permute.xlu0 14
        %2991 = vperm.xlu0 %2990, %v2657
        %v2992 = vpop.permute.xlu0 %2991
        %v2994 = vperm.slane %v2648, 6
        %v2995 = vmul.f32 %v2988, %v2994
        %v2996 = vmul.f32 %v2992, %v2994
        %2997 = vset.pattern.permute.xlu0 14
        %2998 = vperm.xlu0 %2997, %v2658
        %v2999 = vpop.permute.xlu0 %2998
        %3001 = vset.pattern.permute.xlu0 14
        %3002 = vperm.xlu0 %3001, %v2659
        %v3003 = vpop.permute.xlu0 %3002
        %v3005 = vadd.f32 %v2995, %v2999
        %v3006 = vadd.f32 %v2996, %v3003
        %v3007 = vmax.f32 %v2984, %v3005
        %v3008 = vmax.f32 %v2985, %v3006
        %3009 = vset.pattern.permute.xlu0 15
        %3010 = vperm.xlu0 %3009, %v2656
        %v3011 = vpop.permute.xlu0 %3010
        %3013 = vset.pattern.permute.xlu0 15
        %3014 = vperm.xlu0 %3013, %v2657
        %v3015 = vpop.permute.xlu0 %3014
        %v3017 = vperm.slane %v2648, 7
        %v3018 = vmul.f32 %v3011, %v3017
        %v3019 = vmul.f32 %v3015, %v3017
        %3020 = vset.pattern.permute.xlu0 15
        %3021 = vperm.xlu0 %3020, %v2658
        %v3022 = vpop.permute.xlu0 %3021
        %3024 = vset.pattern.permute.xlu0 15
        %3025 = vperm.xlu0 %3024, %v2659
        %v3026 = vpop.permute.xlu0 %3025
        %v3028 = vadd.f32 %v3018, %v3022
        %v3029 = vadd.f32 %v3019, %v3026
        %v3030 = vmax.f32 %v3007, %v3028
        %v3031 = vmax.f32 %v3008, %v3029
        %vm3032 = vcmp.gt.f32.partialorder %v3030, -1e+38
        %vm3033 = vcmp.gt.f32.partialorder %v3031, -1e+38
        %v3034 = vsel %vm3032, %v3030, 0.0
        %v3035 = vsel %vm3033, %v3031, 0.0
        %v3036 = vmul.f32 %v592, %v2647
        %v3037 = vmul.f32 %v592, %v2648
        %v3038 = vmul.f32 %v595, %v3034
        %v3039 = vmul.f32 %v595, %v3035
        %v3040 = vadd.f32 %v3036, %v3038
        %v3041 = vadd.f32 %v3037, %v3039
        %v3042 = vadd.f32 %v3040, %v3041
        %v3043 = vrot.slane %v3042, 4
        %v3044 = vadd.f32 %v3042, %v3043
        %v3045 = vrot.slane %v3044, 2
        %v3046 = vadd.f32 %v3044, %v3045
        %v3047 = vrot.slane %v3046, 1
        %v3048 = vadd.f32 %v3046, %v3047
        %vm3049 = vcmp.eq.s32.totalorder %v203, 6
        %v3050 = vsel %vm3049, 1, 0
        %vm3051 = vcmp.eq.s32.totalorder %v3050, 1
        %v3052 = vsel %vm3051, %v3048, %v2645
        %s3053 = scalar_lea.vmem %s191, 112
        %v3054 = vld [vmem:[%s3053] sm:$0xff]
        %v3055 = vld [vmem:[%s3053 + $0x8] sm:$0xff]
        %s3056 = scalar_lea.vmem %s198, 112
        %v3057 = vld [vmem:[%s3056] sm:$0xff]
        %v3058 = vld [vmem:[%s3056 + $0x8] sm:$0xff]
        %vm3059 = vcmp.ne.f32.partialorder %v3057, %v3057
        %vm3060 = vcmp.ne.f32.partialorder %v3058, %v3058
        %vm3061 = vmxor %vm3059, 1
        %vm3062 = vmxor %vm3060, 1
        %v3063 = vsel %vm3061, %v3057, 0.0
        %v3064 = vsel %vm3062, %v3058, 0.0
        %v3065 = vsel %vm3061, 0.0, -3.4e+38
        %v3066 = vsel %vm3062, 0.0, -3.4e+38
        %3068 = vset.pattern.permute.xlu0 0
        %3069 = vperm.xlu0 %3068, %v3063
        %v3070 = vpop.permute.xlu0 %3069
        %3073 = vset.pattern.permute.xlu0 0
        %3074 = vperm.xlu0 %3073, %v3064
        %v3075 = vpop.permute.xlu0 %3074
        %v3077 = vperm.slane %v3054, 0
        %v3078 = vmul.f32 %v3070, %v3077
        %v3079 = vmul.f32 %v3075, %v3077
        %3081 = vset.pattern.permute.xlu0 0
        %3082 = vperm.xlu0 %3081, %v3065
        %v3083 = vpop.permute.xlu0 %3082
        %3086 = vset.pattern.permute.xlu0 0
        %3087 = vperm.xlu0 %3086, %v3066
        %v3088 = vpop.permute.xlu0 %3087
        %v3090 = vadd.f32 %v3078, %v3083
        %v3091 = vadd.f32 %v3079, %v3088
        %v3092 = vmax.f32 %v3090, -3.4e+38
        %v3093 = vmax.f32 %v3091, -3.4e+38
        %3094 = vset.pattern.permute.xlu0 1
        %3095 = vperm.xlu0 %3094, %v3063
        %v3096 = vpop.permute.xlu0 %3095
        %3098 = vset.pattern.permute.xlu0 1
        %3099 = vperm.xlu0 %3098, %v3064
        %v3100 = vpop.permute.xlu0 %3099
        %v3102 = vperm.slane %v3054, 1
        %v3103 = vmul.f32 %v3096, %v3102
        %v3104 = vmul.f32 %v3100, %v3102
        %3105 = vset.pattern.permute.xlu0 1
        %3106 = vperm.xlu0 %3105, %v3065
        %v3107 = vpop.permute.xlu0 %3106
        %3109 = vset.pattern.permute.xlu0 1
        %3110 = vperm.xlu0 %3109, %v3066
        %v3111 = vpop.permute.xlu0 %3110
        %v3113 = vadd.f32 %v3103, %v3107
        %v3114 = vadd.f32 %v3104, %v3111
        %v3115 = vmax.f32 %v3092, %v3113
        %v3116 = vmax.f32 %v3093, %v3114
        %3117 = vset.pattern.permute.xlu0 2
        %3118 = vperm.xlu0 %3117, %v3063
        %v3119 = vpop.permute.xlu0 %3118
        %3121 = vset.pattern.permute.xlu0 2
        %3122 = vperm.xlu0 %3121, %v3064
        %v3123 = vpop.permute.xlu0 %3122
        %v3125 = vperm.slane %v3054, 2
        %v3126 = vmul.f32 %v3119, %v3125
        %v3127 = vmul.f32 %v3123, %v3125
        %3128 = vset.pattern.permute.xlu0 2
        %3129 = vperm.xlu0 %3128, %v3065
        %v3130 = vpop.permute.xlu0 %3129
        %3132 = vset.pattern.permute.xlu0 2
        %3133 = vperm.xlu0 %3132, %v3066
        %v3134 = vpop.permute.xlu0 %3133
        %v3136 = vadd.f32 %v3126, %v3130
        %v3137 = vadd.f32 %v3127, %v3134
        %v3138 = vmax.f32 %v3115, %v3136
        %v3139 = vmax.f32 %v3116, %v3137
        %3140 = vset.pattern.permute.xlu0 3
        %3141 = vperm.xlu0 %3140, %v3063
        %v3142 = vpop.permute.xlu0 %3141
        %3144 = vset.pattern.permute.xlu0 3
        %3145 = vperm.xlu0 %3144, %v3064
        %v3146 = vpop.permute.xlu0 %3145
        %v3148 = vperm.slane %v3054, 3
        %v3149 = vmul.f32 %v3142, %v3148
        %v3150 = vmul.f32 %v3146, %v3148
        %3151 = vset.pattern.permute.xlu0 3
        %3152 = vperm.xlu0 %3151, %v3065
        %v3153 = vpop.permute.xlu0 %3152
        %3155 = vset.pattern.permute.xlu0 3
        %3156 = vperm.xlu0 %3155, %v3066
        %v3157 = vpop.permute.xlu0 %3156
        %v3159 = vadd.f32 %v3149, %v3153
        %v3160 = vadd.f32 %v3150, %v3157
        %v3161 = vmax.f32 %v3138, %v3159
        %v3162 = vmax.f32 %v3139, %v3160
        %3163 = vset.pattern.permute.xlu0 4
        %3164 = vperm.xlu0 %3163, %v3063
        %v3165 = vpop.permute.xlu0 %3164
        %3167 = vset.pattern.permute.xlu0 4
        %3168 = vperm.xlu0 %3167, %v3064
        %v3169 = vpop.permute.xlu0 %3168
        %v3171 = vperm.slane %v3054, 4
        %v3172 = vmul.f32 %v3165, %v3171
        %v3173 = vmul.f32 %v3169, %v3171
        %3174 = vset.pattern.permute.xlu0 4
        %3175 = vperm.xlu0 %3174, %v3065
        %v3176 = vpop.permute.xlu0 %3175
        %3178 = vset.pattern.permute.xlu0 4
        %3179 = vperm.xlu0 %3178, %v3066
        %v3180 = vpop.permute.xlu0 %3179
        %v3182 = vadd.f32 %v3172, %v3176
        %v3183 = vadd.f32 %v3173, %v3180
        %v3184 = vmax.f32 %v3161, %v3182
        %v3185 = vmax.f32 %v3162, %v3183
        %3186 = vset.pattern.permute.xlu0 5
        %3187 = vperm.xlu0 %3186, %v3063
        %v3188 = vpop.permute.xlu0 %3187
        %3190 = vset.pattern.permute.xlu0 5
        %3191 = vperm.xlu0 %3190, %v3064
        %v3192 = vpop.permute.xlu0 %3191
        %v3194 = vperm.slane %v3054, 5
        %v3195 = vmul.f32 %v3188, %v3194
        %v3196 = vmul.f32 %v3192, %v3194
        %3197 = vset.pattern.permute.xlu0 5
        %3198 = vperm.xlu0 %3197, %v3065
        %v3199 = vpop.permute.xlu0 %3198
        %3201 = vset.pattern.permute.xlu0 5
        %3202 = vperm.xlu0 %3201, %v3066
        %v3203 = vpop.permute.xlu0 %3202
        %v3205 = vadd.f32 %v3195, %v3199
        %v3206 = vadd.f32 %v3196, %v3203
        %v3207 = vmax.f32 %v3184, %v3205
        %v3208 = vmax.f32 %v3185, %v3206
        %3209 = vset.pattern.permute.xlu0 6
        %3210 = vperm.xlu0 %3209, %v3063
        %v3211 = vpop.permute.xlu0 %3210
        %3213 = vset.pattern.permute.xlu0 6
        %3214 = vperm.xlu0 %3213, %v3064
        %v3215 = vpop.permute.xlu0 %3214
        %v3217 = vperm.slane %v3054, 6
        %v3218 = vmul.f32 %v3211, %v3217
        %v3219 = vmul.f32 %v3215, %v3217
        %3220 = vset.pattern.permute.xlu0 6
        %3221 = vperm.xlu0 %3220, %v3065
        %v3222 = vpop.permute.xlu0 %3221
        %3224 = vset.pattern.permute.xlu0 6
        %3225 = vperm.xlu0 %3224, %v3066
        %v3226 = vpop.permute.xlu0 %3225
        %v3228 = vadd.f32 %v3218, %v3222
        %v3229 = vadd.f32 %v3219, %v3226
        %v3230 = vmax.f32 %v3207, %v3228
        %v3231 = vmax.f32 %v3208, %v3229
        %3232 = vset.pattern.permute.xlu0 7
        %3233 = vperm.xlu0 %3232, %v3063
        %v3234 = vpop.permute.xlu0 %3233
        %3236 = vset.pattern.permute.xlu0 7
        %3237 = vperm.xlu0 %3236, %v3064
        %v3238 = vpop.permute.xlu0 %3237
        %v3240 = vperm.slane %v3054, 7
        %v3241 = vmul.f32 %v3234, %v3240
        %v3242 = vmul.f32 %v3238, %v3240
        %3243 = vset.pattern.permute.xlu0 7
        %3244 = vperm.xlu0 %3243, %v3065
        %v3245 = vpop.permute.xlu0 %3244
        %3247 = vset.pattern.permute.xlu0 7
        %3248 = vperm.xlu0 %3247, %v3066
        %v3249 = vpop.permute.xlu0 %3248
        %v3251 = vadd.f32 %v3241, %v3245
        %v3252 = vadd.f32 %v3242, %v3249
        %v3253 = vmax.f32 %v3230, %v3251
        %v3254 = vmax.f32 %v3231, %v3252
        %3255 = vset.pattern.permute.xlu0 8
        %3256 = vperm.xlu0 %3255, %v3063
        %v3257 = vpop.permute.xlu0 %3256
        %3259 = vset.pattern.permute.xlu0 8
        %3260 = vperm.xlu0 %3259, %v3064
        %v3261 = vpop.permute.xlu0 %3260
        %v3263 = vperm.slane %v3055, 0
        %v3264 = vmul.f32 %v3257, %v3263
        %v3265 = vmul.f32 %v3261, %v3263
        %3266 = vset.pattern.permute.xlu0 8
        %3267 = vperm.xlu0 %3266, %v3065
        %v3268 = vpop.permute.xlu0 %3267
        %3270 = vset.pattern.permute.xlu0 8
        %3271 = vperm.xlu0 %3270, %v3066
        %v3272 = vpop.permute.xlu0 %3271
        %v3274 = vadd.f32 %v3264, %v3268
        %v3275 = vadd.f32 %v3265, %v3272
        %v3276 = vmax.f32 %v3253, %v3274
        %v3277 = vmax.f32 %v3254, %v3275
        %3278 = vset.pattern.permute.xlu0 9
        %3279 = vperm.xlu0 %3278, %v3063
        %v3280 = vpop.permute.xlu0 %3279
        %3282 = vset.pattern.permute.xlu0 9
        %3283 = vperm.xlu0 %3282, %v3064
        %v3284 = vpop.permute.xlu0 %3283
        %v3286 = vperm.slane %v3055, 1
        %v3287 = vmul.f32 %v3280, %v3286
        %v3288 = vmul.f32 %v3284, %v3286
        %3289 = vset.pattern.permute.xlu0 9
        %3290 = vperm.xlu0 %3289, %v3065
        %v3291 = vpop.permute.xlu0 %3290
        %3293 = vset.pattern.permute.xlu0 9
        %3294 = vperm.xlu0 %3293, %v3066
        %v3295 = vpop.permute.xlu0 %3294
        %v3297 = vadd.f32 %v3287, %v3291
        %v3298 = vadd.f32 %v3288, %v3295
        %v3299 = vmax.f32 %v3276, %v3297
        %v3300 = vmax.f32 %v3277, %v3298
        %3301 = vset.pattern.permute.xlu0 10
        %3302 = vperm.xlu0 %3301, %v3063
        %v3303 = vpop.permute.xlu0 %3302
        %3305 = vset.pattern.permute.xlu0 10
        %3306 = vperm.xlu0 %3305, %v3064
        %v3307 = vpop.permute.xlu0 %3306
        %v3309 = vperm.slane %v3055, 2
        %v3310 = vmul.f32 %v3303, %v3309
        %v3311 = vmul.f32 %v3307, %v3309
        %3312 = vset.pattern.permute.xlu0 10
        %3313 = vperm.xlu0 %3312, %v3065
        %v3314 = vpop.permute.xlu0 %3313
        %3316 = vset.pattern.permute.xlu0 10
        %3317 = vperm.xlu0 %3316, %v3066
        %v3318 = vpop.permute.xlu0 %3317
        %v3320 = vadd.f32 %v3310, %v3314
        %v3321 = vadd.f32 %v3311, %v3318
        %v3322 = vmax.f32 %v3299, %v3320
        %v3323 = vmax.f32 %v3300, %v3321
        %3324 = vset.pattern.permute.xlu0 11
        %3325 = vperm.xlu0 %3324, %v3063
        %v3326 = vpop.permute.xlu0 %3325
        %3328 = vset.pattern.permute.xlu0 11
        %3329 = vperm.xlu0 %3328, %v3064
        %v3330 = vpop.permute.xlu0 %3329
        %v3332 = vperm.slane %v3055, 3
        %v3333 = vmul.f32 %v3326, %v3332
        %v3334 = vmul.f32 %v3330, %v3332
        %3335 = vset.pattern.permute.xlu0 11
        %3336 = vperm.xlu0 %3335, %v3065
        %v3337 = vpop.permute.xlu0 %3336
        %3339 = vset.pattern.permute.xlu0 11
        %3340 = vperm.xlu0 %3339, %v3066
        %v3341 = vpop.permute.xlu0 %3340
        %v3343 = vadd.f32 %v3333, %v3337
        %v3344 = vadd.f32 %v3334, %v3341
        %v3345 = vmax.f32 %v3322, %v3343
        %v3346 = vmax.f32 %v3323, %v3344
        %3347 = vset.pattern.permute.xlu0 12
        %3348 = vperm.xlu0 %3347, %v3063
        %v3349 = vpop.permute.xlu0 %3348
        %3351 = vset.pattern.permute.xlu0 12
        %3352 = vperm.xlu0 %3351, %v3064
        %v3353 = vpop.permute.xlu0 %3352
        %v3355 = vperm.slane %v3055, 4
        %v3356 = vmul.f32 %v3349, %v3355
        %v3357 = vmul.f32 %v3353, %v3355
        %3358 = vset.pattern.permute.xlu0 12
        %3359 = vperm.xlu0 %3358, %v3065
        %v3360 = vpop.permute.xlu0 %3359
        %3362 = vset.pattern.permute.xlu0 12
        %3363 = vperm.xlu0 %3362, %v3066
        %v3364 = vpop.permute.xlu0 %3363
        %v3366 = vadd.f32 %v3356, %v3360
        %v3367 = vadd.f32 %v3357, %v3364
        %v3368 = vmax.f32 %v3345, %v3366
        %v3369 = vmax.f32 %v3346, %v3367
        %3370 = vset.pattern.permute.xlu0 13
        %3371 = vperm.xlu0 %3370, %v3063
        %v3372 = vpop.permute.xlu0 %3371
        %3374 = vset.pattern.permute.xlu0 13
        %3375 = vperm.xlu0 %3374, %v3064
        %v3376 = vpop.permute.xlu0 %3375
        %v3378 = vperm.slane %v3055, 5
        %v3379 = vmul.f32 %v3372, %v3378
        %v3380 = vmul.f32 %v3376, %v3378
        %3381 = vset.pattern.permute.xlu0 13
        %3382 = vperm.xlu0 %3381, %v3065
        %v3383 = vpop.permute.xlu0 %3382
        %3385 = vset.pattern.permute.xlu0 13
        %3386 = vperm.xlu0 %3385, %v3066
        %v3387 = vpop.permute.xlu0 %3386
        %v3389 = vadd.f32 %v3379, %v3383
        %v3390 = vadd.f32 %v3380, %v3387
        %v3391 = vmax.f32 %v3368, %v3389
        %v3392 = vmax.f32 %v3369, %v3390
        %3393 = vset.pattern.permute.xlu0 14
        %3394 = vperm.xlu0 %3393, %v3063
        %v3395 = vpop.permute.xlu0 %3394
        %3397 = vset.pattern.permute.xlu0 14
        %3398 = vperm.xlu0 %3397, %v3064
        %v3399 = vpop.permute.xlu0 %3398
        %v3401 = vperm.slane %v3055, 6
        %v3402 = vmul.f32 %v3395, %v3401
        %v3403 = vmul.f32 %v3399, %v3401
        %3404 = vset.pattern.permute.xlu0 14
        %3405 = vperm.xlu0 %3404, %v3065
        %v3406 = vpop.permute.xlu0 %3405
        %3408 = vset.pattern.permute.xlu0 14
        %3409 = vperm.xlu0 %3408, %v3066
        %v3410 = vpop.permute.xlu0 %3409
        %v3412 = vadd.f32 %v3402, %v3406
        %v3413 = vadd.f32 %v3403, %v3410
        %v3414 = vmax.f32 %v3391, %v3412
        %v3415 = vmax.f32 %v3392, %v3413
        %3416 = vset.pattern.permute.xlu0 15
        %3417 = vperm.xlu0 %3416, %v3063
        %v3418 = vpop.permute.xlu0 %3417
        %3420 = vset.pattern.permute.xlu0 15
        %3421 = vperm.xlu0 %3420, %v3064
        %v3422 = vpop.permute.xlu0 %3421
        %v3424 = vperm.slane %v3055, 7
        %v3425 = vmul.f32 %v3418, %v3424
        %v3426 = vmul.f32 %v3422, %v3424
        %3427 = vset.pattern.permute.xlu0 15
        %3428 = vperm.xlu0 %3427, %v3065
        %v3429 = vpop.permute.xlu0 %3428
        %3431 = vset.pattern.permute.xlu0 15
        %3432 = vperm.xlu0 %3431, %v3066
        %v3433 = vpop.permute.xlu0 %3432
        %v3435 = vadd.f32 %v3425, %v3429
        %v3436 = vadd.f32 %v3426, %v3433
        %v3437 = vmax.f32 %v3414, %v3435
        %v3438 = vmax.f32 %v3415, %v3436
        %vm3439 = vcmp.gt.f32.partialorder %v3437, -1e+38
        %vm3440 = vcmp.gt.f32.partialorder %v3438, -1e+38
        %v3441 = vsel %vm3439, %v3437, 0.0
        %v3442 = vsel %vm3440, %v3438, 0.0
        %v3443 = vmul.f32 %v592, %v3054
        %v3444 = vmul.f32 %v592, %v3055
        %v3445 = vmul.f32 %v595, %v3441
        %v3446 = vmul.f32 %v595, %v3442
        %v3447 = vadd.f32 %v3443, %v3445
        %v3448 = vadd.f32 %v3444, %v3446
        %v3449 = vadd.f32 %v3447, %v3448
        %v3450 = vrot.slane %v3449, 4
        %v3451 = vadd.f32 %v3449, %v3450
        %v3452 = vrot.slane %v3451, 2
        %v3453 = vadd.f32 %v3451, %v3452
        %v3454 = vrot.slane %v3453, 1
        %v3455 = vadd.f32 %v3453, %v3454
        %vm3456 = vcmp.eq.s32.totalorder %v203, 7
        %v3457 = vsel %vm3456, 1, 0
        %vm3458 = vcmp.eq.s32.totalorder %v3457, 1
        %v3459 = vsel %vm3458, %v3455, %v3052
        %v3460 = vmax.f32 %v3459, 0.0
        %3461 = vst [vmem:[%s185] sm:$0xff] %v3460
        %s3462 = sand.u32 %s99, 1
        %s3463 = scalar_lea.sflag [#allocation4], %s3462
        %s3464 = sand.u32 %s99, 1
        %s3465 = smul.addr %s3464, 8
        %s3466 = scalar_lea.vmem [#allocation3], %s3465
        // Predicated region
        $region33: #{tpu_custom_call.1} parent=31 // pred_check
          %p3467 = pneg %p109
        $region34: #{tpu_custom_call.1} parent=31 // pred_check_branch
          %3469 = sbr.rel (%p3467) target = $region36
        $region35: #{tpu_custom_call.1} parent=31 // pred_region
          %3471 = vsyncadd %s3463, 0
          %s3472 = smul.addr %s18, 8
          %s3473 = scalar_lea.hbm %s3, %s3472
          %s3475 = sshll.u32 %s3466, 4
          %s3476 = int_to_ptr.vmem [resolvable:$true] %s3475
          %s3477 = sshll.u32 %s3473, 4
          %s3478 = int_to_ptr.hbm [resolvable:$true] %s3477
          %3480 = dma.vmem_to_hbm [thread:$0]  %s3476, 128, %s3478, %s3463
        $region36: #{tpu_custom_call.1} parent=31 // pred_fallthru
          _
      $region32: #{tpu_custom_call.1} parent=5 // pred_fallthru
        _
      %p3481 = scmp.le.s32.totalorder 2, %s13
      // Predicated region
      $region37: #{tpu_custom_call.1} parent=5 // pred_check
        %p3482 = pneg %p3481
      $region38: #{tpu_custom_call.1} parent=5 // pred_check_branch
        %3484 = sbr.rel (%p3482) target = $region40
      $region39: #{tpu_custom_call.1} parent=5 // pred_region
        %s3485 = ssub.s32 %s13, 2
        // Predicated region
        $region41: #{tpu_custom_call.1} parent=39 // pred_check
          %p3486 = pneg %p115
        $region42: #{tpu_custom_call.1} parent=39 // pred_check_branch
          %3488 = sbr.rel (%p3486) target = $region44
        $region43: #{tpu_custom_call.1} parent=39 // pred_region
          %s3489 = sand.u32 %s100, 1
          %s3490 = scalar_lea.sflag [#allocation4], %s3489
          %s3491 = sand.u32 %s100, 1
          %s3492 = smul.addr %s3491, 8
          %s3493 = scalar_lea.vmem [#allocation3], %s3492
          %3495 = dma.done %s3490, 128
        $region44: #{tpu_custom_call.1} parent=39 // pred_fallthru
          _
      $region40: #{tpu_custom_call.1} parent=5 // pred_fallthru
        _
    $region6: #{tpu_custom_call.1} parent=1 // loop_footer
      %s17 = sadd.s32 1, %s13
    $region7: #{tpu_custom_call.1} parent=1 // loop_footer_branch
      %12 = sbr.rel target = $region3
    $region8: #{tpu_custom_call.1} parent=1 // loop_exit
      _
    %3496 = vsyncpa [#allocation4], 1
    %s3497 = scalar_lea.sflag [#allocation4], 1
    %3498 = vsyncpa %s3497, 1

</llo_original>
